<compile_context>
chip_gen: v6e
topology: v6e:2x2x1
jax: 0.10.0
libtpu: 0.0.40
codegen_flags: <defaults>
</compile_context>

<pallas_src>
import functools

import jax
import jax.numpy as jnp
from jax import lax
from jax.experimental import pallas as pl
from jax.experimental.pallas import tpu as pltpu


# ------------------------------ fused kernel --------------------------------

def _make_bottleneck_kernel(s, Hs, Ws, Cin, width, out4, has_ds, identity_f32,
                            concat_k, front, back, pitch, B_tile):
    """Build the fused bottleneck kernel body (all sizes are static ints).

    Input x is laid out as [B_tile, s*s, Hs*Ws, Cin] per grid step, where
    phase (p, q) holds x[:, p::s, q::s, :].  Output spatial is (Hs, Ws)
    flattened.  The conv1 staging buffer holds, per image and per phase:
    [1-row top halo | Hs*Ws valid rows | bottom halo + pad], with front/back
    slack rows so shifted 3x3 tap slices stay inside the buffer.
    """
    nph = s * s
    npix = Hs * Ws
    M = B_tile * npix
    pad_rows = pitch - (Hs + 1) * Ws          # bottom halo + inter-phase pad

    def kernel(x_ref, w1_ref, b1_ref, w2_ref, b2_ref, w3_ref, b3_ref, *rest):
        if has_ds:
            wd_ref, bd_ref, o_ref, o1_ref = rest
        else:
            o_ref, o1_ref = rest

        # ---- zero ONLY the halo rows and front/back slack -------------------
        def zrow(n):
            return jnp.zeros((B_tile, n, width), o1_ref.dtype)

        o1_ref[:, 0:front, :] = zrow(front)
        for ph in range(nph):
            top = front + ph * pitch
            o1_ref[:, top:top + Ws, :] = zrow(Ws)
            bot = top + Ws + npix
            o1_ref[:, bot:bot + pad_rows, :] = zrow(pad_rows)
        bstart = front + nph * pitch
        o1_ref[:, bstart:bstart + back, :] = zrow(back)

        # ---- conv1 (1x1) + bn1: one matmul per phase, batch folded into M ---
        for ph in range(nph):
            xp = x_ref[:, ph]
            if identity_f32:
                xp = xp.astype(jnp.bfloat16)
            y = jnp.dot(xp.reshape(M, Cin), w1_ref[...],
                        preferred_element_type=jnp.float32) + b1_ref[...]
            base = front + ph * pitch + Ws
            o1_ref[:, base:base + npix, :] = (
                y.astype(o1_ref.dtype).reshape(B_tile, npix, width))

        # ---- conv2 (3x3, stride s, pad 1) + bn2 ------------------------------
        # Column masks (hoisted & pre-broadcast once): taps whose W offset
        # leaves the image must not pick up the flattened-layout wrap-around
        # pixel of the adjacent row.
        db_of = {}
        for kw in range(3):
            b = kw - 1
            q = b % s
            db_of[kw] = (b - q) // s
        ow = lax.broadcasted_iota(jnp.int32, (M, 1), 0) % Ws
        mask_l = (jnp.broadcast_to(ow > 0, (M, width))
                  if any(v == -1 for v in db_of.values()) else None)
        mask_r = (jnp.broadcast_to(ow < (Ws - 1), (M, width))
                  if any(v == 1 for v in db_of.values()) else None)
        zero_t = jnp.zeros((M, width), jnp.bfloat16)

        taps = []                                # kw-major order == w2 fold order
        for kw in range(3):
            b = kw - 1
            q = b % s
            db = db_of[kw]
            for kh in range(3):
                a = kh - 1
                p = a % s
                da = (a - p) // s
                ph = p * s + q
                start = front + ph * pitch + (1 + da) * Ws + db
                tap = o1_ref[:, start:start + npix, :].reshape(M, width)
                if db == -1:
                    tap = jnp.where(mask_l, tap, zero_t)
                elif db == 1:
                    tap = jnp.where(mask_r, tap, zero_t)
                taps.append(tap)

        if concat_k:
            # Lane-aligned width: one K = 9*width matmul (fills MXU K depth,
            # no per-tap f32 accumulate adds / result-FIFO drains).
            cat = jnp.concatenate(taps, axis=-1)
            acc = jnp.dot(cat, w2_ref[...], preferred_element_type=jnp.float32)
        else:
            acc = jnp.zeros((M, width), jnp.float32)
            for t, tap in enumerate(taps):
                acc = acc + jnp.dot(tap, w2_ref[t * width:(t + 1) * width, :],
                                    preferred_element_type=jnp.float32)
        out2 = (acc + b2_ref[...]).astype(jnp.bfloat16)

        # ---- conv3 (1x1) + bn3 ----------------------------------------------
        out3 = jnp.dot(out2, w3_ref[...],
                       preferred_element_type=jnp.float32) + b3_ref[...]

        # ---- shortcut (fused 1x1 stride-s conv + bn, or f32 identity) -------
        if has_ds:
            sc = jnp.dot(x_ref[:, 0].reshape(M, Cin), wd_ref[...],
                         preferred_element_type=jnp.float32) + bd_ref[...]
        else:
            # identity path: wrapper keeps x in f32 here (s == 1, Cin == out4).
            sc = x_ref[:, 0].astype(jnp.float32).reshape(M, out4)

        # ---- residual add + ReLU --------------------------------------------
        out = jnp.maximum(out3 + sc, 0.0).astype(o_ref.dtype)
        o_ref[...] = out.reshape(B_tile, npix, out4)

    return kernel


# ------------------------------- JAX wrapper ---------------------------------

def bn_fold(gamma, beta, mean, var, eps=1e-5):
    scale = gamma / jnp.sqrt(var + eps)
    bias = beta - mean * scale
    return scale, bias


def _fold_1x1(w, bn):
    """torch [Cout,Cin,1,1] + BN -> bf16 [Cin,Cout] (scale folded), f32 bias."""
    scale, bias = bn_fold(*bn)
    wm = jnp.transpose(w[:, :, 0, 0], (1, 0)) * scale[None, :]
    return wm.astype(jnp.bfloat16), bias.reshape(1, -1).astype(jnp.float32)


def _fold_3x3(w, bn):
    """torch [Cout,Cin,3,3] + BN -> bf16 [9*Cin,Cout] (kw-major taps), f32 bias."""
    scale, bias = bn_fold(*bn)
    co, ci = w.shape[0], w.shape[1]
    wm = jnp.transpose(w, (3, 2, 1, 0)).reshape(9, ci, co) * scale[None, None, :]
    return (wm.reshape(9 * ci, co).astype(jnp.bfloat16),
            bias.reshape(1, -1).astype(jnp.float32))


def _round_up(v, m):
    return -(-v // m) * m


def bottleneck_forward(x_nchw, params, stride, has_ds):
    """Pallas-backed Bottleneck forward.  Input/output NCHW (f32)."""
    N, Cin, H, W = x_nchw.shape
    s = int(stride)
    assert H % s == 0 and W % s == 0
    Hs, Ws = H // s, W // s                    # == output spatial (Ho, Wo)
    npix = Hs * Ws
    width = params["conv1_w"].shape[0]
    out4 = params["conv3_w"].shape[0]
    identity_f32 = not has_ds                  # keep x f32 for the identity add
    concat_k = (width % 128 == 0)              # lane-aligned -> concat-K conv2

    # NCHW -> NHWC -> phase (space-to-depth) layout [N, s*s, Hs*Ws, Cin];
    # phase (p, q) holds x[:, p::s, q::s, :].  Only wrapper-side data movement.
    x = jnp.transpose(x_nchw, (0, 2, 3, 1))
    x = x.reshape(N, Hs, s, Ws, s, Cin)
    x = jnp.transpose(x, (0, 2, 4, 1, 3, 5)).reshape(N, s * s, npix, Cin)
    if not identity_f32:
        x = x.astype(jnp.bfloat16)

    w1, b1 = _fold_1x1(params["conv1_w"], params["bn1"])
    w2, b2 = _fold_3x3(params["conv2_w"], params["bn2"])
    w3, b3 = _fold_1x1(params["conv3_w"], params["bn3"])

    # Haloed conv1 staging-buffer geometry (rows per image).
    front, back = 8, 8                          # multiples of the sublane tile
    assert front >= 1 and back >= 1             # taps read rows front-1 / end+1
    pitch = _round_up((Hs + 2) * Ws, 8)         # per-phase rows, tile-aligned
    o1_rows = front + s * s * pitch + back

    # Batch-block to raise the matmul M dim (target M >= 512); must divide N
    # and fit a conservative per-core VMEM budget.
    x_bytes = s * s * npix * Cin * (4 if identity_f32 else 2)
    per_img = 2 * (x_bytes + npix * out4 * 4) + o1_rows * width * 2
    target_m = max(1, _round_up(512, npix) // npix)
    B_tile = 1
    for d in range(1, N + 1):
        if N % d == 0 and d <= target_m and d * per_img <= 24 * 1024 * 1024:
            B_tile = d

    inputs = [x, w1, b1, w2, b2, w3, b3]
    in_specs = [
        pl.BlockSpec((B_tile, s * s, npix, Cin), lambda n: (n, 0, 0, 0)),
        pl.BlockSpec((Cin, width), lambda n: (0, 0)),
        pl.BlockSpec((1, width), lambda n: (0, 0)),
        pl.BlockSpec((9 * width, width), lambda n: (0, 0)),
        pl.BlockSpec((1, width), lambda n: (0, 0)),
        pl.BlockSpec((width, out4), lambda n: (0, 0)),
        pl.BlockSpec((1, out4), lambda n: (0, 0)),
    ]
    if has_ds:
        wd, bd = _fold_1x1(params["ds_w"], params["bn_ds"])
        inputs += [wd, bd]
        in_specs += [pl.BlockSpec((Cin, out4), lambda n: (0, 0)),
                     pl.BlockSpec((1, out4), lambda n: (0, 0))]

    kernel = _make_bottleneck_kernel(
        s, Hs, Ws, Cin, width, out4, has_ds, identity_f32, concat_k,
        front, back, pitch, B_tile)

    out = pl.pallas_call(
        kernel,
        out_shape=jax.ShapeDtypeStruct((N, npix, out4), jnp.float32),
        grid_spec=pltpu.PrefetchScalarGridSpec(
            num_scalar_prefetch=0,
            grid=(N // B_tile,),
            in_specs=in_specs,
            out_specs=pl.BlockSpec((B_tile, npix, out4), lambda n: (n, 0, 0)),
            scratch_shapes=[pltpu.VMEM((B_tile, o1_rows, width), jnp.bfloat16)],
        ),
        compiler_params=pltpu.CompilerParams(
            dimension_semantics=("parallel",),
            vmem_limit_bytes=32 * 1024 * 1024,
        ),
    )(*inputs)

    out = out.reshape(N, Hs, Ws, out4)
    return jnp.transpose(out, (0, 3, 1, 2))    # -> NCHW (module semantics)


# ------------------------------ params / reference ---------------------------

def init_params(key, in_chan, out_chan, stride, base_width=64):
    width = int(out_chan * (base_width / 64.0)) * 1
    out4 = out_chan * 4
    ks = jax.random.split(key, 16)

    def conv_w(k, co, ci, kh, kw):
        fan_in = ci * kh * kw
        return (jax.random.normal(k, (co, ci, kh, kw), jnp.float32)
                * (1.0 / jnp.sqrt(fan_in)))

    def bn_p(k, c):
        k1, k2, k3, k4 = jax.random.split(k, 4)
        gamma = 0.5 + jax.random.uniform(k1, (c,), jnp.float32)
        beta = 0.1 * jax.random.normal(k2, (c,), jnp.float32)
        mean = 0.1 * jax.random.normal(k3, (c,), jnp.float32)
        var = 0.5 + jax.random.uniform(k4, (c,), jnp.float32)
        return gamma, beta, mean, var

    p = {
        "conv1_w": conv_w(ks[0], width, in_chan, 1, 1),
        "bn1": bn_p(ks[1], width),
        "conv2_w": conv_w(ks[2], width, width, 3, 3),
        "bn2": bn_p(ks[3], width),
        "conv3_w": conv_w(ks[4], out4, width, 1, 1),
        "bn3": bn_p(ks[5], out4),
    }
    has_ds = (in_chan != out4) or (stride != 1)
    if has_ds:
        p["ds_w"] = conv_w(ks[6], out4, in_chan, 1, 1)
        p["bn_ds"] = bn_p(ks[7], out4)
    return p, width, out4, has_ds


def _conv_nchw(x, w, stride, pad):
    return lax.conv_general_dilated(
        x, w, (stride, stride), [(pad, pad), (pad, pad)],
        dimension_numbers=("NCHW", "OIHW", "NCHW"))


def _bn_nchw(x, bn, eps=1e-5):
    g, b, m, v = bn
    s = g / jnp.sqrt(v + eps)
    return x * s[None, :, None, None] + (b - m * s)[None, :, None, None]


def bottleneck_ref(x, params, stride, has_ds):
    out = _bn_nchw(_conv_nchw(x, params["conv1_w"], 1, 0), params["bn1"])
    out = _bn_nchw(_conv_nchw(out, params["conv2_w"], stride, 1), params["bn2"])
    out = _bn_nchw(_conv_nchw(out, params["conv3_w"], 1, 0), params["bn3"])
    shortcut = x
    if has_ds:
        shortcut = _bn_nchw(_conv_nchw(x, params["ds_w"], stride, 0), params["bn_ds"])
    return jnp.maximum(shortcut + out, 0.0)


def _check(y, y_ref, shape):
    assert y.shape == shape, (y.shape, shape)
    err = float(jnp.max(jnp.abs(y - y_ref)))
    tol = 5e-2 * max(1.0, float(jnp.max(jnp.abs(y_ref))))   # bf16 MXU inputs
    assert err <= tol, (err, tol)


# ---------------------------------- main -------------------------------------

if __name__ == "__main__":
    key = jax.random.PRNGKey(0)
    k_x, k_p, k_x2, k_p2, k_x3, k_p3 = jax.random.split(key, 6)

    # Case 1: stride 2, projection (downsample) shortcut; batch-blocked grid.
    N, in_chan, H, W = 2, 16, 16, 16
    out_chan, stride = 8, 2
    x = jax.random.normal(k_x, (N, in_chan, H, W), jnp.float32)
    params, width, out4, has_ds = init_params(k_p, in_chan, out_chan, stride)
    fwd = jax.jit(functools.partial(bottleneck_forward, stride=stride, has_ds=has_ds))
    y = fwd(x, params)
    jax.block_until_ready(y)
    _check(y, bottleneck_ref(x, params, stride, has_ds),
           (N, out4, H // stride, W // stride))

    # Case 2: stride 1, identity shortcut (f32 residual add).
    in_chan2, out_chan2, stride2, H2, W2 = 32, 8, 1, 8, 8
    x2 = jax.random.normal(k_x2, (N, in_chan2, H2, W2), jnp.float32)
    params2, _, out4b, has_ds2 = init_params(k_p2, in_chan2, out_chan2, stride2)
    assert not has_ds2
    fwd2 = jax.jit(functools.partial(bottleneck_forward, stride=stride2, has_ds=has_ds2))
    y2 = fwd2(x2, params2)
    jax.block_until_ready(y2)
    _check(y2, bottleneck_ref(x2, params2, stride2, has_ds2), (N, out4b, H2, W2))

    # Case 3: stride 1 with projection shortcut, larger spatial -> grid of 2
    # steps (B_tile = 1), exercising the batch-blocked index map.
    in_chan3, out_chan3, stride3, H3, W3 = 16, 8, 1, 32, 32
    x3 = jax.random.normal(k_x3, (N, in_chan3, H3, W3), jnp.float32)
    params3, _, out4c, has_ds3 = init_params(k_p3, in_chan3, out_chan3, stride3)
    assert has_ds3
    fwd3 = jax.jit(functools.partial(bottleneck_forward, stride=stride3, has_ds=has_ds3))
    y3 = fwd3(x3, params3)
    jax.block_until_ready(y3)
    _check(y3, bottleneck_ref(x3, params3, stride3, has_ds3), (N, out4c, H3, W3))

    print("KERNEL_OK")
</pallas_src>

<mosaic_0001>
module attributes {stable_mosaic.version = 11 : i64} {
  func.func @kernel(%arg0: i32, %arg1: memref<2x4x64x16xbf16, #tpu.memory_space<vmem>>, %arg2: memref<16x8xbf16, #tpu.memory_space<vmem>>, %arg3: memref<1x8xf32, #tpu.memory_space<vmem>>, %arg4: memref<72x8xbf16, #tpu.memory_space<vmem>>, %arg5: memref<1x8xf32, #tpu.memory_space<vmem>>, %arg6: memref<8x32xbf16, #tpu.memory_space<vmem>>, %arg7: memref<1x32xf32, #tpu.memory_space<vmem>>, %arg8: memref<16x32xbf16, #tpu.memory_space<vmem>>, %arg9: memref<1x32xf32, #tpu.memory_space<vmem>>, %arg10: memref<2x64x32xf32, #tpu.memory_space<vmem>>, %arg11: memref<2x336x8xbf16, #tpu.memory_space<vmem>>) attributes {dimension_semantics = [#tpu.dimension_semantics<parallel>], iteration_bounds = array<i64: 1>, scalar_prefetch = 0 : i64, scratch_operands = 1 : i64, tpu.core_type = #tpu.core_type<tc>, window_params = [{transform_indices = @transform_0, window_bounds = array<i64: 2, 4, 64, 16>}, {pipeline_mode = #tpu.pipeline_mode<synchronous>, transform_indices = @transform_1, window_bounds = array<i64: 16, 8>}, {pipeline_mode = #tpu.pipeline_mode<synchronous>, transform_indices = @transform_2, window_bounds = array<i64: 1, 8>}, {pipeline_mode = #tpu.pipeline_mode<synchronous>, transform_indices = @transform_3, window_bounds = array<i64: 72, 8>}, {pipeline_mode = #tpu.pipeline_mode<synchronous>, transform_indices = @transform_4, window_bounds = array<i64: 1, 8>}, {pipeline_mode = #tpu.pipeline_mode<synchronous>, transform_indices = @transform_5, window_bounds = array<i64: 8, 32>}, {pipeline_mode = #tpu.pipeline_mode<synchronous>, transform_indices = @transform_6, window_bounds = array<i64: 1, 32>}, {pipeline_mode = #tpu.pipeline_mode<synchronous>, transform_indices = @transform_7, window_bounds = array<i64: 16, 32>}, {pipeline_mode = #tpu.pipeline_mode<synchronous>, transform_indices = @transform_8, window_bounds = array<i64: 1, 32>}, {transform_indices = @transform_9, window_bounds = array<i64: 2, 64, 32>}]} {
    %cst = arith.constant 0.000000e+00 : bf16
    %0 = vector.broadcast %cst : bf16 to vector<2x8x8xbf16>
    %c0 = arith.constant 0 : index
    %c0_0 = arith.constant 0 : index
    %c0_1 = arith.constant 0 : index
    %1 = vector.load %arg11[%c0, %c0_0, %c0_1] : memref<2x336x8xbf16, #tpu.memory_space<vmem>>, vector<2x8x8xbf16>
    tpu.vector_store %arg11[%c0, %c0_0, %c0_1], %0 {strides = array<i32>} : memref<2x336x8xbf16, #tpu.memory_space<vmem>>, vector<2x8x8xbf16>,
    %cst_2 = arith.constant 0.000000e+00 : bf16
    %2 = vector.broadcast %cst_2 : bf16 to vector<2x8x8xbf16>
    %c0_3 = arith.constant 0 : index
    %c8 = arith.constant 8 : index
    %c0_4 = arith.constant 0 : index
    %3 = vector.load %arg11[%c0_3, %c8, %c0_4] : memref<2x336x8xbf16, #tpu.memory_space<vmem>>, vector<2x8x8xbf16>
    tpu.vector_store %arg11[%c0_3, %c8, %c0_4], %2 {strides = array<i32>} : memref<2x336x8xbf16, #tpu.memory_space<vmem>>, vector<2x8x8xbf16>,
    %cst_5 = arith.constant 0.000000e+00 : bf16
    %4 = vector.broadcast %cst_5 : bf16 to vector<2x8x8xbf16>
    %c0_6 = arith.constant 0 : index
    %c80 = arith.constant 80 : index
    %c0_7 = arith.constant 0 : index
    %5 = vector.load %arg11[%c0_6, %c80, %c0_7] : memref<2x336x8xbf16, #tpu.memory_space<vmem>>, vector<2x8x8xbf16>
    tpu.vector_store %arg11[%c0_6, %c80, %c0_7], %4 {strides = array<i32>} : memref<2x336x8xbf16, #tpu.memory_space<vmem>>, vector<2x8x8xbf16>,
    %cst_8 = arith.constant 0.000000e+00 : bf16
    %6 = vector.broadcast %cst_8 : bf16 to vector<2x8x8xbf16>
    %c0_9 = arith.constant 0 : index
    %c88 = arith.constant 88 : index
    %c0_10 = arith.constant 0 : index
    %7 = vector.load %arg11[%c0_9, %c88, %c0_10] : memref<2x336x8xbf16, #tpu.memory_space<vmem>>, vector<2x8x8xbf16>
    tpu.vector_store %arg11[%c0_9, %c88, %c0_10], %6 {strides = array<i32>} : memref<2x336x8xbf16, #tpu.memory_space<vmem>>, vector<2x8x8xbf16>,
    %cst_11 = arith.constant 0.000000e+00 : bf16
    %8 = vector.broadcast %cst_11 : bf16 to vector<2x8x8xbf16>
    %c0_12 = arith.constant 0 : index
    %c160 = arith.constant 160 : index
    %c0_13 = arith.constant 0 : index
    %9 = vector.load %arg11[%c0_12, %c160, %c0_13] : memref<2x336x8xbf16, #tpu.memory_space<vmem>>, vector<2x8x8xbf16>
    tpu.vector_store %arg11[%c0_12, %c160, %c0_13], %8 {strides = array<i32>} : memref<2x336x8xbf16, #tpu.memory_space<vmem>>, vector<2x8x8xbf16>,
    %cst_14 = arith.constant 0.000000e+00 : bf16
    %10 = vector.broadcast %cst_14 : bf16 to vector<2x8x8xbf16>
    %c0_15 = arith.constant 0 : index
    %c168 = arith.constant 168 : index
    %c0_16 = arith.constant 0 : index
    %11 = vector.load %arg11[%c0_15, %c168, %c0_16] : memref<2x336x8xbf16, #tpu.memory_space<vmem>>, vector<2x8x8xbf16>
    tpu.vector_store %arg11[%c0_15, %c168, %c0_16], %10 {strides = array<i32>} : memref<2x336x8xbf16, #tpu.memory_space<vmem>>, vector<2x8x8xbf16>,
    %cst_17 = arith.constant 0.000000e+00 : bf16
    %12 = vector.broadcast %cst_17 : bf16 to vector<2x8x8xbf16>
    %c0_18 = arith.constant 0 : index
    %c240 = arith.constant 240 : index
    %c0_19 = arith.constant 0 : index
    %13 = vector.load %arg11[%c0_18, %c240, %c0_19] : memref<2x336x8xbf16, #tpu.memory_space<vmem>>, vector<2x8x8xbf16>
    tpu.vector_store %arg11[%c0_18, %c240, %c0_19], %12 {strides = array<i32>} : memref<2x336x8xbf16, #tpu.memory_space<vmem>>, vector<2x8x8xbf16>,
    %cst_20 = arith.constant 0.000000e+00 : bf16
    %14 = vector.broadcast %cst_20 : bf16 to vector<2x8x8xbf16>
    %c0_21 = arith.constant 0 : index
    %c248 = arith.constant 248 : index
    %c0_22 = arith.constant 0 : index
    %15 = vector.load %arg11[%c0_21, %c248, %c0_22] : memref<2x336x8xbf16, #tpu.memory_space<vmem>>, vector<2x8x8xbf16>
    tpu.vector_store %arg11[%c0_21, %c248, %c0_22], %14 {strides = array<i32>} : memref<2x336x8xbf16, #tpu.memory_space<vmem>>, vector<2x8x8xbf16>,
    %cst_23 = arith.constant 0.000000e+00 : bf16
    %16 = vector.broadcast %cst_23 : bf16 to vector<2x8x8xbf16>
    %c0_24 = arith.constant 0 : index
    %c320 = arith.constant 320 : index
    %c0_25 = arith.constant 0 : index
    %17 = vector.load %arg11[%c0_24, %c320, %c0_25] : memref<2x336x8xbf16, #tpu.memory_space<vmem>>, vector<2x8x8xbf16>
    tpu.vector_store %arg11[%c0_24, %c320, %c0_25], %16 {strides = array<i32>} : memref<2x336x8xbf16, #tpu.memory_space<vmem>>, vector<2x8x8xbf16>,
    %cst_26 = arith.constant 0.000000e+00 : bf16
    %18 = vector.broadcast %cst_26 : bf16 to vector<2x8x8xbf16>
    %c0_27 = arith.constant 0 : index
    %c328 = arith.constant 328 : index
    %c0_28 = arith.constant 0 : index
    %19 = vector.load %arg11[%c0_27, %c328, %c0_28] : memref<2x336x8xbf16, #tpu.memory_space<vmem>>, vector<2x8x8xbf16>
    tpu.vector_store %arg11[%c0_27, %c328, %c0_28], %18 {strides = array<i32>} : memref<2x336x8xbf16, #tpu.memory_space<vmem>>, vector<2x8x8xbf16>,
    %c0_29 = arith.constant 0 : index
    %c0_30 = arith.constant 0 : index
    %c0_31 = arith.constant 0 : index
    %c0_32 = arith.constant 0 : index
    %20 = vector.load %arg1[%c0_29, %c0_30, %c0_31, %c0_32] : memref<2x4x64x16xbf16, #tpu.memory_space<vmem>>, vector<2x1x64x16xbf16>
    %21 = vector.shape_cast %20 : vector<2x1x64x16xbf16> to vector<2x64x16xbf16>
    %22 = vector.shape_cast %21 : vector<2x64x16xbf16> to vector<128x16xbf16>
    %c0_33 = arith.constant 0 : index
    %c0_34 = arith.constant 0 : index
    %23 = vector.load %arg2[%c0_33, %c0_34] : memref<16x8xbf16, #tpu.memory_space<vmem>>, vector<16x8xbf16>
    %cst_35 = arith.constant dense<0.000000e+00> : vector<128x8xf32>
    %24 = tpu.matmul %22, %23, %cst_35 {dimension_numbers = #tpu.dot_dimension_numbers<[1], [0], [0], [1], [0, 0, 1, 1], [], []>} : vector<128x16xbf16>, vector<16x8xbf16>, vector<128x8xf32> -> vector<128x8xf32>
    %c0_36 = arith.constant 0 : index
    %c0_37 = arith.constant 0 : index
    %25 = vector.load %arg3[%c0_36, %c0_37] : memref<1x8xf32, #tpu.memory_space<vmem>>, vector<1x8xf32>
    %26 = vector.broadcast %25 : vector<1x8xf32> to vector<128x8xf32>
    %27 = arith.addf %24, %26 : vector<128x8xf32>
    %28 = arith.truncf %27 : vector<128x8xf32> to vector<128x8xbf16>
    %29 = vector.shape_cast %28 : vector<128x8xbf16> to vector<2x64x8xbf16>
    %c0_38 = arith.constant 0 : index
    %c16 = arith.constant 16 : index
    %c0_39 = arith.constant 0 : index
    %30 = vector.load %arg11[%c0_38, %c16, %c0_39] : memref<2x336x8xbf16, #tpu.memory_space<vmem>>, vector<2x64x8xbf16>
    tpu.vector_store %arg11[%c0_38, %c16, %c0_39], %29 {strides = array<i32>} : memref<2x336x8xbf16, #tpu.memory_space<vmem>>, vector<2x64x8xbf16>,
    %c0_40 = arith.constant 0 : index
    %c1 = arith.constant 1 : index
    %c0_41 = arith.constant 0 : index
    %c0_42 = arith.constant 0 : index
    %31 = vector.load %arg1[%c0_40, %c1, %c0_41, %c0_42] : memref<2x4x64x16xbf16, #tpu.memory_space<vmem>>, vector<2x1x64x16xbf16>
    %32 = vector.shape_cast %31 : vector<2x1x64x16xbf16> to vector<2x64x16xbf16>
    %33 = vector.shape_cast %32 : vector<2x64x16xbf16> to vector<128x16xbf16>
    %c0_43 = arith.constant 0 : index
    %c0_44 = arith.constant 0 : index
    %34 = vector.load %arg2[%c0_43, %c0_44] : memref<16x8xbf16, #tpu.memory_space<vmem>>, vector<16x8xbf16>
    %cst_45 = arith.constant dense<0.000000e+00> : vector<128x8xf32>
    %35 = tpu.matmul %33, %34, %cst_45 {dimension_numbers = #tpu.dot_dimension_numbers<[1], [0], [0], [1], [0, 0, 1, 1], [], []>} : vector<128x16xbf16>, vector<16x8xbf16>, vector<128x8xf32> -> vector<128x8xf32>
    %c0_46 = arith.constant 0 : index
    %c0_47 = arith.constant 0 : index
    %36 = vector.load %arg3[%c0_46, %c0_47] : memref<1x8xf32, #tpu.memory_space<vmem>>, vector<1x8xf32>
    %37 = vector.broadcast %36 : vector<1x8xf32> to vector<128x8xf32>
    %38 = arith.addf %35, %37 : vector<128x8xf32>
    %39 = arith.truncf %38 : vector<128x8xf32> to vector<128x8xbf16>
    %40 = vector.shape_cast %39 : vector<128x8xbf16> to vector<2x64x8xbf16>
    %c0_48 = arith.constant 0 : index
    %c96 = arith.constant 96 : index
    %c0_49 = arith.constant 0 : index
    %41 = vector.load %arg11[%c0_48, %c96, %c0_49] : memref<2x336x8xbf16, #tpu.memory_space<vmem>>, vector<2x64x8xbf16>
    tpu.vector_store %arg11[%c0_48, %c96, %c0_49], %40 {strides = array<i32>} : memref<2x336x8xbf16, #tpu.memory_space<vmem>>, vector<2x64x8xbf16>,
    %c0_50 = arith.constant 0 : index
    %c2 = arith.constant 2 : index
    %c0_51 = arith.constant 0 : index
    %c0_52 = arith.constant 0 : index
    %42 = vector.load %arg1[%c0_50, %c2, %c0_51, %c0_52] : memref<2x4x64x16xbf16, #tpu.memory_space<vmem>>, vector<2x1x64x16xbf16>
    %43 = vector.shape_cast %42 : vector<2x1x64x16xbf16> to vector<2x64x16xbf16>
    %44 = vector.shape_cast %43 : vector<2x64x16xbf16> to vector<128x16xbf16>
    %c0_53 = arith.constant 0 : index
    %c0_54 = arith.constant 0 : index
    %45 = vector.load %arg2[%c0_53, %c0_54] : memref<16x8xbf16, #tpu.memory_space<vmem>>, vector<16x8xbf16>
    %cst_55 = arith.constant dense<0.000000e+00> : vector<128x8xf32>
    %46 = tpu.matmul %44, %45, %cst_55 {dimension_numbers = #tpu.dot_dimension_numbers<[1], [0], [0], [1], [0, 0, 1, 1], [], []>} : vector<128x16xbf16>, vector<16x8xbf16>, vector<128x8xf32> -> vector<128x8xf32>
    %c0_56 = arith.constant 0 : index
    %c0_57 = arith.constant 0 : index
    %47 = vector.load %arg3[%c0_56, %c0_57] : memref<1x8xf32, #tpu.memory_space<vmem>>, vector<1x8xf32>
    %48 = vector.broadcast %47 : vector<1x8xf32> to vector<128x8xf32>
    %49 = arith.addf %46, %48 : vector<128x8xf32>
    %50 = arith.truncf %49 : vector<128x8xf32> to vector<128x8xbf16>
    %51 = vector.shape_cast %50 : vector<128x8xbf16> to vector<2x64x8xbf16>
    %c0_58 = arith.constant 0 : index
    %c176 = arith.constant 176 : index
    %c0_59 = arith.constant 0 : index
    %52 = vector.load %arg11[%c0_58, %c176, %c0_59] : memref<2x336x8xbf16, #tpu.memory_space<vmem>>, vector<2x64x8xbf16>
    tpu.vector_store %arg11[%c0_58, %c176, %c0_59], %51 {strides = array<i32>} : memref<2x336x8xbf16, #tpu.memory_space<vmem>>, vector<2x64x8xbf16>,
    %c0_60 = arith.constant 0 : index
    %c3 = arith.constant 3 : index
    %c0_61 = arith.constant 0 : index
    %c0_62 = arith.constant 0 : index
    %53 = vector.load %arg1[%c0_60, %c3, %c0_61, %c0_62] : memref<2x4x64x16xbf16, #tpu.memory_space<vmem>>, vector<2x1x64x16xbf16>
    %54 = vector.shape_cast %53 : vector<2x1x64x16xbf16> to vector<2x64x16xbf16>
    %55 = vector.shape_cast %54 : vector<2x64x16xbf16> to vector<128x16xbf16>
    %c0_63 = arith.constant 0 : index
    %c0_64 = arith.constant 0 : index
    %56 = vector.load %arg2[%c0_63, %c0_64] : memref<16x8xbf16, #tpu.memory_space<vmem>>, vector<16x8xbf16>
    %cst_65 = arith.constant dense<0.000000e+00> : vector<128x8xf32>
    %57 = tpu.matmul %55, %56, %cst_65 {dimension_numbers = #tpu.dot_dimension_numbers<[1], [0], [0], [1], [0, 0, 1, 1], [], []>} : vector<128x16xbf16>, vector<16x8xbf16>, vector<128x8xf32> -> vector<128x8xf32>
    %c0_66 = arith.constant 0 : index
    %c0_67 = arith.constant 0 : index
    %58 = vector.load %arg3[%c0_66, %c0_67] : memref<1x8xf32, #tpu.memory_space<vmem>>, vector<1x8xf32>
    %59 = vector.broadcast %58 : vector<1x8xf32> to vector<128x8xf32>
    %60 = arith.addf %57, %59 : vector<128x8xf32>
    %61 = arith.truncf %60 : vector<128x8xf32> to vector<128x8xbf16>
    %62 = vector.shape_cast %61 : vector<128x8xbf16> to vector<2x64x8xbf16>
    %c0_68 = arith.constant 0 : index
    %c256 = arith.constant 256 : index
    %c0_69 = arith.constant 0 : index
    %63 = vector.load %arg11[%c0_68, %c256, %c0_69] : memref<2x336x8xbf16, #tpu.memory_space<vmem>>, vector<2x64x8xbf16>
    tpu.vector_store %arg11[%c0_68, %c256, %c0_69], %62 {strides = array<i32>} : memref<2x336x8xbf16, #tpu.memory_space<vmem>>, vector<2x64x8xbf16>,
    %64 = tpu.iota {dimensions = array<i32: 0>} : vector<128x1xi32>
    %c8_i32 = arith.constant 8 : i32
    %c0_i32 = arith.constant 0 : i32
    %65 = arith.cmpi eq, %c8_i32, %c0_i32 : i32
    %c1_i32 = arith.constant 1 : i32
    %66 = arith.select %65, %c1_i32, %c8_i32 : i32
    %67 = vector.broadcast %66 : i32 to vector<128x1xi32>
    %68 = arith.remsi %64, %67 : vector<128x1xi32>
    %c0_i32_70 = arith.constant 0 : i32
    %69 = vector.broadcast %c0_i32_70 : i32 to vector<128x1xi32>
    %70 = arith.cmpi ne, %68, %69 : vector<128x1xi32>
    %c0_i32_71 = arith.constant 0 : i32
    %71 = vector.broadcast %c0_i32_71 : i32 to vector<128x1xi32>
    %72 = arith.cmpi slt, %68, %71 : vector<128x1xi32>
    %c0_i32_72 = arith.constant 0 : i32
    %73 = arith.cmpi slt, %66, %c0_i32_72 : i32
    %74 = vector.broadcast %73 : i1 to vector<128x1xi1>
    %75 = vector.broadcast %74 : vector<128x1xi1> to vector<128x1xi1>
    %76 = arith.xori %72, %75 : vector<128x1xi1>
    %77 = arith.andi %76, %70 : vector<128x1xi1>
    %78 = vector.broadcast %66 : i32 to vector<128x1xi32>
    %79 = arith.addi %68, %78 : vector<128x1xi32>
    %80 = arith.select %77, %79, %68 : vector<128x1xi1>, vector<128x1xi32>
    %c0_i32_73 = arith.constant 0 : i32
    %81 = vector.broadcast %c0_i32_73 : i32 to vector<128x1xi32>
    %82 = arith.cmpi sgt, %80, %81 : vector<128x1xi32>
    %83 = vector.shape_cast %82 : vector<128x1xi1> to vector<128x1xi1>
    %84 = vector.broadcast %83 : vector<128x1xi1> to vector<128x8xi1>
    %cst_74 = arith.constant 0.000000e+00 : bf16
    %85 = vector.broadcast %cst_74 : bf16 to vector<128x8xbf16>
    %c0_75 = arith.constant 0 : index
    %c247 = arith.constant 247 : index
    %c0_76 = arith.constant 0 : index
    %86 = vector.load %arg11[%c0_75, %c247, %c0_76] : memref<2x336x8xbf16, #tpu.memory_space<vmem>>, vector<2x64x8xbf16>
    %87 = vector.shape_cast %86 : vector<2x64x8xbf16> to vector<128x8xbf16>
    %88 = arith.select %84, %87, %85 : vector<128x8xi1>, vector<128x8xbf16>
    %c0_77 = arith.constant 0 : index
    %c95 = arith.constant 95 : index
    %c0_78 = arith.constant 0 : index
    %89 = vector.load %arg11[%c0_77, %c95, %c0_78] : memref<2x336x8xbf16, #tpu.memory_space<vmem>>, vector<2x64x8xbf16>
    %90 = vector.shape_cast %89 : vector<2x64x8xbf16> to vector<128x8xbf16>
    %91 = arith.select %84, %90, %85 : vector<128x8xi1>, vector<128x8xbf16>
    %c0_79 = arith.constant 0 : index
    %c255 = arith.constant 255 : index
    %c0_80 = arith.constant 0 : index
    %92 = vector.load %arg11[%c0_79, %c255, %c0_80] : memref<2x336x8xbf16, #tpu.memory_space<vmem>>, vector<2x64x8xbf16>
    %93 = vector.shape_cast %92 : vector<2x64x8xbf16> to vector<128x8xbf16>
    %94 = arith.select %84, %93, %85 : vector<128x8xi1>, vector<128x8xbf16>
    %c0_81 = arith.constant 0 : index
    %c168_82 = arith.constant 168 : index
    %c0_83 = arith.constant 0 : index
    %95 = vector.load %arg11[%c0_81, %c168_82, %c0_83] : memref<2x336x8xbf16, #tpu.memory_space<vmem>>, vector<2x64x8xbf16>
    %96 = vector.shape_cast %95 : vector<2x64x8xbf16> to vector<128x8xbf16>
    %c0_84 = arith.constant 0 : index
    %c16_85 = arith.constant 16 : index
    %c0_86 = arith.constant 0 : index
    %97 = vector.load %arg11[%c0_84, %c16_85, %c0_86] : memref<2x336x8xbf16, #tpu.memory_space<vmem>>, vector<2x64x8xbf16>
    %98 = vector.shape_cast %97 : vector<2x64x8xbf16> to vector<128x8xbf16>
    %c0_87 = arith.constant 0 : index
    %c176_88 = arith.constant 176 : index
    %c0_89 = arith.constant 0 : index
    %99 = vector.load %arg11[%c0_87, %c176_88, %c0_89] : memref<2x336x8xbf16, #tpu.memory_space<vmem>>, vector<2x64x8xbf16>
    %100 = vector.shape_cast %99 : vector<2x64x8xbf16> to vector<128x8xbf16>
    %c0_90 = arith.constant 0 : index
    %c248_91 = arith.constant 248 : index
    %c0_92 = arith.constant 0 : index
    %101 = vector.load %arg11[%c0_90, %c248_91, %c0_92] : memref<2x336x8xbf16, #tpu.memory_space<vmem>>, vector<2x64x8xbf16>
    %102 = vector.shape_cast %101 : vector<2x64x8xbf16> to vector<128x8xbf16>
    %c0_93 = arith.constant 0 : index
    %c96_94 = arith.constant 96 : index
    %c0_95 = arith.constant 0 : index
    %103 = vector.load %arg11[%c0_93, %c96_94, %c0_95] : memref<2x336x8xbf16, #tpu.memory_space<vmem>>, vector<2x64x8xbf16>
    %104 = vector.shape_cast %103 : vector<2x64x8xbf16> to vector<128x8xbf16>
    %c0_96 = arith.constant 0 : index
    %c256_97 = arith.constant 256 : index
    %c0_98 = arith.constant 0 : index
    %105 = vector.load %arg11[%c0_96, %c256_97, %c0_98] : memref<2x336x8xbf16, #tpu.memory_space<vmem>>, vector<2x64x8xbf16>
    %106 = vector.shape_cast %105 : vector<2x64x8xbf16> to vector<128x8xbf16>
    %cst_99 = arith.constant 0.000000e+00 : f32
    %107 = vector.broadcast %cst_99 : f32 to vector<128x8xf32>
    %c0_100 = arith.constant 0 : index
    %c0_101 = arith.constant 0 : index
    %108 = vector.load %arg4[%c0_100, %c0_101] : memref<72x8xbf16, #tpu.memory_space<vmem>>, vector<8x8xbf16>
    %cst_102 = arith.constant dense<0.000000e+00> : vector<128x8xf32>
    %109 = tpu.matmul %88, %108, %cst_102 {dimension_numbers = #tpu.dot_dimension_numbers<[1], [0], [0], [1], [0, 0, 1, 1], [], []>} : vector<128x8xbf16>, vector<8x8xbf16>, vector<128x8xf32> -> vector<128x8xf32>
    %110 = arith.addf %107, %109 : vector<128x8xf32>
    %c8_103 = arith.constant 8 : index
    %c0_104 = arith.constant 0 : index
    %111 = vector.load %arg4[%c8_103, %c0_104] : memref<72x8xbf16, #tpu.memory_space<vmem>>, vector<8x8xbf16>
    %cst_105 = arith.constant dense<0.000000e+00> : vector<128x8xf32>
    %112 = tpu.matmul %91, %111, %cst_105 {dimension_numbers = #tpu.dot_dimension_numbers<[1], [0], [0], [1], [0, 0, 1, 1], [], []>} : vector<128x8xbf16>, vector<8x8xbf16>, vector<128x8xf32> -> vector<128x8xf32>
    %113 = arith.addf %110, %112 : vector<128x8xf32>
    %c16_106 = arith.constant 16 : index
    %c0_107 = arith.constant 0 : index
    %114 = vector.load %arg4[%c16_106, %c0_107] : memref<72x8xbf16, #tpu.memory_space<vmem>>, vector<8x8xbf16>
    %cst_108 = arith.constant dense<0.000000e+00> : vector<128x8xf32>
    %115 = tpu.matmul %94, %114, %cst_108 {dimension_numbers = #tpu.dot_dimension_numbers<[1], [0], [0], [1], [0, 0, 1, 1], [], []>} : vector<128x8xbf16>, vector<8x8xbf16>, vector<128x8xf32> -> vector<128x8xf32>
    %116 = arith.addf %113, %115 : vector<128x8xf32>
    %c24 = arith.constant 24 : index
    %c0_109 = arith.constant 0 : index
    %117 = vector.load %arg4[%c24, %c0_109] : memref<72x8xbf16, #tpu.memory_space<vmem>>, vector<8x8xbf16>
    %cst_110 = arith.constant dense<0.000000e+00> : vector<128x8xf32>
    %118 = tpu.matmul %96, %117, %cst_110 {dimension_numbers = #tpu.dot_dimension_numbers<[1], [0], [0], [1], [0, 0, 1, 1], [], []>} : vector<128x8xbf16>, vector<8x8xbf16>, vector<128x8xf32> -> vector<128x8xf32>
    %119 = arith.addf %116, %118 : vector<128x8xf32>
    %c32 = arith.constant 32 : index
    %c0_111 = arith.constant 0 : index
    %120 = vector.load %arg4[%c32, %c0_111] : memref<72x8xbf16, #tpu.memory_space<vmem>>, vector<8x8xbf16>
    %cst_112 = arith.constant dense<0.000000e+00> : vector<128x8xf32>
    %121 = tpu.matmul %98, %120, %cst_112 {dimension_numbers = #tpu.dot_dimension_numbers<[1], [0], [0], [1], [0, 0, 1, 1], [], []>} : vector<128x8xbf16>, vector<8x8xbf16>, vector<128x8xf32> -> vector<128x8xf32>
    %122 = arith.addf %119, %121 : vector<128x8xf32>
    %c40 = arith.constant 40 : index
    %c0_113 = arith.constant 0 : index
    %123 = vector.load %arg4[%c40, %c0_113] : memref<72x8xbf16, #tpu.memory_space<vmem>>, vector<8x8xbf16>
    %cst_114 = arith.constant dense<0.000000e+00> : vector<128x8xf32>
    %124 = tpu.matmul %100, %123, %cst_114 {dimension_numbers = #tpu.dot_dimension_numbers<[1], [0], [0], [1], [0, 0, 1, 1], [], []>} : vector<128x8xbf16>, vector<8x8xbf16>, vector<128x8xf32> -> vector<128x8xf32>
    %125 = arith.addf %122, %124 : vector<128x8xf32>
    %c48 = arith.constant 48 : index
    %c0_115 = arith.constant 0 : index
    %126 = vector.load %arg4[%c48, %c0_115] : memref<72x8xbf16, #tpu.memory_space<vmem>>, vector<8x8xbf16>
    %cst_116 = arith.constant dense<0.000000e+00> : vector<128x8xf32>
    %127 = tpu.matmul %102, %126, %cst_116 {dimension_numbers = #tpu.dot_dimension_numbers<[1], [0], [0], [1], [0, 0, 1, 1], [], []>} : vector<128x8xbf16>, vector<8x8xbf16>, vector<128x8xf32> -> vector<128x8xf32>
    %128 = arith.addf %125, %127 : vector<128x8xf32>
    %c56 = arith.constant 56 : index
    %c0_117 = arith.constant 0 : index
    %129 = vector.load %arg4[%c56, %c0_117] : memref<72x8xbf16, #tpu.memory_space<vmem>>, vector<8x8xbf16>
    %cst_118 = arith.constant dense<0.000000e+00> : vector<128x8xf32>
    %130 = tpu.matmul %104, %129, %cst_118 {dimension_numbers = #tpu.dot_dimension_numbers<[1], [0], [0], [1], [0, 0, 1, 1], [], []>} : vector<128x8xbf16>, vector<8x8xbf16>, vector<128x8xf32> -> vector<128x8xf32>
    %131 = arith.addf %128, %130 : vector<128x8xf32>
    %c64 = arith.constant 64 : index
    %c0_119 = arith.constant 0 : index
    %132 = vector.load %arg4[%c64, %c0_119] : memref<72x8xbf16, #tpu.memory_space<vmem>>, vector<8x8xbf16>
    %cst_120 = arith.constant dense<0.000000e+00> : vector<128x8xf32>
    %133 = tpu.matmul %106, %132, %cst_120 {dimension_numbers = #tpu.dot_dimension_numbers<[1], [0], [0], [1], [0, 0, 1, 1], [], []>} : vector<128x8xbf16>, vector<8x8xbf16>, vector<128x8xf32> -> vector<128x8xf32>
    %134 = arith.addf %131, %133 : vector<128x8xf32>
    %c0_121 = arith.constant 0 : index
    %c0_122 = arith.constant 0 : index
    %135 = vector.load %arg5[%c0_121, %c0_122] : memref<1x8xf32, #tpu.memory_space<vmem>>, vector<1x8xf32>
    %136 = vector.broadcast %135 : vector<1x8xf32> to vector<128x8xf32>
    %137 = arith.addf %134, %136 : vector<128x8xf32>
    %138 = arith.truncf %137 : vector<128x8xf32> to vector<128x8xbf16>
    %c0_123 = arith.constant 0 : index
    %c0_124 = arith.constant 0 : index
    %139 = vector.load %arg6[%c0_123, %c0_124] : memref<8x32xbf16, #tpu.memory_space<vmem>>, vector<8x32xbf16>
    %cst_125 = arith.constant dense<0.000000e+00> : vector<128x32xf32>
    %140 = tpu.matmul %138, %139, %cst_125 {dimension_numbers = #tpu.dot_dimension_numbers<[1], [0], [0], [1], [0, 0, 1, 1], [], []>} : vector<128x8xbf16>, vector<8x32xbf16>, vector<128x32xf32> -> vector<128x32xf32>
    %c0_126 = arith.constant 0 : index
    %c0_127 = arith.constant 0 : index
    %141 = vector.load %arg7[%c0_126, %c0_127] : memref<1x32xf32, #tpu.memory_space<vmem>>, vector<1x32xf32>
    %142 = vector.broadcast %141 : vector<1x32xf32> to vector<128x32xf32>
    %143 = arith.addf %140, %142 : vector<128x32xf32>
    %c0_128 = arith.constant 0 : index
    %c0_129 = arith.constant 0 : index
    %c0_130 = arith.constant 0 : index
    %c0_131 = arith.constant 0 : index
    %144 = vector.load %arg1[%c0_128, %c0_129, %c0_130, %c0_131] : memref<2x4x64x16xbf16, #tpu.memory_space<vmem>>, vector<2x1x64x16xbf16>
    %145 = vector.shape_cast %144 : vector<2x1x64x16xbf16> to vector<2x64x16xbf16>
    %146 = vector.shape_cast %145 : vector<2x64x16xbf16> to vector<128x16xbf16>
    %c0_132 = arith.constant 0 : index
    %c0_133 = arith.constant 0 : index
    %147 = vector.load %arg8[%c0_132, %c0_133] : memref<16x32xbf16, #tpu.memory_space<vmem>>, vector<16x32xbf16>
    %cst_134 = arith.constant dense<0.000000e+00> : vector<128x32xf32>
    %148 = tpu.matmul %146, %147, %cst_134 {dimension_numbers = #tpu.dot_dimension_numbers<[1], [0], [0], [1], [0, 0, 1, 1], [], []>} : vector<128x16xbf16>, vector<16x32xbf16>, vector<128x32xf32> -> vector<128x32xf32>
    %c0_135 = arith.constant 0 : index
    %c0_136 = arith.constant 0 : index
    %149 = vector.load %arg9[%c0_135, %c0_136] : memref<1x32xf32, #tpu.memory_space<vmem>>, vector<1x32xf32>
    %150 = vector.broadcast %149 : vector<1x32xf32> to vector<128x32xf32>
    %151 = arith.addf %148, %150 : vector<128x32xf32>
    %152 = arith.addf %143, %151 : vector<128x32xf32>
    %cst_137 = arith.constant 0.000000e+00 : f32
    %153 = vector.broadcast %cst_137 : f32 to vector<128x32xf32>
    %154 = arith.maximumf %152, %153 : vector<128x32xf32>
    %155 = vector.shape_cast %154 : vector<128x32xf32> to vector<2x64x32xf32>
    %c0_138 = arith.constant 0 : index
    %c0_139 = arith.constant 0 : index
    %c0_140 = arith.constant 0 : index
    %156 = vector.load %arg10[%c0_138, %c0_139, %c0_140] : memref<2x64x32xf32, #tpu.memory_space<vmem>>, vector<2x64x32xf32>
    tpu.vector_store %arg10[%c0_138, %c0_139, %c0_140], %155 {strides = array<i32>} : memref<2x64x32xf32, #tpu.memory_space<vmem>>, vector<2x64x32xf32>,
    return
  }
  func.func @transform_0(%arg0: i32) -> (i32, i32, i32, i32) {
    %c0_i32 = arith.constant 0 : i32
    %c0_i32_0 = arith.constant 0 : i32
    %c0_i32_1 = arith.constant 0 : i32
    %c0_i32_2 = arith.constant 0 : i32
    return %arg0, %c0_i32, %c0_i32_0, %c0_i32_1 : i32, i32, i32, i32
  }
  func.func @transform_1(%arg0: i32) -> (i32, i32) {
    %c0_i32 = arith.constant 0 : i32
    %c0_i32_0 = arith.constant 0 : i32
    %c0_i32_1 = arith.constant 0 : i32
    return %c0_i32, %c0_i32_0 : i32, i32
  }
  func.func @transform_2(%arg0: i32) -> (i32, i32) {
    %c0_i32 = arith.constant 0 : i32
    %c0_i32_0 = arith.constant 0 : i32
    %c0_i32_1 = arith.constant 0 : i32
    return %c0_i32, %c0_i32_0 : i32, i32
  }
  func.func @transform_3(%arg0: i32) -> (i32, i32) {
    %c0_i32 = arith.constant 0 : i32
    %c0_i32_0 = arith.constant 0 : i32
    %c0_i32_1 = arith.constant 0 : i32
    return %c0_i32, %c0_i32_0 : i32, i32
  }
  func.func @transform_4(%arg0: i32) -> (i32, i32) {
    %c0_i32 = arith.constant 0 : i32
    %c0_i32_0 = arith.constant 0 : i32
    %c0_i32_1 = arith.constant 0 : i32
    return %c0_i32, %c0_i32_0 : i32, i32
  }
  func.func @transform_5(%arg0: i32) -> (i32, i32) {
    %c0_i32 = arith.constant 0 : i32
    %c0_i32_0 = arith.constant 0 : i32
    %c0_i32_1 = arith.constant 0 : i32
    return %c0_i32, %c0_i32_0 : i32, i32
  }
  func.func @transform_6(%arg0: i32) -> (i32, i32) {
    %c0_i32 = arith.constant 0 : i32
    %c0_i32_0 = arith.constant 0 : i32
    %c0_i32_1 = arith.constant 0 : i32
    return %c0_i32, %c0_i32_0 : i32, i32
  }
  func.func @transform_7(%arg0: i32) -> (i32, i32) {
    %c0_i32 = arith.constant 0 : i32
    %c0_i32_0 = arith.constant 0 : i32
    %c0_i32_1 = arith.constant 0 : i32
    return %c0_i32, %c0_i32_0 : i32, i32
  }
  func.func @transform_8(%arg0: i32) -> (i32, i32) {
    %c0_i32 = arith.constant 0 : i32
    %c0_i32_0 = arith.constant 0 : i32
    %c0_i32_1 = arith.constant 0 : i32
    return %c0_i32, %c0_i32_0 : i32, i32
  }
  func.func @transform_9(%arg0: i32) -> (i32, i32, i32) {
    %c0_i32 = arith.constant 0 : i32
    %c0_i32_0 = arith.constant 0 : i32
    %c0_i32_1 = arith.constant 0 : i32
    return %arg0, %c0_i32, %c0_i32_0 : i32, i32, i32
  }
}

</mosaic_0001>

<llo_original>
// kernel: bottleneck_forward.1
$region0: #{bottleneck_forward.1}
  #allocation0 [shape = 'u32[]', space=smem, size = 0x4, offset = 0x4, fixed_abs, tag = 'smem constant byte address 0x4 - core index']
  #allocation1 [shape = 'u32[144,128]{1,0:T(1,128)}', space=vmem, size = 0x12000, scoped, tag = 'internal scratch']
  #allocation2 [shape = 'bf16[2,336,8]{2,1,0:T(8,128)(2,1)}', space=vmem, size = 0x2a000, scoped, tag = 'scratch operand']
  %s0 = inlined_call_operand.vmem [shape: bf16[2,4,64,16], index: 0, kind: input, shape index: {}]
  %s1 = inlined_call_operand.vmem [shape: bf16[16,8], index: 1, kind: input, shape index: {}]
  %s2 = inlined_call_operand.vmem [shape: f32[1,8], index: 2, kind: input, shape index: {}]
  %s3 = inlined_call_operand.vmem [shape: bf16[72,8], index: 3, kind: input, shape index: {}]
  %s4 = inlined_call_operand.vmem [shape: f32[1,8], index: 4, kind: input, shape index: {}]
  %s5 = inlined_call_operand.vmem [shape: bf16[8,32], index: 5, kind: input, shape index: {}]
  %s6 = inlined_call_operand.vmem [shape: f32[1,32], index: 6, kind: input, shape index: {}]
  %s7 = inlined_call_operand.vmem [shape: bf16[16,32], index: 7, kind: input, shape index: {}]
  %s8 = inlined_call_operand.vmem [shape: f32[1,32], index: 8, kind: input, shape index: {}]
  %s9 = inlined_call_operand.hbm [shape: f32[2,64,32], index: 9, kind: output, shape index: {}]
  %s10 = sld [smem:[#allocation0]]
  $region46: #{bottleneck_forward.1} parent=0
    _
  %s12 = ssub.s32 1, %s10
  %s13 = scalar_select 0, %s12, %s10
  $region1: #{bottleneck_forward.1} parent=0
    #allocation3 [shape = 'u8[65536]{0}', space=vmem, size = 0x10000, scoped, tag = 'output window, operand 0, single buffered']
    #allocation4 [shape = 's32[1]{0}', space=sflag, size = 0x4, scoped, tag = 'scoped memory for bottleneck_forward.1']
    %14 = vsyncpa [#allocation4], 0
    // Predicated region
    $region2: #{bottleneck_forward.1} parent=1 // pred_check
      _
    $region3: #{bottleneck_forward.1} parent=1 // pred_check_branch
      %16 = sbr.rel (0) target = $region5
    $region4: #{bottleneck_forward.1} parent=1 // pred_region
      _
    $region5: #{bottleneck_forward.1} parent=1 // pred_fallthru
      _
    // Predicated region
    $region6: #{bottleneck_forward.1} parent=1 // pred_check
      _
    $region7: #{bottleneck_forward.1} parent=1 // pred_check_branch
      %18 = sbr.rel (0) target = $region9
    $region8: #{bottleneck_forward.1} parent=1 // pred_region
      _
    $region9: #{bottleneck_forward.1} parent=1 // pred_fallthru
      _
    // Predicated region
    $region10: #{bottleneck_forward.1} parent=1 // pred_check
      _
    $region11: #{bottleneck_forward.1} parent=1 // pred_check_branch
      %20 = sbr.rel (0) target = $region13
    $region12: #{bottleneck_forward.1} parent=1 // pred_region
      _
    $region13: #{bottleneck_forward.1} parent=1 // pred_fallthru
      _
    // Predicated region
    $region14: #{bottleneck_forward.1} parent=1 // pred_check
      _
    $region15: #{bottleneck_forward.1} parent=1 // pred_check_branch
      %22 = sbr.rel (0) target = $region17
    $region16: #{bottleneck_forward.1} parent=1 // pred_region
      _
    $region17: #{bottleneck_forward.1} parent=1 // pred_fallthru
      _
    // Predicated region
    $region18: #{bottleneck_forward.1} parent=1 // pred_check
      _
    $region19: #{bottleneck_forward.1} parent=1 // pred_check_branch
      %24 = sbr.rel (0) target = $region21
    $region20: #{bottleneck_forward.1} parent=1 // pred_region
      _
    $region21: #{bottleneck_forward.1} parent=1 // pred_fallthru
      _
    // Predicated region
    $region22: #{bottleneck_forward.1} parent=1 // pred_check
      _
    $region23: #{bottleneck_forward.1} parent=1 // pred_check_branch
      %26 = sbr.rel (0) target = $region25
    $region24: #{bottleneck_forward.1} parent=1 // pred_region
      _
    $region25: #{bottleneck_forward.1} parent=1 // pred_fallthru
      _
    // Predicated region
    $region26: #{bottleneck_forward.1} parent=1 // pred_check
      _
    $region27: #{bottleneck_forward.1} parent=1 // pred_check_branch
      %28 = sbr.rel (0) target = $region29
    $region28: #{bottleneck_forward.1} parent=1 // pred_region
      _
    $region29: #{bottleneck_forward.1} parent=1 // pred_fallthru
      _
    // Predicated region
    $region30: #{bottleneck_forward.1} parent=1 // pred_check
      _
    $region31: #{bottleneck_forward.1} parent=1 // pred_check_branch
      %30 = sbr.rel (0) target = $region33
    $region32: #{bottleneck_forward.1} parent=1 // pred_region
      _
    $region33: #{bottleneck_forward.1} parent=1 // pred_fallthru
      _
    // Predicated region
    $region34: #{bottleneck_forward.1} parent=1 // pred_check
      _
    $region35: #{bottleneck_forward.1} parent=1 // pred_check_branch
      %32 = sbr.rel (0) target = $region37
    $region36: #{bottleneck_forward.1} parent=1 // pred_region
      _
    $region37: #{bottleneck_forward.1} parent=1 // pred_fallthru
      _
    %vm34 = vcmask 60416
    %35 = vst.msk [vmem:[#allocation2] sm:$0xf] %vm34, 0
    %36 = vst.msk [vmem:[#allocation2 + $0xa8] sm:$0xf] %vm34, 0
    %37 = vst.msk [vmem:[#allocation2 + $0x4] sm:$0xf] %vm34, 0
    %38 = vst.msk [vmem:[#allocation2 + $0xac] sm:$0xf] %vm34, 0
    %39 = vst.msk [vmem:[#allocation2 + $0x28] sm:$0xf] %vm34, 0
    %40 = vst.msk [vmem:[#allocation2 + $0xd0] sm:$0xf] %vm34, 0
    %41 = vst.msk [vmem:[#allocation2 + $0x2c] sm:$0xf] %vm34, 0
    %42 = vst.msk [vmem:[#allocation2 + $0xd4] sm:$0xf] %vm34, 0
    %43 = vst.msk [vmem:[#allocation2 + $0x50] sm:$0xf] %vm34, 0
    %44 = vst.msk [vmem:[#allocation2 + $0xf8] sm:$0xf] %vm34, 0
    %45 = vst.msk [vmem:[#allocation2 + $0x54] sm:$0xf] %vm34, 0
    %46 = vst.msk [vmem:[#allocation2 + $0xfc] sm:$0xf] %vm34, 0
    %47 = vst.msk [vmem:[#allocation2 + $0x78] sm:$0xf] %vm34, 0
    %48 = vst.msk [vmem:[#allocation2 + $0x120] sm:$0xf] %vm34, 0
    %49 = vst.msk [vmem:[#allocation2 + $0x7c] sm:$0xf] %vm34, 0
    %50 = vst.msk [vmem:[#allocation2 + $0x124] sm:$0xf] %vm34, 0
    %51 = vst.msk [vmem:[#allocation2 + $0xa0] sm:$0xf] %vm34, 0
    %52 = vst.msk [vmem:[#allocation2 + $0x148] sm:$0xf] %vm34, 0
    %53 = vst.msk [vmem:[#allocation2 + $0xa4] sm:$0xf] %vm34, 0
    %54 = vst.msk [vmem:[#allocation2 + $0x14c] sm:$0xf] %vm34, 0
    %v55 = vld [vmem:[%s0] sm:$0xf]
    %v56 = vld [vmem:[%s0 + $0x4] sm:$0xf]
    %v57 = vld [vmem:[%s0 + $0x8] sm:$0xf]
    %v58 = vld [vmem:[%s0 + $0xc] sm:$0xf]
    %v59 = vld [vmem:[%s0 + $0x10] sm:$0xf]
    %v60 = vld [vmem:[%s0 + $0x14] sm:$0xf]
    %v61 = vld [vmem:[%s0 + $0x18] sm:$0xf]
    %v62 = vld [vmem:[%s0 + $0x1c] sm:$0xf]
    %v63 = vld [vmem:[%s0 + $0x80] sm:$0xf]
    %v64 = vld [vmem:[%s0 + $0x84] sm:$0xf]
    %v65 = vld [vmem:[%s0 + $0x88] sm:$0xf]
    %v66 = vld [vmem:[%s0 + $0x8c] sm:$0xf]
    %v67 = vld [vmem:[%s0 + $0x90] sm:$0xf]
    %v68 = vld [vmem:[%s0 + $0x94] sm:$0xf]
    %v69 = vld [vmem:[%s0 + $0x98] sm:$0xf]
    %v70 = vld [vmem:[%s0 + $0x9c] sm:$0xf]
    %v71 = vld [vmem:[%s1] sm:$0xf]
    %v72 = vld [vmem:[%s1 + $0x4] sm:$0xf]
    %v73 = vld [vmem:[%s2] sm:$0x1]
    %v75 = vlaneseq
    %v76 = vshrl.u32 %v75, 7
    %v77 = vsub.s32 0, %v76
    %v78 = vrot.slane %v73, %v77
    %v96 = vunpack.c.l.b16 %v55
    %v97 = vunpack.c.l.b16 %v56
    %v98 = vunpack.c.l.b16 %v57
    %v99 = vunpack.c.l.b16 %v58
    %v100 = vunpack.c.l.b16 %v59
    %v101 = vunpack.c.l.b16 %v60
    %v102 = vunpack.c.l.b16 %v61
    %v103 = vunpack.c.l.b16 %v62
    %v104 = vunpack.c.l.b16 %v63
    %v105 = vunpack.c.l.b16 %v64
    %v106 = vunpack.c.l.b16 %v65
    %v107 = vunpack.c.l.b16 %v66
    %v108 = vunpack.c.l.b16 %v67
    %v109 = vunpack.c.l.b16 %v68
    %v110 = vunpack.c.l.b16 %v69
    %v111 = vunpack.c.l.b16 %v70
    %v112 = vpack.c.b16 %v97, %v96
    %v113 = vpack.c.b16 %v99, %v98
    %v114 = vpack.c.b16 %v101, %v100
    %v115 = vpack.c.b16 %v103, %v102
    %v116 = vpack.c.b16 %v105, %v104
    %v117 = vpack.c.b16 %v107, %v106
    %v118 = vpack.c.b16 %v109, %v108
    %v119 = vpack.c.b16 %v111, %v110
    %v122 = vunpack.c.l.b16 %v71
    %v123 = vunpack.c.l.b16 %v72
    %v124 = vpack.c.b16 %v123, %v122
    %vm126 = vcmask 130048
    %v128 = vsel %vm126, %v112, 0
    %v131 = vsel %vm126, %v113, 0
    %v134 = vsel %vm126, %v114, 0
    %v137 = vsel %vm126, %v115, 0
    %v140 = vsel %vm126, %v116, 0
    %v143 = vsel %vm126, %v117, 0
    %v146 = vsel %vm126, %v118, 0
    %v149 = vsel %vm126, %v119, 0
    %151 = vmatprep.subr.bf16.mxu0 0
    %152 = vmatpush1.bf16.msra.mxu0 0
    %153 = vmatprep.subr.bf16.mxu0 0
    %154 = vmatpush1.bf16.msra.mxu0 0
    %155 = vmatprep.subr.bf16.mxu0 0
    %156 = vmatpush1.bf16.msra.mxu0 0
    %157 = vmatprep.subr.bf16.mxu0 0
    %158 = vmatpush1.bf16.msra.mxu0 0
    %159 = vmatprep.subr.bf16.mxu0 0
    %160 = vmatpush1.bf16.msra.mxu0 0
    %161 = vmatprep.subr.bf16.mxu0 0
    %162 = vmatpush1.bf16.msra.mxu0 0
    %163 = vmatprep.subr.bf16.mxu0 0
    %164 = vmatpush1.bf16.msra.mxu0 0
    %165 = vmatprep.subr.bf16.mxu0 0
    %166 = vmatpush1.bf16.msra.mxu0 %v124
    %167 = vmatprep.subr.bf16.mxu0 0
    %168 = vmatpush2.bf16.msra.mxu0 0
    %169 = vmatprep.subr.bf16.mxu0 0
    %170 = vmatpush2.bf16.msra.mxu0 0
    %171 = vmatprep.subr.bf16.mxu0 0
    %172 = vmatpush2.bf16.msra.mxu0 0
    %173 = vmatprep.subr.bf16.mxu0 0
    %174 = vmatpush2.bf16.msra.mxu0 0
    %175 = vmatprep.subr.bf16.mxu0 0
    %176 = vmatpush2.bf16.msra.mxu0 0
    %177 = vmatprep.subr.bf16.mxu0 0
    %178 = vmatpush2.bf16.msra.mxu0 0
    %179 = vmatprep.subr.bf16.mxu0 0
    %180 = vmatpush2.bf16.msra.mxu0 0
    %181 = vmatprep.subr.bf16.mxu0 0
    %182 = vmatpush2.bf16.msra.mxu0 0
    %183 = vmatprep.mubr.bf16.mxu0 0
    %184 = vmatmul.mubr.bf16.gmra.mxu0 %v128
    %v185 = vpop.f32.mrf.mxu0
    %v186 = vadd.f32 %v78, %v185
    %v187 = vpop.f32.mrf.mxu0
    %v188 = vpop.f32.mrf.mxu0
    %v189 = vadd.f32 %v78, %v188
    %v190 = vpop.f32.mrf.mxu0
    %191 = vmatprep.mubr.bf16.mxu0 0
    %192 = vmatmul.mubr.bf16.gmra.mxu0 %v131
    %v193 = vpop.f32.mrf.mxu0
    %v194 = vadd.f32 %v78, %v193
    %v195 = vpop.f32.mrf.mxu0
    %v196 = vpop.f32.mrf.mxu0
    %v197 = vadd.f32 %v78, %v196
    %v198 = vpop.f32.mrf.mxu0
    %199 = vmatprep.mubr.bf16.mxu0 0
    %200 = vmatmul.mubr.bf16.gmra.mxu0 %v134
    %v201 = vpop.f32.mrf.mxu0
    %v202 = vadd.f32 %v78, %v201
    %v203 = vpop.f32.mrf.mxu0
    %v204 = vpop.f32.mrf.mxu0
    %v205 = vadd.f32 %v78, %v204
    %v206 = vpop.f32.mrf.mxu0
    %207 = vmatprep.mubr.bf16.mxu0 0
    %208 = vmatmul.mubr.bf16.gmra.mxu0 %v137
    %v209 = vpop.f32.mrf.mxu0
    %v210 = vadd.f32 %v78, %v209
    %v211 = vpop.f32.mrf.mxu0
    %v212 = vpop.f32.mrf.mxu0
    %v213 = vadd.f32 %v78, %v212
    %v214 = vpop.f32.mrf.mxu0
    %215 = vmatprep.mubr.bf16.mxu0 0
    %216 = vmatmul.mubr.bf16.gmra.mxu0 %v140
    %v217 = vpop.f32.mrf.mxu0
    %v218 = vadd.f32 %v78, %v217
    %v219 = vpop.f32.mrf.mxu0
    %v220 = vpop.f32.mrf.mxu0
    %v221 = vadd.f32 %v78, %v220
    %v222 = vpop.f32.mrf.mxu0
    %223 = vmatprep.mubr.bf16.mxu0 0
    %224 = vmatmul.mubr.bf16.gmra.mxu0 %v143
    %v225 = vpop.f32.mrf.mxu0
    %v226 = vadd.f32 %v78, %v225
    %v227 = vpop.f32.mrf.mxu0
    %v228 = vpop.f32.mrf.mxu0
    %v229 = vadd.f32 %v78, %v228
    %v230 = vpop.f32.mrf.mxu0
    %231 = vmatprep.mubr.bf16.mxu0 0
    %232 = vmatmul.mubr.bf16.gmra.mxu0 %v146
    %v233 = vpop.f32.mrf.mxu0
    %v234 = vadd.f32 %v78, %v233
    %v235 = vpop.f32.mrf.mxu0
    %v236 = vpop.f32.mrf.mxu0
    %v237 = vadd.f32 %v78, %v236
    %v238 = vpop.f32.mrf.mxu0
    %239 = vmatprep.mubr.bf16.mxu0 0
    %240 = vmatmul.mubr.bf16.gmra.mxu0 %v149
    %v241 = vpop.f32.mrf.mxu0
    %v242 = vadd.f32 %v78, %v241
    %v243 = vpop.f32.mrf.mxu0
    %v244 = vpop.f32.mrf.mxu0
    %v245 = vadd.f32 %v78, %v244
    %v246 = vpop.f32.mrf.mxu0
    %247 = vdwg.mxu0
    %v248 = vpack.c.bf16 %v189, %v186
    %v249 = vpack.c.bf16 %v197, %v194
    %v250 = vpack.c.bf16 %v205, %v202
    %v251 = vpack.c.bf16 %v213, %v210
    %v252 = vpack.c.bf16 %v221, %v218
    %v253 = vpack.c.bf16 %v229, %v226
    %v254 = vpack.c.bf16 %v237, %v234
    %v255 = vpack.c.bf16 %v245, %v242
    %v264 = vunpack.c.l.b16 %v248
    %v265 = vunpack.c.h.b16 %v248
    %v266 = vunpack.c.l.b16 %v249
    %v267 = vunpack.c.h.b16 %v249
    %v268 = vunpack.c.l.b16 %v250
    %v269 = vunpack.c.h.b16 %v250
    %v270 = vunpack.c.l.b16 %v251
    %v271 = vunpack.c.h.b16 %v251
    %v272 = vunpack.c.l.b16 %v252
    %v273 = vunpack.c.h.b16 %v252
    %v274 = vunpack.c.l.b16 %v253
    %v275 = vunpack.c.h.b16 %v253
    %v276 = vunpack.c.l.b16 %v254
    %v277 = vunpack.c.h.b16 %v254
    %v278 = vunpack.c.l.b16 %v255
    %v279 = vunpack.c.h.b16 %v255
    %v280 = vpack.c.b16 %v264, %v264
    %v281 = vpack.c.b16 %v265, %v265
    %v282 = vpack.c.b16 %v266, %v266
    %v283 = vpack.c.b16 %v267, %v267
    %v284 = vpack.c.b16 %v268, %v268
    %v285 = vpack.c.b16 %v269, %v269
    %v286 = vpack.c.b16 %v270, %v270
    %v287 = vpack.c.b16 %v271, %v271
    %v288 = vpack.c.b16 %v272, %v272
    %v289 = vpack.c.b16 %v273, %v273
    %v290 = vpack.c.b16 %v274, %v274
    %v291 = vpack.c.b16 %v275, %v275
    %v292 = vpack.c.b16 %v276, %v276
    %v293 = vpack.c.b16 %v277, %v277
    %v294 = vpack.c.b16 %v278, %v278
    %v295 = vpack.c.b16 %v279, %v279
    %312 = vst.msk [vmem:[#allocation2 + $0x8] sm:$0xf] %vm34, %v280
    %313 = vst.msk [vmem:[#allocation2 + $0xc] sm:$0xf] %vm34, %v281
    %314 = vst.msk [vmem:[#allocation2 + $0x10] sm:$0xf] %vm34, %v282
    %315 = vst.msk [vmem:[#allocation2 + $0x14] sm:$0xf] %vm34, %v283
    %316 = vst.msk [vmem:[#allocation2 + $0x18] sm:$0xf] %vm34, %v284
    %317 = vst.msk [vmem:[#allocation2 + $0x1c] sm:$0xf] %vm34, %v285
    %318 = vst.msk [vmem:[#allocation2 + $0x20] sm:$0xf] %vm34, %v286
    %319 = vst.msk [vmem:[#allocation2 + $0x24] sm:$0xf] %vm34, %v287
    %320 = vst.msk [vmem:[#allocation2 + $0xb0] sm:$0xf] %vm34, %v288
    %321 = vst.msk [vmem:[#allocation2 + $0xb4] sm:$0xf] %vm34, %v289
    %322 = vst.msk [vmem:[#allocation2 + $0xb8] sm:$0xf] %vm34, %v290
    %323 = vst.msk [vmem:[#allocation2 + $0xbc] sm:$0xf] %vm34, %v291
    %324 = vst.msk [vmem:[#allocation2 + $0xc0] sm:$0xf] %vm34, %v292
    %325 = vst.msk [vmem:[#allocation2 + $0xc4] sm:$0xf] %vm34, %v293
    %326 = vst.msk [vmem:[#allocation2 + $0xc8] sm:$0xf] %vm34, %v294
    %327 = vst.msk [vmem:[#allocation2 + $0xcc] sm:$0xf] %vm34, %v295
    %s328 = scalar_lea.vmem %s0, 32
    %v329 = vld [vmem:[%s328] sm:$0xf]
    %v330 = vld [vmem:[%s328 + $0x4] sm:$0xf]
    %v331 = vld [vmem:[%s328 + $0x8] sm:$0xf]
    %v332 = vld [vmem:[%s328 + $0xc] sm:$0xf]
    %v333 = vld [vmem:[%s328 + $0x10] sm:$0xf]
    %v334 = vld [vmem:[%s328 + $0x14] sm:$0xf]
    %v335 = vld [vmem:[%s328 + $0x18] sm:$0xf]
    %v336 = vld [vmem:[%s328 + $0x1c] sm:$0xf]
    %v337 = vld [vmem:[%s328 + $0x80] sm:$0xf]
    %v338 = vld [vmem:[%s328 + $0x84] sm:$0xf]
    %v339 = vld [vmem:[%s328 + $0x88] sm:$0xf]
    %v340 = vld [vmem:[%s328 + $0x8c] sm:$0xf]
    %v341 = vld [vmem:[%s328 + $0x90] sm:$0xf]
    %v342 = vld [vmem:[%s328 + $0x94] sm:$0xf]
    %v343 = vld [vmem:[%s328 + $0x98] sm:$0xf]
    %v344 = vld [vmem:[%s328 + $0x9c] sm:$0xf]
    %v345 = vld [vmem:[%s1] sm:$0xf]
    %v346 = vld [vmem:[%s1 + $0x4] sm:$0xf]
    %v347 = vld [vmem:[%s2] sm:$0x1]
    %v349 = vlaneseq
    %v350 = vshrl.u32 %v349, 7
    %v351 = vsub.s32 0, %v350
    %v352 = vrot.slane %v347, %v351
    %v370 = vunpack.c.l.b16 %v329
    %v371 = vunpack.c.l.b16 %v330
    %v372 = vunpack.c.l.b16 %v331
    %v373 = vunpack.c.l.b16 %v332
    %v374 = vunpack.c.l.b16 %v333
    %v375 = vunpack.c.l.b16 %v334
    %v376 = vunpack.c.l.b16 %v335
    %v377 = vunpack.c.l.b16 %v336
    %v378 = vunpack.c.l.b16 %v337
    %v379 = vunpack.c.l.b16 %v338
    %v380 = vunpack.c.l.b16 %v339
    %v381 = vunpack.c.l.b16 %v340
    %v382 = vunpack.c.l.b16 %v341
    %v383 = vunpack.c.l.b16 %v342
    %v384 = vunpack.c.l.b16 %v343
    %v385 = vunpack.c.l.b16 %v344
    %v386 = vpack.c.b16 %v371, %v370
    %v387 = vpack.c.b16 %v373, %v372
    %v388 = vpack.c.b16 %v375, %v374
    %v389 = vpack.c.b16 %v377, %v376
    %v390 = vpack.c.b16 %v379, %v378
    %v391 = vpack.c.b16 %v381, %v380
    %v392 = vpack.c.b16 %v383, %v382
    %v393 = vpack.c.b16 %v385, %v384
    %v396 = vunpack.c.l.b16 %v345
    %v397 = vunpack.c.l.b16 %v346
    %v398 = vpack.c.b16 %v397, %v396
    %v401 = vsel %vm126, %v386, 0
    %v404 = vsel %vm126, %v387, 0
    %v407 = vsel %vm126, %v388, 0
    %v410 = vsel %vm126, %v389, 0
    %v413 = vsel %vm126, %v390, 0
    %v416 = vsel %vm126, %v391, 0
    %v419 = vsel %vm126, %v392, 0
    %v422 = vsel %vm126, %v393, 0
    %424 = vmatprep.subr.bf16.mxu0 0
    %425 = vmatpush1.bf16.msra.mxu0 0
    %426 = vmatprep.subr.bf16.mxu0 0
    %427 = vmatpush1.bf16.msra.mxu0 0
    %428 = vmatprep.subr.bf16.mxu0 0
    %429 = vmatpush1.bf16.msra.mxu0 0
    %430 = vmatprep.subr.bf16.mxu0 0
    %431 = vmatpush1.bf16.msra.mxu0 0
    %432 = vmatprep.subr.bf16.mxu0 0
    %433 = vmatpush1.bf16.msra.mxu0 0
    %434 = vmatprep.subr.bf16.mxu0 0
    %435 = vmatpush1.bf16.msra.mxu0 0
    %436 = vmatprep.subr.bf16.mxu0 0
    %437 = vmatpush1.bf16.msra.mxu0 0
    %438 = vmatprep.subr.bf16.mxu0 0
    %439 = vmatpush1.bf16.msra.mxu0 %v398
    %440 = vmatprep.subr.bf16.mxu0 0
    %441 = vmatpush2.bf16.msra.mxu0 0
    %442 = vmatprep.subr.bf16.mxu0 0
    %443 = vmatpush2.bf16.msra.mxu0 0
    %444 = vmatprep.subr.bf16.mxu0 0
    %445 = vmatpush2.bf16.msra.mxu0 0
    %446 = vmatprep.subr.bf16.mxu0 0
    %447 = vmatpush2.bf16.msra.mxu0 0
    %448 = vmatprep.subr.bf16.mxu0 0
    %449 = vmatpush2.bf16.msra.mxu0 0
    %450 = vmatprep.subr.bf16.mxu0 0
    %451 = vmatpush2.bf16.msra.mxu0 0
    %452 = vmatprep.subr.bf16.mxu0 0
    %453 = vmatpush2.bf16.msra.mxu0 0
    %454 = vmatprep.subr.bf16.mxu0 0
    %455 = vmatpush2.bf16.msra.mxu0 0
    %456 = vmatprep.mubr.bf16.mxu0 0
    %457 = vmatmul.mubr.bf16.gmra.mxu0 %v401
    %v458 = vpop.f32.mrf.mxu0
    %v459 = vadd.f32 %v352, %v458
    %v460 = vpop.f32.mrf.mxu0
    %v461 = vpop.f32.mrf.mxu0
    %v462 = vadd.f32 %v352, %v461
    %v463 = vpop.f32.mrf.mxu0
    %464 = vmatprep.mubr.bf16.mxu0 0
    %465 = vmatmul.mubr.bf16.gmra.mxu0 %v404
    %v466 = vpop.f32.mrf.mxu0
    %v467 = vadd.f32 %v352, %v466
    %v468 = vpop.f32.mrf.mxu0
    %v469 = vpop.f32.mrf.mxu0
    %v470 = vadd.f32 %v352, %v469
    %v471 = vpop.f32.mrf.mxu0
    %472 = vmatprep.mubr.bf16.mxu0 0
    %473 = vmatmul.mubr.bf16.gmra.mxu0 %v407
    %v474 = vpop.f32.mrf.mxu0
    %v475 = vadd.f32 %v352, %v474
    %v476 = vpop.f32.mrf.mxu0
    %v477 = vpop.f32.mrf.mxu0
    %v478 = vadd.f32 %v352, %v477
    %v479 = vpop.f32.mrf.mxu0
    %480 = vmatprep.mubr.bf16.mxu0 0
    %481 = vmatmul.mubr.bf16.gmra.mxu0 %v410
    %v482 = vpop.f32.mrf.mxu0
    %v483 = vadd.f32 %v352, %v482
    %v484 = vpop.f32.mrf.mxu0
    %v485 = vpop.f32.mrf.mxu0
    %v486 = vadd.f32 %v352, %v485
    %v487 = vpop.f32.mrf.mxu0
    %488 = vmatprep.mubr.bf16.mxu0 0
    %489 = vmatmul.mubr.bf16.gmra.mxu0 %v413
    %v490 = vpop.f32.mrf.mxu0
    %v491 = vadd.f32 %v352, %v490
    %v492 = vpop.f32.mrf.mxu0
    %v493 = vpop.f32.mrf.mxu0
    %v494 = vadd.f32 %v352, %v493
    %v495 = vpop.f32.mrf.mxu0
    %496 = vmatprep.mubr.bf16.mxu0 0
    %497 = vmatmul.mubr.bf16.gmra.mxu0 %v416
    %v498 = vpop.f32.mrf.mxu0
    %v499 = vadd.f32 %v352, %v498
    %v500 = vpop.f32.mrf.mxu0
    %v501 = vpop.f32.mrf.mxu0
    %v502 = vadd.f32 %v352, %v501
    %v503 = vpop.f32.mrf.mxu0
    %504 = vmatprep.mubr.bf16.mxu0 0
    %505 = vmatmul.mubr.bf16.gmra.mxu0 %v419
    %v506 = vpop.f32.mrf.mxu0
    %v507 = vadd.f32 %v352, %v506
    %v508 = vpop.f32.mrf.mxu0
    %v509 = vpop.f32.mrf.mxu0
    %v510 = vadd.f32 %v352, %v509
    %v511 = vpop.f32.mrf.mxu0
    %512 = vmatprep.mubr.bf16.mxu0 0
    %513 = vmatmul.mubr.bf16.gmra.mxu0 %v422
    %v514 = vpop.f32.mrf.mxu0
    %v515 = vadd.f32 %v352, %v514
    %v516 = vpop.f32.mrf.mxu0
    %v517 = vpop.f32.mrf.mxu0
    %v518 = vadd.f32 %v352, %v517
    %v519 = vpop.f32.mrf.mxu0
    %520 = vdwg.mxu0
    %v521 = vpack.c.bf16 %v462, %v459
    %v522 = vpack.c.bf16 %v470, %v467
    %v523 = vpack.c.bf16 %v478, %v475
    %v524 = vpack.c.bf16 %v486, %v483
    %v525 = vpack.c.bf16 %v494, %v491
    %v526 = vpack.c.bf16 %v502, %v499
    %v527 = vpack.c.bf16 %v510, %v507
    %v528 = vpack.c.bf16 %v518, %v515
    %v537 = vunpack.c.l.b16 %v521
    %v538 = vunpack.c.h.b16 %v521
    %v539 = vunpack.c.l.b16 %v522
    %v540 = vunpack.c.h.b16 %v522
    %v541 = vunpack.c.l.b16 %v523
    %v542 = vunpack.c.h.b16 %v523
    %v543 = vunpack.c.l.b16 %v524
    %v544 = vunpack.c.h.b16 %v524
    %v545 = vunpack.c.l.b16 %v525
    %v546 = vunpack.c.h.b16 %v525
    %v547 = vunpack.c.l.b16 %v526
    %v548 = vunpack.c.h.b16 %v526
    %v549 = vunpack.c.l.b16 %v527
    %v550 = vunpack.c.h.b16 %v527
    %v551 = vunpack.c.l.b16 %v528
    %v552 = vunpack.c.h.b16 %v528
    %v553 = vpack.c.b16 %v537, %v537
    %v554 = vpack.c.b16 %v538, %v538
    %v555 = vpack.c.b16 %v539, %v539
    %v556 = vpack.c.b16 %v540, %v540
    %v557 = vpack.c.b16 %v541, %v541
    %v558 = vpack.c.b16 %v542, %v542
    %v559 = vpack.c.b16 %v543, %v543
    %v560 = vpack.c.b16 %v544, %v544
    %v561 = vpack.c.b16 %v545, %v545
    %v562 = vpack.c.b16 %v546, %v546
    %v563 = vpack.c.b16 %v547, %v547
    %v564 = vpack.c.b16 %v548, %v548
    %v565 = vpack.c.b16 %v549, %v549
    %v566 = vpack.c.b16 %v550, %v550
    %v567 = vpack.c.b16 %v551, %v551
    %v568 = vpack.c.b16 %v552, %v552
    %585 = vst.msk [vmem:[#allocation2 + $0x30] sm:$0xf] %vm34, %v553
    %586 = vst.msk [vmem:[#allocation2 + $0x34] sm:$0xf] %vm34, %v554
    %587 = vst.msk [vmem:[#allocation2 + $0x38] sm:$0xf] %vm34, %v555
    %588 = vst.msk [vmem:[#allocation2 + $0x3c] sm:$0xf] %vm34, %v556
    %589 = vst.msk [vmem:[#allocation2 + $0x40] sm:$0xf] %vm34, %v557
    %590 = vst.msk [vmem:[#allocation2 + $0x44] sm:$0xf] %vm34, %v558
    %591 = vst.msk [vmem:[#allocation2 + $0x48] sm:$0xf] %vm34, %v559
    %592 = vst.msk [vmem:[#allocation2 + $0x4c] sm:$0xf] %vm34, %v560
    %593 = vst.msk [vmem:[#allocation2 + $0xd8] sm:$0xf] %vm34, %v561
    %594 = vst.msk [vmem:[#allocation2 + $0xdc] sm:$0xf] %vm34, %v562
    %595 = vst.msk [vmem:[#allocation2 + $0xe0] sm:$0xf] %vm34, %v563
    %596 = vst.msk [vmem:[#allocation2 + $0xe4] sm:$0xf] %vm34, %v564
    %597 = vst.msk [vmem:[#allocation2 + $0xe8] sm:$0xf] %vm34, %v565
    %598 = vst.msk [vmem:[#allocation2 + $0xec] sm:$0xf] %vm34, %v566
    %599 = vst.msk [vmem:[#allocation2 + $0xf0] sm:$0xf] %vm34, %v567
    %600 = vst.msk [vmem:[#allocation2 + $0xf4] sm:$0xf] %vm34, %v568
    %s601 = scalar_lea.vmem %s0, 64
    %v602 = vld [vmem:[%s601] sm:$0xf]
    %v603 = vld [vmem:[%s601 + $0x4] sm:$0xf]
    %v604 = vld [vmem:[%s601 + $0x8] sm:$0xf]
    %v605 = vld [vmem:[%s601 + $0xc] sm:$0xf]
    %v606 = vld [vmem:[%s601 + $0x10] sm:$0xf]
    %v607 = vld [vmem:[%s601 + $0x14] sm:$0xf]
    %v608 = vld [vmem:[%s601 + $0x18] sm:$0xf]
    %v609 = vld [vmem:[%s601 + $0x1c] sm:$0xf]
    %v610 = vld [vmem:[%s601 + $0x80] sm:$0xf]
    %v611 = vld [vmem:[%s601 + $0x84] sm:$0xf]
    %v612 = vld [vmem:[%s601 + $0x88] sm:$0xf]
    %v613 = vld [vmem:[%s601 + $0x8c] sm:$0xf]
    %v614 = vld [vmem:[%s601 + $0x90] sm:$0xf]
    %v615 = vld [vmem:[%s601 + $0x94] sm:$0xf]
    %v616 = vld [vmem:[%s601 + $0x98] sm:$0xf]
    %v617 = vld [vmem:[%s601 + $0x9c] sm:$0xf]
    %v618 = vld [vmem:[%s1] sm:$0xf]
    %v619 = vld [vmem:[%s1 + $0x4] sm:$0xf]
    %v620 = vld [vmem:[%s2] sm:$0x1]
    %v622 = vlaneseq
    %v623 = vshrl.u32 %v622, 7
    %v624 = vsub.s32 0, %v623
    %v625 = vrot.slane %v620, %v624
    %v643 = vunpack.c.l.b16 %v602
    %v644 = vunpack.c.l.b16 %v603
    %v645 = vunpack.c.l.b16 %v604
    %v646 = vunpack.c.l.b16 %v605
    %v647 = vunpack.c.l.b16 %v606
    %v648 = vunpack.c.l.b16 %v607
    %v649 = vunpack.c.l.b16 %v608
    %v650 = vunpack.c.l.b16 %v609
    %v651 = vunpack.c.l.b16 %v610
    %v652 = vunpack.c.l.b16 %v611
    %v653 = vunpack.c.l.b16 %v612
    %v654 = vunpack.c.l.b16 %v613
    %v655 = vunpack.c.l.b16 %v614
    %v656 = vunpack.c.l.b16 %v615
    %v657 = vunpack.c.l.b16 %v616
    %v658 = vunpack.c.l.b16 %v617
    %v659 = vpack.c.b16 %v644, %v643
    %v660 = vpack.c.b16 %v646, %v645
    %v661 = vpack.c.b16 %v648, %v647
    %v662 = vpack.c.b16 %v650, %v649
    %v663 = vpack.c.b16 %v652, %v651
    %v664 = vpack.c.b16 %v654, %v653
    %v665 = vpack.c.b16 %v656, %v655
    %v666 = vpack.c.b16 %v658, %v657
    %v669 = vunpack.c.l.b16 %v618
    %v670 = vunpack.c.l.b16 %v619
    %v671 = vpack.c.b16 %v670, %v669
    %v674 = vsel %vm126, %v659, 0
    %v677 = vsel %vm126, %v660, 0
    %v680 = vsel %vm126, %v661, 0
    %v683 = vsel %vm126, %v662, 0
    %v686 = vsel %vm126, %v663, 0
    %v689 = vsel %vm126, %v664, 0
    %v692 = vsel %vm126, %v665, 0
    %v695 = vsel %vm126, %v666, 0
    %697 = vmatprep.subr.bf16.mxu0 0
    %698 = vmatpush1.bf16.msra.mxu0 0
    %699 = vmatprep.subr.bf16.mxu0 0
    %700 = vmatpush1.bf16.msra.mxu0 0
    %701 = vmatprep.subr.bf16.mxu0 0
    %702 = vmatpush1.bf16.msra.mxu0 0
    %703 = vmatprep.subr.bf16.mxu0 0
    %704 = vmatpush1.bf16.msra.mxu0 0
    %705 = vmatprep.subr.bf16.mxu0 0
    %706 = vmatpush1.bf16.msra.mxu0 0
    %707 = vmatprep.subr.bf16.mxu0 0
    %708 = vmatpush1.bf16.msra.mxu0 0
    %709 = vmatprep.subr.bf16.mxu0 0
    %710 = vmatpush1.bf16.msra.mxu0 0
    %711 = vmatprep.subr.bf16.mxu0 0
    %712 = vmatpush1.bf16.msra.mxu0 %v671
    %713 = vmatprep.subr.bf16.mxu0 0
    %714 = vmatpush2.bf16.msra.mxu0 0
    %715 = vmatprep.subr.bf16.mxu0 0
    %716 = vmatpush2.bf16.msra.mxu0 0
    %717 = vmatprep.subr.bf16.mxu0 0
    %718 = vmatpush2.bf16.msra.mxu0 0
    %719 = vmatprep.subr.bf16.mxu0 0
    %720 = vmatpush2.bf16.msra.mxu0 0
    %721 = vmatprep.subr.bf16.mxu0 0
    %722 = vmatpush2.bf16.msra.mxu0 0
    %723 = vmatprep.subr.bf16.mxu0 0
    %724 = vmatpush2.bf16.msra.mxu0 0
    %725 = vmatprep.subr.bf16.mxu0 0
    %726 = vmatpush2.bf16.msra.mxu0 0
    %727 = vmatprep.subr.bf16.mxu0 0
    %728 = vmatpush2.bf16.msra.mxu0 0
    %729 = vmatprep.mubr.bf16.mxu0 0
    %730 = vmatmul.mubr.bf16.gmra.mxu0 %v674
    %v731 = vpop.f32.mrf.mxu0
    %v732 = vadd.f32 %v625, %v731
    %v733 = vpop.f32.mrf.mxu0
    %v734 = vpop.f32.mrf.mxu0
    %v735 = vadd.f32 %v625, %v734
    %v736 = vpop.f32.mrf.mxu0
    %737 = vmatprep.mubr.bf16.mxu0 0
    %738 = vmatmul.mubr.bf16.gmra.mxu0 %v677
    %v739 = vpop.f32.mrf.mxu0
    %v740 = vadd.f32 %v625, %v739
    %v741 = vpop.f32.mrf.mxu0
    %v742 = vpop.f32.mrf.mxu0
    %v743 = vadd.f32 %v625, %v742
    %v744 = vpop.f32.mrf.mxu0
    %745 = vmatprep.mubr.bf16.mxu0 0
    %746 = vmatmul.mubr.bf16.gmra.mxu0 %v680
    %v747 = vpop.f32.mrf.mxu0
    %v748 = vadd.f32 %v625, %v747
    %v749 = vpop.f32.mrf.mxu0
    %v750 = vpop.f32.mrf.mxu0
    %v751 = vadd.f32 %v625, %v750
    %v752 = vpop.f32.mrf.mxu0
    %753 = vmatprep.mubr.bf16.mxu0 0
    %754 = vmatmul.mubr.bf16.gmra.mxu0 %v683
    %v755 = vpop.f32.mrf.mxu0
    %v756 = vadd.f32 %v625, %v755
    %v757 = vpop.f32.mrf.mxu0
    %v758 = vpop.f32.mrf.mxu0
    %v759 = vadd.f32 %v625, %v758
    %v760 = vpop.f32.mrf.mxu0
    %761 = vmatprep.mubr.bf16.mxu0 0
    %762 = vmatmul.mubr.bf16.gmra.mxu0 %v686
    %v763 = vpop.f32.mrf.mxu0
    %v764 = vadd.f32 %v625, %v763
    %v765 = vpop.f32.mrf.mxu0
    %v766 = vpop.f32.mrf.mxu0
    %v767 = vadd.f32 %v625, %v766
    %v768 = vpop.f32.mrf.mxu0
    %769 = vmatprep.mubr.bf16.mxu0 0
    %770 = vmatmul.mubr.bf16.gmra.mxu0 %v689
    %v771 = vpop.f32.mrf.mxu0
    %v772 = vadd.f32 %v625, %v771
    %v773 = vpop.f32.mrf.mxu0
    %v774 = vpop.f32.mrf.mxu0
    %v775 = vadd.f32 %v625, %v774
    %v776 = vpop.f32.mrf.mxu0
    %777 = vmatprep.mubr.bf16.mxu0 0
    %778 = vmatmul.mubr.bf16.gmra.mxu0 %v692
    %v779 = vpop.f32.mrf.mxu0
    %v780 = vadd.f32 %v625, %v779
    %v781 = vpop.f32.mrf.mxu0
    %v782 = vpop.f32.mrf.mxu0
    %v783 = vadd.f32 %v625, %v782
    %v784 = vpop.f32.mrf.mxu0
    %785 = vmatprep.mubr.bf16.mxu0 0
    %786 = vmatmul.mubr.bf16.gmra.mxu0 %v695
    %v787 = vpop.f32.mrf.mxu0
    %v788 = vadd.f32 %v625, %v787
    %v789 = vpop.f32.mrf.mxu0
    %v790 = vpop.f32.mrf.mxu0
    %v791 = vadd.f32 %v625, %v790
    %v792 = vpop.f32.mrf.mxu0
    %793 = vdwg.mxu0
    %v794 = vpack.c.bf16 %v735, %v732
    %v795 = vpack.c.bf16 %v743, %v740
    %v796 = vpack.c.bf16 %v751, %v748
    %v797 = vpack.c.bf16 %v759, %v756
    %v798 = vpack.c.bf16 %v767, %v764
    %v799 = vpack.c.bf16 %v775, %v772
    %v800 = vpack.c.bf16 %v783, %v780
    %v801 = vpack.c.bf16 %v791, %v788
    %v810 = vunpack.c.l.b16 %v794
    %v811 = vunpack.c.h.b16 %v794
    %v812 = vunpack.c.l.b16 %v795
    %v813 = vunpack.c.h.b16 %v795
    %v814 = vunpack.c.l.b16 %v796
    %v815 = vunpack.c.h.b16 %v796
    %v816 = vunpack.c.l.b16 %v797
    %v817 = vunpack.c.h.b16 %v797
    %v818 = vunpack.c.l.b16 %v798
    %v819 = vunpack.c.h.b16 %v798
    %v820 = vunpack.c.l.b16 %v799
    %v821 = vunpack.c.h.b16 %v799
    %v822 = vunpack.c.l.b16 %v800
    %v823 = vunpack.c.h.b16 %v800
    %v824 = vunpack.c.l.b16 %v801
    %v825 = vunpack.c.h.b16 %v801
    %v826 = vpack.c.b16 %v810, %v810
    %v827 = vpack.c.b16 %v811, %v811
    %v828 = vpack.c.b16 %v812, %v812
    %v829 = vpack.c.b16 %v813, %v813
    %v830 = vpack.c.b16 %v814, %v814
    %v831 = vpack.c.b16 %v815, %v815
    %v832 = vpack.c.b16 %v816, %v816
    %v833 = vpack.c.b16 %v817, %v817
    %v834 = vpack.c.b16 %v818, %v818
    %v835 = vpack.c.b16 %v819, %v819
    %v836 = vpack.c.b16 %v820, %v820
    %v837 = vpack.c.b16 %v821, %v821
    %v838 = vpack.c.b16 %v822, %v822
    %v839 = vpack.c.b16 %v823, %v823
    %v840 = vpack.c.b16 %v824, %v824
    %v841 = vpack.c.b16 %v825, %v825
    %858 = vst.msk [vmem:[#allocation2 + $0x58] sm:$0xf] %vm34, %v826
    %859 = vst.msk [vmem:[#allocation2 + $0x5c] sm:$0xf] %vm34, %v827
    %860 = vst.msk [vmem:[#allocation2 + $0x60] sm:$0xf] %vm34, %v828
    %861 = vst.msk [vmem:[#allocation2 + $0x64] sm:$0xf] %vm34, %v829
    %862 = vst.msk [vmem:[#allocation2 + $0x68] sm:$0xf] %vm34, %v830
    %863 = vst.msk [vmem:[#allocation2 + $0x6c] sm:$0xf] %vm34, %v831
    %864 = vst.msk [vmem:[#allocation2 + $0x70] sm:$0xf] %vm34, %v832
    %865 = vst.msk [vmem:[#allocation2 + $0x74] sm:$0xf] %vm34, %v833
    %866 = vst.msk [vmem:[#allocation2 + $0x100] sm:$0xf] %vm34, %v834
    %867 = vst.msk [vmem:[#allocation2 + $0x104] sm:$0xf] %vm34, %v835
    %868 = vst.msk [vmem:[#allocation2 + $0x108] sm:$0xf] %vm34, %v836
    %869 = vst.msk [vmem:[#allocation2 + $0x10c] sm:$0xf] %vm34, %v837
    %870 = vst.msk [vmem:[#allocation2 + $0x110] sm:$0xf] %vm34, %v838
    %871 = vst.msk [vmem:[#allocation2 + $0x114] sm:$0xf] %vm34, %v839
    %872 = vst.msk [vmem:[#allocation2 + $0x118] sm:$0xf] %vm34, %v840
    %873 = vst.msk [vmem:[#allocation2 + $0x11c] sm:$0xf] %vm34, %v841
    %s874 = scalar_lea.vmem %s0, 96
    %v875 = vld [vmem:[%s874] sm:$0xf]
    %v876 = vld [vmem:[%s874 + $0x4] sm:$0xf]
    %v877 = vld [vmem:[%s874 + $0x8] sm:$0xf]
    %v878 = vld [vmem:[%s874 + $0xc] sm:$0xf]
    %v879 = vld [vmem:[%s874 + $0x10] sm:$0xf]
    %v880 = vld [vmem:[%s874 + $0x14] sm:$0xf]
    %v881 = vld [vmem:[%s874 + $0x18] sm:$0xf]
    %v882 = vld [vmem:[%s874 + $0x1c] sm:$0xf]
    %v883 = vld [vmem:[%s874 + $0x80] sm:$0xf]
    %v884 = vld [vmem:[%s874 + $0x84] sm:$0xf]
    %v885 = vld [vmem:[%s874 + $0x88] sm:$0xf]
    %v886 = vld [vmem:[%s874 + $0x8c] sm:$0xf]
    %v887 = vld [vmem:[%s874 + $0x90] sm:$0xf]
    %v888 = vld [vmem:[%s874 + $0x94] sm:$0xf]
    %v889 = vld [vmem:[%s874 + $0x98] sm:$0xf]
    %v890 = vld [vmem:[%s874 + $0x9c] sm:$0xf]
    %v891 = vld [vmem:[%s1] sm:$0xf]
    %v892 = vld [vmem:[%s1 + $0x4] sm:$0xf]
    %v893 = vld [vmem:[%s2] sm:$0x1]
    %v895 = vlaneseq
    %v896 = vshrl.u32 %v895, 7
    %v897 = vsub.s32 0, %v896
    %v898 = vrot.slane %v893, %v897
    %v916 = vunpack.c.l.b16 %v875
    %v917 = vunpack.c.l.b16 %v876
    %v918 = vunpack.c.l.b16 %v877
    %v919 = vunpack.c.l.b16 %v878
    %v920 = vunpack.c.l.b16 %v879
    %v921 = vunpack.c.l.b16 %v880
    %v922 = vunpack.c.l.b16 %v881
    %v923 = vunpack.c.l.b16 %v882
    %v924 = vunpack.c.l.b16 %v883
    %v925 = vunpack.c.l.b16 %v884
    %v926 = vunpack.c.l.b16 %v885
    %v927 = vunpack.c.l.b16 %v886
    %v928 = vunpack.c.l.b16 %v887
    %v929 = vunpack.c.l.b16 %v888
    %v930 = vunpack.c.l.b16 %v889
    %v931 = vunpack.c.l.b16 %v890
    %v932 = vpack.c.b16 %v917, %v916
    %v933 = vpack.c.b16 %v919, %v918
    %v934 = vpack.c.b16 %v921, %v920
    %v935 = vpack.c.b16 %v923, %v922
    %v936 = vpack.c.b16 %v925, %v924
    %v937 = vpack.c.b16 %v927, %v926
    %v938 = vpack.c.b16 %v929, %v928
    %v939 = vpack.c.b16 %v931, %v930
    %v942 = vunpack.c.l.b16 %v891
    %v943 = vunpack.c.l.b16 %v892
    %v944 = vpack.c.b16 %v943, %v942
    %v947 = vsel %vm126, %v932, 0
    %v950 = vsel %vm126, %v933, 0
    %v953 = vsel %vm126, %v934, 0
    %v956 = vsel %vm126, %v935, 0
    %v959 = vsel %vm126, %v936, 0
    %v962 = vsel %vm126, %v937, 0
    %v965 = vsel %vm126, %v938, 0
    %v968 = vsel %vm126, %v939, 0
    %970 = vmatprep.subr.bf16.mxu0 0
    %971 = vmatpush1.bf16.msra.mxu0 0
    %972 = vmatprep.subr.bf16.mxu0 0
    %973 = vmatpush1.bf16.msra.mxu0 0
    %974 = vmatprep.subr.bf16.mxu0 0
    %975 = vmatpush1.bf16.msra.mxu0 0
    %976 = vmatprep.subr.bf16.mxu0 0
    %977 = vmatpush1.bf16.msra.mxu0 0
    %978 = vmatprep.subr.bf16.mxu0 0
    %979 = vmatpush1.bf16.msra.mxu0 0
    %980 = vmatprep.subr.bf16.mxu0 0
    %981 = vmatpush1.bf16.msra.mxu0 0
    %982 = vmatprep.subr.bf16.mxu0 0
    %983 = vmatpush1.bf16.msra.mxu0 0
    %984 = vmatprep.subr.bf16.mxu0 0
    %985 = vmatpush1.bf16.msra.mxu0 %v944
    %986 = vmatprep.subr.bf16.mxu0 0
    %987 = vmatpush2.bf16.msra.mxu0 0
    %988 = vmatprep.subr.bf16.mxu0 0
    %989 = vmatpush2.bf16.msra.mxu0 0
    %990 = vmatprep.subr.bf16.mxu0 0
    %991 = vmatpush2.bf16.msra.mxu0 0
    %992 = vmatprep.subr.bf16.mxu0 0
    %993 = vmatpush2.bf16.msra.mxu0 0
    %994 = vmatprep.subr.bf16.mxu0 0
    %995 = vmatpush2.bf16.msra.mxu0 0
    %996 = vmatprep.subr.bf16.mxu0 0
    %997 = vmatpush2.bf16.msra.mxu0 0
    %998 = vmatprep.subr.bf16.mxu0 0
    %999 = vmatpush2.bf16.msra.mxu0 0
    %1000 = vmatprep.subr.bf16.mxu0 0
    %1001 = vmatpush2.bf16.msra.mxu0 0
    %1002 = vmatprep.mubr.bf16.mxu0 0
    %1003 = vmatmul.mubr.bf16.gmra.mxu0 %v947
    %v1004 = vpop.f32.mrf.mxu0
    %v1005 = vadd.f32 %v898, %v1004
    %v1006 = vpop.f32.mrf.mxu0
    %v1007 = vpop.f32.mrf.mxu0
    %v1008 = vadd.f32 %v898, %v1007
    %v1009 = vpop.f32.mrf.mxu0
    %1010 = vmatprep.mubr.bf16.mxu0 0
    %1011 = vmatmul.mubr.bf16.gmra.mxu0 %v950
    %v1012 = vpop.f32.mrf.mxu0
    %v1013 = vadd.f32 %v898, %v1012
    %v1014 = vpop.f32.mrf.mxu0
    %v1015 = vpop.f32.mrf.mxu0
    %v1016 = vadd.f32 %v898, %v1015
    %v1017 = vpop.f32.mrf.mxu0
    %1018 = vmatprep.mubr.bf16.mxu0 0
    %1019 = vmatmul.mubr.bf16.gmra.mxu0 %v953
    %v1020 = vpop.f32.mrf.mxu0
    %v1021 = vadd.f32 %v898, %v1020
    %v1022 = vpop.f32.mrf.mxu0
    %v1023 = vpop.f32.mrf.mxu0
    %v1024 = vadd.f32 %v898, %v1023
    %v1025 = vpop.f32.mrf.mxu0
    %1026 = vmatprep.mubr.bf16.mxu0 0
    %1027 = vmatmul.mubr.bf16.gmra.mxu0 %v956
    %v1028 = vpop.f32.mrf.mxu0
    %v1029 = vadd.f32 %v898, %v1028
    %v1030 = vpop.f32.mrf.mxu0
    %v1031 = vpop.f32.mrf.mxu0
    %v1032 = vadd.f32 %v898, %v1031
    %v1033 = vpop.f32.mrf.mxu0
    %1034 = vmatprep.mubr.bf16.mxu0 0
    %1035 = vmatmul.mubr.bf16.gmra.mxu0 %v959
    %v1036 = vpop.f32.mrf.mxu0
    %v1037 = vadd.f32 %v898, %v1036
    %v1038 = vpop.f32.mrf.mxu0
    %v1039 = vpop.f32.mrf.mxu0
    %v1040 = vadd.f32 %v898, %v1039
    %v1041 = vpop.f32.mrf.mxu0
    %1042 = vmatprep.mubr.bf16.mxu0 0
    %1043 = vmatmul.mubr.bf16.gmra.mxu0 %v962
    %v1044 = vpop.f32.mrf.mxu0
    %v1045 = vadd.f32 %v898, %v1044
    %v1046 = vpop.f32.mrf.mxu0
    %v1047 = vpop.f32.mrf.mxu0
    %v1048 = vadd.f32 %v898, %v1047
    %v1049 = vpop.f32.mrf.mxu0
    %1050 = vmatprep.mubr.bf16.mxu0 0
    %1051 = vmatmul.mubr.bf16.gmra.mxu0 %v965
    %v1052 = vpop.f32.mrf.mxu0
    %v1053 = vadd.f32 %v898, %v1052
    %v1054 = vpop.f32.mrf.mxu0
    %v1055 = vpop.f32.mrf.mxu0
    %v1056 = vadd.f32 %v898, %v1055
    %v1057 = vpop.f32.mrf.mxu0
    %1058 = vmatprep.mubr.bf16.mxu0 0
    %1059 = vmatmul.mubr.bf16.gmra.mxu0 %v968
    %v1060 = vpop.f32.mrf.mxu0
    %v1061 = vadd.f32 %v898, %v1060
    %v1062 = vpop.f32.mrf.mxu0
    %v1063 = vpop.f32.mrf.mxu0
    %v1064 = vadd.f32 %v898, %v1063
    %v1065 = vpop.f32.mrf.mxu0
    %1066 = vdwg.mxu0
    %v1067 = vpack.c.bf16 %v1008, %v1005
    %v1068 = vpack.c.bf16 %v1016, %v1013
    %v1069 = vpack.c.bf16 %v1024, %v1021
    %v1070 = vpack.c.bf16 %v1032, %v1029
    %v1071 = vpack.c.bf16 %v1040, %v1037
    %v1072 = vpack.c.bf16 %v1048, %v1045
    %v1073 = vpack.c.bf16 %v1056, %v1053
    %v1074 = vpack.c.bf16 %v1064, %v1061
    %v1083 = vunpack.c.l.b16 %v1067
    %v1084 = vunpack.c.h.b16 %v1067
    %v1085 = vunpack.c.l.b16 %v1068
    %v1086 = vunpack.c.h.b16 %v1068
    %v1087 = vunpack.c.l.b16 %v1069
    %v1088 = vunpack.c.h.b16 %v1069
    %v1089 = vunpack.c.l.b16 %v1070
    %v1090 = vunpack.c.h.b16 %v1070
    %v1091 = vunpack.c.l.b16 %v1071
    %v1092 = vunpack.c.h.b16 %v1071
    %v1093 = vunpack.c.l.b16 %v1072
    %v1094 = vunpack.c.h.b16 %v1072
    %v1095 = vunpack.c.l.b16 %v1073
    %v1096 = vunpack.c.h.b16 %v1073
    %v1097 = vunpack.c.l.b16 %v1074
    %v1098 = vunpack.c.h.b16 %v1074
    %v1099 = vpack.c.b16 %v1083, %v1083
    %v1100 = vpack.c.b16 %v1084, %v1084
    %v1101 = vpack.c.b16 %v1085, %v1085
    %v1102 = vpack.c.b16 %v1086, %v1086
    %v1103 = vpack.c.b16 %v1087, %v1087
    %v1104 = vpack.c.b16 %v1088, %v1088
    %v1105 = vpack.c.b16 %v1089, %v1089
    %v1106 = vpack.c.b16 %v1090, %v1090
    %v1107 = vpack.c.b16 %v1091, %v1091
    %v1108 = vpack.c.b16 %v1092, %v1092
    %v1109 = vpack.c.b16 %v1093, %v1093
    %v1110 = vpack.c.b16 %v1094, %v1094
    %v1111 = vpack.c.b16 %v1095, %v1095
    %v1112 = vpack.c.b16 %v1096, %v1096
    %v1113 = vpack.c.b16 %v1097, %v1097
    %v1114 = vpack.c.b16 %v1098, %v1098
    %1131 = vst.msk [vmem:[#allocation2 + $0x80] sm:$0xf] %vm34, %v1099
    %1132 = vst.msk [vmem:[#allocation2 + $0x84] sm:$0xf] %vm34, %v1100
    %1133 = vst.msk [vmem:[#allocation2 + $0x88] sm:$0xf] %vm34, %v1101
    %1134 = vst.msk [vmem:[#allocation2 + $0x8c] sm:$0xf] %vm34, %v1102
    %1135 = vst.msk [vmem:[#allocation2 + $0x90] sm:$0xf] %vm34, %v1103
    %1136 = vst.msk [vmem:[#allocation2 + $0x94] sm:$0xf] %vm34, %v1104
    %1137 = vst.msk [vmem:[#allocation2 + $0x98] sm:$0xf] %vm34, %v1105
    %1138 = vst.msk [vmem:[#allocation2 + $0x9c] sm:$0xf] %vm34, %v1106
    %1139 = vst.msk [vmem:[#allocation2 + $0x128] sm:$0xf] %vm34, %v1107
    %1140 = vst.msk [vmem:[#allocation2 + $0x12c] sm:$0xf] %vm34, %v1108
    %1141 = vst.msk [vmem:[#allocation2 + $0x130] sm:$0xf] %vm34, %v1109
    %1142 = vst.msk [vmem:[#allocation2 + $0x134] sm:$0xf] %vm34, %v1110
    %1143 = vst.msk [vmem:[#allocation2 + $0x138] sm:$0xf] %vm34, %v1111
    %1144 = vst.msk [vmem:[#allocation2 + $0x13c] sm:$0xf] %vm34, %v1112
    %1145 = vst.msk [vmem:[#allocation2 + $0x140] sm:$0xf] %vm34, %v1113
    %1146 = vst.msk [vmem:[#allocation2 + $0x144] sm:$0xf] %vm34, %v1114
    %v1147 = vlaneseq
    %v1148 = vshrl.u32 %v1147, 7
    %v1149 = vadd.s32 %v1148, 8
    %v1150 = vadd.s32 %v1148, 16
    %v1151 = vadd.s32 %v1148, 24
    %v1152 = vadd.s32 %v1148, 32
    %v1153 = vadd.s32 %v1148, 40
    %v1154 = vadd.s32 %v1148, 48
    %v1155 = vadd.s32 %v1148, 56
    %v1156 = vadd.s32 %v1148, 64
    %v1157 = vadd.s32 %v1148, 72
    %v1158 = vadd.s32 %v1148, 80
    %v1159 = vadd.s32 %v1148, 88
    %v1160 = vadd.s32 %v1148, 96
    %v1161 = vadd.s32 %v1148, 104
    %v1162 = vadd.s32 %v1148, 112
    %v1163 = vadd.s32 %v1148, 120
    %vm1164 = vcmp.lt.s32.totalorder %v1148, 0
    %v1165 = vsub.s32 0, %v1148
    %v1166 = vsel %vm1164, %v1165, %v1148
    %v1167 = vshrl.u32 %v1166, 3
    %v1168 = vand.u32 %v1166, 7
    %v1169 = vsub.s32 0, %v1168
    %v1170 = vsel %vm1164, %v1169, %v1168
    %vm1171 = vcmp.lt.s32.totalorder %v1149, 0
    %v1172 = vsub.s32 0, %v1149
    %v1173 = vsel %vm1171, %v1172, %v1149
    %v1174 = vshrl.u32 %v1173, 3
    %v1175 = vand.u32 %v1173, 7
    %v1176 = vsub.s32 0, %v1175
    %v1177 = vsel %vm1171, %v1176, %v1175
    %vm1178 = vcmp.lt.s32.totalorder %v1150, 0
    %v1179 = vsub.s32 0, %v1150
    %v1180 = vsel %vm1178, %v1179, %v1150
    %v1181 = vshrl.u32 %v1180, 3
    %v1182 = vand.u32 %v1180, 7
    %v1183 = vsub.s32 0, %v1182
    %v1184 = vsel %vm1178, %v1183, %v1182
    %vm1185 = vcmp.lt.s32.totalorder %v1151, 0
    %v1186 = vsub.s32 0, %v1151
    %v1187 = vsel %vm1185, %v1186, %v1151
    %v1188 = vshrl.u32 %v1187, 3
    %v1189 = vand.u32 %v1187, 7
    %v1190 = vsub.s32 0, %v1189
    %v1191 = vsel %vm1185, %v1190, %v1189
    %vm1192 = vcmp.lt.s32.totalorder %v1152, 0
    %v1193 = vsub.s32 0, %v1152
    %v1194 = vsel %vm1192, %v1193, %v1152
    %v1195 = vshrl.u32 %v1194, 3
    %v1196 = vand.u32 %v1194, 7
    %v1197 = vsub.s32 0, %v1196
    %v1198 = vsel %vm1192, %v1197, %v1196
    %vm1199 = vcmp.lt.s32.totalorder %v1153, 0
    %v1200 = vsub.s32 0, %v1153
    %v1201 = vsel %vm1199, %v1200, %v1153
    %v1202 = vshrl.u32 %v1201, 3
    %v1203 = vand.u32 %v1201, 7
    %v1204 = vsub.s32 0, %v1203
    %v1205 = vsel %vm1199, %v1204, %v1203
    %vm1206 = vcmp.lt.s32.totalorder %v1154, 0
    %v1207 = vsub.s32 0, %v1154
    %v1208 = vsel %vm1206, %v1207, %v1154
    %v1209 = vshrl.u32 %v1208, 3
    %v1210 = vand.u32 %v1208, 7
    %v1211 = vsub.s32 0, %v1210
    %v1212 = vsel %vm1206, %v1211, %v1210
    %vm1213 = vcmp.lt.s32.totalorder %v1155, 0
    %v1214 = vsub.s32 0, %v1155
    %v1215 = vsel %vm1213, %v1214, %v1155
    %v1216 = vshrl.u32 %v1215, 3
    %v1217 = vand.u32 %v1215, 7
    %v1218 = vsub.s32 0, %v1217
    %v1219 = vsel %vm1213, %v1218, %v1217
    %vm1220 = vcmp.lt.s32.totalorder %v1156, 0
    %v1221 = vsub.s32 0, %v1156
    %v1222 = vsel %vm1220, %v1221, %v1156
    %v1223 = vshrl.u32 %v1222, 3
    %v1224 = vand.u32 %v1222, 7
    %v1225 = vsub.s32 0, %v1224
    %v1226 = vsel %vm1220, %v1225, %v1224
    %vm1227 = vcmp.lt.s32.totalorder %v1157, 0
    %v1228 = vsub.s32 0, %v1157
    %v1229 = vsel %vm1227, %v1228, %v1157
    %v1230 = vshrl.u32 %v1229, 3
    %v1231 = vand.u32 %v1229, 7
    %v1232 = vsub.s32 0, %v1231
    %v1233 = vsel %vm1227, %v1232, %v1231
    %vm1234 = vcmp.lt.s32.totalorder %v1158, 0
    %v1235 = vsub.s32 0, %v1158
    %v1236 = vsel %vm1234, %v1235, %v1158
    %v1237 = vshrl.u32 %v1236, 3
    %v1238 = vand.u32 %v1236, 7
    %v1239 = vsub.s32 0, %v1238
    %v1240 = vsel %vm1234, %v1239, %v1238
    %vm1241 = vcmp.lt.s32.totalorder %v1159, 0
    %v1242 = vsub.s32 0, %v1159
    %v1243 = vsel %vm1241, %v1242, %v1159
    %v1244 = vshrl.u32 %v1243, 3
    %v1245 = vand.u32 %v1243, 7
    %v1246 = vsub.s32 0, %v1245
    %v1247 = vsel %vm1241, %v1246, %v1245
    %vm1248 = vcmp.lt.s32.totalorder %v1160, 0
    %v1249 = vsub.s32 0, %v1160
    %v1250 = vsel %vm1248, %v1249, %v1160
    %v1251 = vshrl.u32 %v1250, 3
    %v1252 = vand.u32 %v1250, 7
    %v1253 = vsub.s32 0, %v1252
    %v1254 = vsel %vm1248, %v1253, %v1252
    %vm1255 = vcmp.lt.s32.totalorder %v1161, 0
    %v1256 = vsub.s32 0, %v1161
    %v1257 = vsel %vm1255, %v1256, %v1161
    %v1258 = vshrl.u32 %v1257, 3
    %v1259 = vand.u32 %v1257, 7
    %v1260 = vsub.s32 0, %v1259
    %v1261 = vsel %vm1255, %v1260, %v1259
    %vm1262 = vcmp.lt.s32.totalorder %v1162, 0
    %v1263 = vsub.s32 0, %v1162
    %v1264 = vsel %vm1262, %v1263, %v1162
    %v1265 = vshrl.u32 %v1264, 3
    %v1266 = vand.u32 %v1264, 7
    %v1267 = vsub.s32 0, %v1266
    %v1268 = vsel %vm1262, %v1267, %v1266
    %vm1269 = vcmp.lt.s32.totalorder %v1163, 0
    %v1270 = vsub.s32 0, %v1163
    %v1271 = vsel %vm1269, %v1270, %v1163
    %v1272 = vshrl.u32 %v1271, 3
    %v1273 = vand.u32 %v1271, 7
    %v1274 = vsub.s32 0, %v1273
    %v1275 = vsel %vm1269, %v1274, %v1273
    %vm1276 = vcmp.ne.s32.totalorder %v1170, 0
    %vm1277 = vcmp.ne.s32.totalorder %v1177, 0
    %vm1278 = vcmp.ne.s32.totalorder %v1184, 0
    %vm1279 = vcmp.ne.s32.totalorder %v1191, 0
    %vm1280 = vcmp.ne.s32.totalorder %v1198, 0
    %vm1281 = vcmp.ne.s32.totalorder %v1205, 0
    %vm1282 = vcmp.ne.s32.totalorder %v1212, 0
    %vm1283 = vcmp.ne.s32.totalorder %v1219, 0
    %vm1284 = vcmp.ne.s32.totalorder %v1226, 0
    %vm1285 = vcmp.ne.s32.totalorder %v1233, 0
    %vm1286 = vcmp.ne.s32.totalorder %v1240, 0
    %vm1287 = vcmp.ne.s32.totalorder %v1247, 0
    %vm1288 = vcmp.ne.s32.totalorder %v1254, 0
    %vm1289 = vcmp.ne.s32.totalorder %v1261, 0
    %vm1290 = vcmp.ne.s32.totalorder %v1268, 0
    %vm1291 = vcmp.ne.s32.totalorder %v1275, 0
    %vm1292 = vcmp.lt.s32.totalorder %v1170, 0
    %vm1293 = vcmp.lt.s32.totalorder %v1177, 0
    %vm1294 = vcmp.lt.s32.totalorder %v1184, 0
    %vm1295 = vcmp.lt.s32.totalorder %v1191, 0
    %vm1296 = vcmp.lt.s32.totalorder %v1198, 0
    %vm1297 = vcmp.lt.s32.totalorder %v1205, 0
    %vm1298 = vcmp.lt.s32.totalorder %v1212, 0
    %vm1299 = vcmp.lt.s32.totalorder %v1219, 0
    %vm1300 = vcmp.lt.s32.totalorder %v1226, 0
    %vm1301 = vcmp.lt.s32.totalorder %v1233, 0
    %vm1302 = vcmp.lt.s32.totalorder %v1240, 0
    %vm1303 = vcmp.lt.s32.totalorder %v1247, 0
    %vm1304 = vcmp.lt.s32.totalorder %v1254, 0
    %vm1305 = vcmp.lt.s32.totalorder %v1261, 0
    %vm1306 = vcmp.lt.s32.totalorder %v1268, 0
    %vm1307 = vcmp.lt.s32.totalorder %v1275, 0
    %vm1308 = vmand %vm1292, %vm1276
    %vm1309 = vmand %vm1293, %vm1277
    %vm1310 = vmand %vm1294, %vm1278
    %vm1311 = vmand %vm1295, %vm1279
    %vm1312 = vmand %vm1296, %vm1280
    %vm1313 = vmand %vm1297, %vm1281
    %vm1314 = vmand %vm1298, %vm1282
    %vm1315 = vmand %vm1299, %vm1283
    %vm1316 = vmand %vm1300, %vm1284
    %vm1317 = vmand %vm1301, %vm1285
    %vm1318 = vmand %vm1302, %vm1286
    %vm1319 = vmand %vm1303, %vm1287
    %vm1320 = vmand %vm1304, %vm1288
    %vm1321 = vmand %vm1305, %vm1289
    %vm1322 = vmand %vm1306, %vm1290
    %vm1323 = vmand %vm1307, %vm1291
    %v1324 = vadd.s32 %v1170, 8
    %v1325 = vadd.s32 %v1177, 8
    %v1326 = vadd.s32 %v1184, 8
    %v1327 = vadd.s32 %v1191, 8
    %v1328 = vadd.s32 %v1198, 8
    %v1329 = vadd.s32 %v1205, 8
    %v1330 = vadd.s32 %v1212, 8
    %v1331 = vadd.s32 %v1219, 8
    %v1332 = vadd.s32 %v1226, 8
    %v1333 = vadd.s32 %v1233, 8
    %v1334 = vadd.s32 %v1240, 8
    %v1335 = vadd.s32 %v1247, 8
    %v1336 = vadd.s32 %v1254, 8
    %v1337 = vadd.s32 %v1261, 8
    %v1338 = vadd.s32 %v1268, 8
    %v1339 = vadd.s32 %v1275, 8
    %v1340 = vsel %vm1308, %v1324, %v1170
    %v1341 = vsel %vm1309, %v1325, %v1177
    %v1342 = vsel %vm1310, %v1326, %v1184
    %v1343 = vsel %vm1311, %v1327, %v1191
    %v1344 = vsel %vm1312, %v1328, %v1198
    %v1345 = vsel %vm1313, %v1329, %v1205
    %v1346 = vsel %vm1314, %v1330, %v1212
    %v1347 = vsel %vm1315, %v1331, %v1219
    %v1348 = vsel %vm1316, %v1332, %v1226
    %v1349 = vsel %vm1317, %v1333, %v1233
    %v1350 = vsel %vm1318, %v1334, %v1240
    %v1351 = vsel %vm1319, %v1335, %v1247
    %v1352 = vsel %vm1320, %v1336, %v1254
    %v1353 = vsel %vm1321, %v1337, %v1261
    %v1354 = vsel %vm1322, %v1338, %v1268
    %v1355 = vsel %vm1323, %v1339, %v1275
    %vm1356 = vcmp.gt.s32.totalorder %v1340, 0
    %vm1357 = vcmp.gt.s32.totalorder %v1341, 0
    %vm1358 = vcmp.gt.s32.totalorder %v1342, 0
    %vm1359 = vcmp.gt.s32.totalorder %v1343, 0
    %vm1360 = vcmp.gt.s32.totalorder %v1344, 0
    %vm1361 = vcmp.gt.s32.totalorder %v1345, 0
    %vm1362 = vcmp.gt.s32.totalorder %v1346, 0
    %vm1363 = vcmp.gt.s32.totalorder %v1347, 0
    %vm1364 = vcmp.gt.s32.totalorder %v1348, 0
    %vm1365 = vcmp.gt.s32.totalorder %v1349, 0
    %vm1366 = vcmp.gt.s32.totalorder %v1350, 0
    %vm1367 = vcmp.gt.s32.totalorder %v1351, 0
    %vm1368 = vcmp.gt.s32.totalorder %v1352, 0
    %vm1369 = vcmp.gt.s32.totalorder %v1353, 0
    %vm1370 = vcmp.gt.s32.totalorder %v1354, 0
    %vm1371 = vcmp.gt.s32.totalorder %v1355, 0
    %v1372 = vsel %vm1356, 1, 0
    %v1373 = vsel %vm1357, 1, 0
    %v1374 = vsel %vm1358, 1, 0
    %v1375 = vsel %vm1359, 1, 0
    %v1376 = vsel %vm1360, 1, 0
    %v1377 = vsel %vm1361, 1, 0
    %v1378 = vsel %vm1362, 1, 0
    %v1379 = vsel %vm1363, 1, 0
    %v1380 = vsel %vm1364, 1, 0
    %v1381 = vsel %vm1365, 1, 0
    %v1382 = vsel %vm1366, 1, 0
    %v1383 = vsel %vm1367, 1, 0
    %v1384 = vsel %vm1368, 1, 0
    %v1385 = vsel %vm1369, 1, 0
    %v1386 = vsel %vm1370, 1, 0
    %v1387 = vsel %vm1371, 1, 0
    %vm1388 = vcmp.eq.s32.totalorder %v1372, 1
    %vm1389 = vcmp.eq.s32.totalorder %v1373, 1
    %vm1390 = vcmp.eq.s32.totalorder %v1374, 1
    %vm1391 = vcmp.eq.s32.totalorder %v1375, 1
    %vm1392 = vcmp.eq.s32.totalorder %v1376, 1
    %vm1393 = vcmp.eq.s32.totalorder %v1377, 1
    %vm1394 = vcmp.eq.s32.totalorder %v1378, 1
    %vm1395 = vcmp.eq.s32.totalorder %v1379, 1
    %vm1396 = vcmp.eq.s32.totalorder %v1380, 1
    %vm1397 = vcmp.eq.s32.totalorder %v1381, 1
    %vm1398 = vcmp.eq.s32.totalorder %v1382, 1
    %vm1399 = vcmp.eq.s32.totalorder %v1383, 1
    %vm1400 = vcmp.eq.s32.totalorder %v1384, 1
    %vm1401 = vcmp.eq.s32.totalorder %v1385, 1
    %vm1402 = vcmp.eq.s32.totalorder %v1386, 1
    %vm1403 = vcmp.eq.s32.totalorder %v1387, 1
    %v1404 = vld [vmem:[#allocation2 + $0x78] sm:$0x8]
    %v1405 = vld [vmem:[#allocation2 + $0x7c] sm:$0xf]
    %v1406 = vld [vmem:[#allocation2 + $0x80] sm:$0xf]
    %v1407 = vld [vmem:[#allocation2 + $0x84] sm:$0xf]
    %v1408 = vld [vmem:[#allocation2 + $0x88] sm:$0xf]
    %v1409 = vld [vmem:[#allocation2 + $0x8c] sm:$0xf]
    %v1410 = vld [vmem:[#allocation2 + $0x90] sm:$0xf]
    %v1411 = vld [vmem:[#allocation2 + $0x94] sm:$0xf]
    %v1412 = vld [vmem:[#allocation2 + $0x98] sm:$0xf]
    %v1413 = vld [vmem:[#allocation2 + $0x120] sm:$0x8]
    %v1414 = vld [vmem:[#allocation2 + $0x124] sm:$0xf]
    %v1415 = vld [vmem:[#allocation2 + $0x128] sm:$0xf]
    %v1416 = vld [vmem:[#allocation2 + $0x12c] sm:$0xf]
    %v1417 = vld [vmem:[#allocation2 + $0x130] sm:$0xf]
    %v1418 = vld [vmem:[#allocation2 + $0x134] sm:$0xf]
    %v1419 = vld [vmem:[#allocation2 + $0x138] sm:$0xf]
    %v1420 = vld [vmem:[#allocation2 + $0x13c] sm:$0xf]
    %v1421 = vld [vmem:[#allocation2 + $0x140] sm:$0xf]
    %vm1422 = vsmask.f32 256
    %vm1423 = vsmask.f32 4368
    %vm1424 = vmor %vm1422, %vm1423
    %v1426 = vshrl.u32 %v1404, 16
    %v1428 = vrot.slane %v1426, 7
    %v1429 = vrot.slane %v1428, 4
    %v1431 = vshrl.u32 %v1405, 16
    %v1433 = vrot.slane %v1431, 7
    %v1434 = vshll.u32 %v1405, 16
    %v1436 = vor.u32 %v1433, %v1434
    %v1437 = vsel %vm1424, %v1429, %v1436
    %v1438 = vrot.slane %v1433, 4
    %v1440 = vshrl.u32 %v1406, 16
    %v1442 = vrot.slane %v1440, 7
    %v1443 = vshll.u32 %v1406, 16
    %v1445 = vor.u32 %v1442, %v1443
    %v1446 = vsel %vm1424, %v1438, %v1445
    %v1447 = vrot.slane %v1442, 4
    %v1449 = vshrl.u32 %v1407, 16
    %v1451 = vrot.slane %v1449, 7
    %v1452 = vshll.u32 %v1407, 16
    %v1454 = vor.u32 %v1451, %v1452
    %v1455 = vsel %vm1424, %v1447, %v1454
    %v1456 = vrot.slane %v1451, 4
    %v1458 = vshrl.u32 %v1408, 16
    %v1460 = vrot.slane %v1458, 7
    %v1461 = vshll.u32 %v1408, 16
    %v1463 = vor.u32 %v1460, %v1461
    %v1464 = vsel %vm1424, %v1456, %v1463
    %v1465 = vrot.slane %v1460, 4
    %v1467 = vshrl.u32 %v1409, 16
    %v1469 = vrot.slane %v1467, 7
    %v1470 = vshll.u32 %v1409, 16
    %v1472 = vor.u32 %v1469, %v1470
    %v1473 = vsel %vm1424, %v1465, %v1472
    %v1474 = vrot.slane %v1469, 4
    %v1476 = vshrl.u32 %v1410, 16
    %v1478 = vrot.slane %v1476, 7
    %v1479 = vshll.u32 %v1410, 16
    %v1481 = vor.u32 %v1478, %v1479
    %v1482 = vsel %vm1424, %v1474, %v1481
    %v1483 = vrot.slane %v1478, 4
    %v1485 = vshrl.u32 %v1411, 16
    %v1487 = vrot.slane %v1485, 7
    %v1488 = vshll.u32 %v1411, 16
    %v1490 = vor.u32 %v1487, %v1488
    %v1491 = vsel %vm1424, %v1483, %v1490
    %v1492 = vrot.slane %v1487, 4
    %v1494 = vshrl.u32 %v1412, 16
    %v1496 = vrot.slane %v1494, 7
    %v1497 = vshll.u32 %v1412, 16
    %v1499 = vor.u32 %v1496, %v1497
    %v1500 = vsel %vm1424, %v1492, %v1499
    %v1502 = vshrl.u32 %v1413, 16
    %v1504 = vrot.slane %v1502, 7
    %v1505 = vrot.slane %v1504, 4
    %v1507 = vshrl.u32 %v1414, 16
    %v1509 = vrot.slane %v1507, 7
    %v1510 = vshll.u32 %v1414, 16
    %v1512 = vor.u32 %v1509, %v1510
    %v1513 = vsel %vm1424, %v1505, %v1512
    %v1514 = vrot.slane %v1509, 4
    %v1516 = vshrl.u32 %v1415, 16
    %v1518 = vrot.slane %v1516, 7
    %v1519 = vshll.u32 %v1415, 16
    %v1521 = vor.u32 %v1518, %v1519
    %v1522 = vsel %vm1424, %v1514, %v1521
    %v1523 = vrot.slane %v1518, 4
    %v1525 = vshrl.u32 %v1416, 16
    %v1527 = vrot.slane %v1525, 7
    %v1528 = vshll.u32 %v1416, 16
    %v1530 = vor.u32 %v1527, %v1528
    %v1531 = vsel %vm1424, %v1523, %v1530
    %v1532 = vrot.slane %v1527, 4
    %v1534 = vshrl.u32 %v1417, 16
    %v1536 = vrot.slane %v1534, 7
    %v1537 = vshll.u32 %v1417, 16
    %v1539 = vor.u32 %v1536, %v1537
    %v1540 = vsel %vm1424, %v1532, %v1539
    %v1541 = vrot.slane %v1536, 4
    %v1543 = vshrl.u32 %v1418, 16
    %v1545 = vrot.slane %v1543, 7
    %v1546 = vshll.u32 %v1418, 16
    %v1548 = vor.u32 %v1545, %v1546
    %v1549 = vsel %vm1424, %v1541, %v1548
    %v1550 = vrot.slane %v1545, 4
    %v1552 = vshrl.u32 %v1419, 16
    %v1554 = vrot.slane %v1552, 7
    %v1555 = vshll.u32 %v1419, 16
    %v1557 = vor.u32 %v1554, %v1555
    %v1558 = vsel %vm1424, %v1550, %v1557
    %v1559 = vrot.slane %v1554, 4
    %v1561 = vshrl.u32 %v1420, 16
    %v1563 = vrot.slane %v1561, 7
    %v1564 = vshll.u32 %v1420, 16
    %v1566 = vor.u32 %v1563, %v1564
    %v1567 = vsel %vm1424, %v1559, %v1566
    %v1568 = vrot.slane %v1563, 4
    %v1570 = vshrl.u32 %v1421, 16
    %v1572 = vrot.slane %v1570, 7
    %v1573 = vshll.u32 %v1421, 16
    %v1575 = vor.u32 %v1572, %v1573
    %v1576 = vsel %vm1424, %v1568, %v1575
    %vm1593 = vmpackc.low %vm1388, %vm1388
    %vm1594 = vmpackc.low %vm1389, %vm1389
    %vm1595 = vmpackc.low %vm1390, %vm1390
    %vm1596 = vmpackc.low %vm1391, %vm1391
    %vm1597 = vmpackc.low %vm1392, %vm1392
    %vm1598 = vmpackc.low %vm1393, %vm1393
    %vm1599 = vmpackc.low %vm1394, %vm1394
    %vm1600 = vmpackc.low %vm1395, %vm1395
    %vm1601 = vmpackc.low %vm1396, %vm1396
    %vm1602 = vmpackc.low %vm1397, %vm1397
    %vm1603 = vmpackc.low %vm1398, %vm1398
    %vm1604 = vmpackc.low %vm1399, %vm1399
    %vm1605 = vmpackc.low %vm1400, %vm1400
    %vm1606 = vmpackc.low %vm1401, %vm1401
    %vm1607 = vmpackc.low %vm1402, %vm1402
    %vm1608 = vmpackc.low %vm1403, %vm1403
    %v1609 = vsel %vm1593, %v1437, 0
    %v1610 = vsel %vm1594, %v1446, 0
    %v1611 = vsel %vm1595, %v1455, 0
    %v1612 = vsel %vm1596, %v1464, 0
    %v1613 = vsel %vm1597, %v1473, 0
    %v1614 = vsel %vm1598, %v1482, 0
    %v1615 = vsel %vm1599, %v1491, 0
    %v1616 = vsel %vm1600, %v1500, 0
    %v1617 = vsel %vm1601, %v1513, 0
    %v1618 = vsel %vm1602, %v1522, 0
    %v1619 = vsel %vm1603, %v1531, 0
    %v1620 = vsel %vm1604, %v1540, 0
    %v1621 = vsel %vm1605, %v1549, 0
    %v1622 = vsel %vm1606, %v1558, 0
    %v1623 = vsel %vm1607, %v1567, 0
    %v1624 = vsel %vm1608, %v1576, 0
    %v1625 = vld [vmem:[#allocation2 + $0x2c] sm:$0x8]
    %v1626 = vld [vmem:[#allocation2 + $0x30] sm:$0xf]
    %v1627 = vld [vmem:[#allocation2 + $0x34] sm:$0xf]
    %v1628 = vld [vmem:[#allocation2 + $0x38] sm:$0xf]
    %v1629 = vld [vmem:[#allocation2 + $0x3c] sm:$0xf]
    %v1630 = vld [vmem:[#allocation2 + $0x40] sm:$0xf]
    %v1631 = vld [vmem:[#allocation2 + $0x44] sm:$0xf]
    %v1632 = vld [vmem:[#allocation2 + $0x48] sm:$0xf]
    %v1633 = vld [vmem:[#allocation2 + $0x4c] sm:$0xf]
    %v1634 = vld [vmem:[#allocation2 + $0xd4] sm:$0x8]
    %v1635 = vld [vmem:[#allocation2 + $0xd8] sm:$0xf]
    %v1636 = vld [vmem:[#allocation2 + $0xdc] sm:$0xf]
    %v1637 = vld [vmem:[#allocation2 + $0xe0] sm:$0xf]
    %v1638 = vld [vmem:[#allocation2 + $0xe4] sm:$0xf]
    %v1639 = vld [vmem:[#allocation2 + $0xe8] sm:$0xf]
    %v1640 = vld [vmem:[#allocation2 + $0xec] sm:$0xf]
    %v1641 = vld [vmem:[#allocation2 + $0xf0] sm:$0xf]
    %v1642 = vld [vmem:[#allocation2 + $0xf4] sm:$0xf]
    %v1644 = vshrl.u32 %v1625, 16
    %v1646 = vrot.slane %v1644, 7
    %v1647 = vrot.slane %v1646, 4
    %v1649 = vshrl.u32 %v1626, 16
    %v1651 = vrot.slane %v1649, 7
    %v1652 = vshll.u32 %v1626, 16
    %v1654 = vor.u32 %v1651, %v1652
    %v1655 = vsel %vm1424, %v1647, %v1654
    %v1656 = vrot.slane %v1651, 4
    %v1658 = vshrl.u32 %v1627, 16
    %v1660 = vrot.slane %v1658, 7
    %v1661 = vshll.u32 %v1627, 16
    %v1663 = vor.u32 %v1660, %v1661
    %v1664 = vsel %vm1424, %v1656, %v1663
    %v1665 = vrot.slane %v1660, 4
    %v1667 = vshrl.u32 %v1628, 16
    %v1669 = vrot.slane %v1667, 7
    %v1670 = vshll.u32 %v1628, 16
    %v1672 = vor.u32 %v1669, %v1670
    %v1673 = vsel %vm1424, %v1665, %v1672
    %v1674 = vrot.slane %v1669, 4
    %v1676 = vshrl.u32 %v1629, 16
    %v1678 = vrot.slane %v1676, 7
    %v1679 = vshll.u32 %v1629, 16
    %v1681 = vor.u32 %v1678, %v1679
    %v1682 = vsel %vm1424, %v1674, %v1681
    %v1683 = vrot.slane %v1678, 4
    %v1685 = vshrl.u32 %v1630, 16
    %v1687 = vrot.slane %v1685, 7
    %v1688 = vshll.u32 %v1630, 16
    %v1690 = vor.u32 %v1687, %v1688
    %v1691 = vsel %vm1424, %v1683, %v1690
    %v1692 = vrot.slane %v1687, 4
    %v1694 = vshrl.u32 %v1631, 16
    %v1696 = vrot.slane %v1694, 7
    %v1697 = vshll.u32 %v1631, 16
    %v1699 = vor.u32 %v1696, %v1697
    %v1700 = vsel %vm1424, %v1692, %v1699
    %v1701 = vrot.slane %v1696, 4
    %v1703 = vshrl.u32 %v1632, 16
    %v1705 = vrot.slane %v1703, 7
    %v1706 = vshll.u32 %v1632, 16
    %v1708 = vor.u32 %v1705, %v1706
    %v1709 = vsel %vm1424, %v1701, %v1708
    %v1710 = vrot.slane %v1705, 4
    %v1712 = vshrl.u32 %v1633, 16
    %v1714 = vrot.slane %v1712, 7
    %v1715 = vshll.u32 %v1633, 16
    %v1717 = vor.u32 %v1714, %v1715
    %v1718 = vsel %vm1424, %v1710, %v1717
    %v1720 = vshrl.u32 %v1634, 16
    %v1722 = vrot.slane %v1720, 7
    %v1723 = vrot.slane %v1722, 4
    %v1725 = vshrl.u32 %v1635, 16
    %v1727 = vrot.slane %v1725, 7
    %v1728 = vshll.u32 %v1635, 16
    %v1730 = vor.u32 %v1727, %v1728
    %v1731 = vsel %vm1424, %v1723, %v1730
    %v1732 = vrot.slane %v1727, 4
    %v1734 = vshrl.u32 %v1636, 16
    %v1736 = vrot.slane %v1734, 7
    %v1737 = vshll.u32 %v1636, 16
    %v1739 = vor.u32 %v1736, %v1737
    %v1740 = vsel %vm1424, %v1732, %v1739
    %v1741 = vrot.slane %v1736, 4
    %v1743 = vshrl.u32 %v1637, 16
    %v1745 = vrot.slane %v1743, 7
    %v1746 = vshll.u32 %v1637, 16
    %v1748 = vor.u32 %v1745, %v1746
    %v1749 = vsel %vm1424, %v1741, %v1748
    %v1750 = vrot.slane %v1745, 4
    %v1752 = vshrl.u32 %v1638, 16
    %v1754 = vrot.slane %v1752, 7
    %v1755 = vshll.u32 %v1638, 16
    %v1757 = vor.u32 %v1754, %v1755
    %v1758 = vsel %vm1424, %v1750, %v1757
    %v1759 = vrot.slane %v1754, 4
    %v1761 = vshrl.u32 %v1639, 16
    %v1763 = vrot.slane %v1761, 7
    %v1764 = vshll.u32 %v1639, 16
    %v1766 = vor.u32 %v1763, %v1764
    %v1767 = vsel %vm1424, %v1759, %v1766
    %v1768 = vrot.slane %v1763, 4
    %v1770 = vshrl.u32 %v1640, 16
    %v1772 = vrot.slane %v1770, 7
    %v1773 = vshll.u32 %v1640, 16
    %v1775 = vor.u32 %v1772, %v1773
    %v1776 = vsel %vm1424, %v1768, %v1775
    %v1777 = vrot.slane %v1772, 4
    %v1779 = vshrl.u32 %v1641, 16
    %v1781 = vrot.slane %v1779, 7
    %v1782 = vshll.u32 %v1641, 16
    %v1784 = vor.u32 %v1781, %v1782
    %v1785 = vsel %vm1424, %v1777, %v1784
    %v1786 = vrot.slane %v1781, 4
    %v1788 = vshrl.u32 %v1642, 16
    %v1790 = vrot.slane %v1788, 7
    %v1791 = vshll.u32 %v1642, 16
    %v1793 = vor.u32 %v1790, %v1791
    %v1794 = vsel %vm1424, %v1786, %v1793
    %v1811 = vsel %vm1593, %v1655, 0
    %v1812 = vsel %vm1594, %v1664, 0
    %v1813 = vsel %vm1595, %v1673, 0
    %v1814 = vsel %vm1596, %v1682, 0
    %v1815 = vsel %vm1597, %v1691, 0
    %v1816 = vsel %vm1598, %v1700, 0
    %v1817 = vsel %vm1599, %v1709, 0
    %v1818 = vsel %vm1600, %v1718, 0
    %v1819 = vsel %vm1601, %v1731, 0
    %v1820 = vsel %vm1602, %v1740, 0
    %v1821 = vsel %vm1603, %v1749, 0
    %v1822 = vsel %vm1604, %v1758, 0
    %v1823 = vsel %vm1605, %v1767, 0
    %v1824 = vsel %vm1606, %v1776, 0
    %v1825 = vsel %vm1607, %v1785, 0
    %v1826 = vsel %vm1608, %v1794, 0
    %v1827 = vld [vmem:[#allocation2 + $0x7c] sm:$0x8]
    %v1828 = vld [vmem:[#allocation2 + $0x9c] sm:$0xf]
    %v1829 = vld [vmem:[#allocation2 + $0x124] sm:$0x8]
    %v1830 = vld [vmem:[#allocation2 + $0x144] sm:$0xf]
    %v1832 = vshrl.u32 %v1827, 16
    %v1834 = vrot.slane %v1832, 7
    %v1835 = vrot.slane %v1834, 4
    %v1836 = vsel %vm1424, %v1835, %v1445
    %v1837 = vrot.slane %v1496, 4
    %v1839 = vshrl.u32 %v1828, 16
    %v1841 = vrot.slane %v1839, 7
    %v1842 = vshll.u32 %v1828, 16
    %v1844 = vor.u32 %v1841, %v1842
    %v1845 = vsel %vm1424, %v1837, %v1844
    %v1847 = vshrl.u32 %v1829, 16
    %v1849 = vrot.slane %v1847, 7
    %v1850 = vrot.slane %v1849, 4
    %v1851 = vsel %vm1424, %v1850, %v1521
    %v1852 = vrot.slane %v1572, 4
    %v1854 = vshrl.u32 %v1830, 16
    %v1856 = vrot.slane %v1854, 7
    %v1857 = vshll.u32 %v1830, 16
    %v1859 = vor.u32 %v1856, %v1857
    %v1860 = vsel %vm1424, %v1852, %v1859
    %v1865 = vsel %vm1593, %v1836, 0
    %v1866 = vsel %vm1594, %v1455, 0
    %v1867 = vsel %vm1595, %v1464, 0
    %v1868 = vsel %vm1596, %v1473, 0
    %v1869 = vsel %vm1597, %v1482, 0
    %v1870 = vsel %vm1598, %v1491, 0
    %v1871 = vsel %vm1599, %v1500, 0
    %v1872 = vsel %vm1600, %v1845, 0
    %v1873 = vsel %vm1601, %v1851, 0
    %v1874 = vsel %vm1602, %v1531, 0
    %v1875 = vsel %vm1603, %v1540, 0
    %v1876 = vsel %vm1604, %v1549, 0
    %v1877 = vsel %vm1605, %v1558, 0
    %v1878 = vsel %vm1606, %v1567, 0
    %v1879 = vsel %vm1607, %v1576, 0
    %v1880 = vsel %vm1608, %v1860, 0
    %v1881 = vld [vmem:[#allocation2 + $0x54] sm:$0xf]
    %v1882 = vld [vmem:[#allocation2 + $0x58] sm:$0xf]
    %v1883 = vld [vmem:[#allocation2 + $0x5c] sm:$0xf]
    %v1884 = vld [vmem:[#allocation2 + $0x60] sm:$0xf]
    %v1885 = vld [vmem:[#allocation2 + $0x64] sm:$0xf]
    %v1886 = vld [vmem:[#allocation2 + $0x68] sm:$0xf]
    %v1887 = vld [vmem:[#allocation2 + $0x6c] sm:$0xf]
    %v1888 = vld [vmem:[#allocation2 + $0x70] sm:$0xf]
    %v1889 = vld [vmem:[#allocation2 + $0xfc] sm:$0xf]
    %v1890 = vld [vmem:[#allocation2 + $0x100] sm:$0xf]
    %v1891 = vld [vmem:[#allocation2 + $0x104] sm:$0xf]
    %v1892 = vld [vmem:[#allocation2 + $0x108] sm:$0xf]
    %v1893 = vld [vmem:[#allocation2 + $0x10c] sm:$0xf]
    %v1894 = vld [vmem:[#allocation2 + $0x110] sm:$0xf]
    %v1895 = vld [vmem:[#allocation2 + $0x114] sm:$0xf]
    %v1896 = vld [vmem:[#allocation2 + $0x118] sm:$0xf]
    %v1897 = vld [vmem:[#allocation2 + $0x8] sm:$0xf]
    %v1898 = vld [vmem:[#allocation2 + $0xc] sm:$0xf]
    %v1899 = vld [vmem:[#allocation2 + $0x10] sm:$0xf]
    %v1900 = vld [vmem:[#allocation2 + $0x14] sm:$0xf]
    %v1901 = vld [vmem:[#allocation2 + $0x18] sm:$0xf]
    %v1902 = vld [vmem:[#allocation2 + $0x1c] sm:$0xf]
    %v1903 = vld [vmem:[#allocation2 + $0x20] sm:$0xf]
    %v1904 = vld [vmem:[#allocation2 + $0x24] sm:$0xf]
    %v1905 = vld [vmem:[#allocation2 + $0xb0] sm:$0xf]
    %v1906 = vld [vmem:[#allocation2 + $0xb4] sm:$0xf]
    %v1907 = vld [vmem:[#allocation2 + $0xb8] sm:$0xf]
    %v1908 = vld [vmem:[#allocation2 + $0xbc] sm:$0xf]
    %v1909 = vld [vmem:[#allocation2 + $0xc0] sm:$0xf]
    %v1910 = vld [vmem:[#allocation2 + $0xc4] sm:$0xf]
    %v1911 = vld [vmem:[#allocation2 + $0xc8] sm:$0xf]
    %v1912 = vld [vmem:[#allocation2 + $0xcc] sm:$0xf]
    %v1913 = vld [vmem:[#allocation2 + $0x74] sm:$0xf]
    %v1914 = vld [vmem:[#allocation2 + $0x11c] sm:$0xf]
    %v1915 = vld [vmem:[%s3] sm:$0xf]
    %v1916 = vld [vmem:[%s3 + $0x4] sm:$0xf]
    %v1933 = vunpack.c.l.b16 %v1811
    %v1934 = vunpack.c.l.b16 %v1812
    %v1935 = vunpack.c.l.b16 %v1813
    %v1936 = vunpack.c.l.b16 %v1814
    %v1937 = vunpack.c.l.b16 %v1815
    %v1938 = vunpack.c.l.b16 %v1816
    %v1939 = vunpack.c.l.b16 %v1817
    %v1940 = vunpack.c.l.b16 %v1818
    %v1941 = vunpack.c.l.b16 %v1819
    %v1942 = vunpack.c.l.b16 %v1820
    %v1943 = vunpack.c.l.b16 %v1821
    %v1944 = vunpack.c.l.b16 %v1822
    %v1945 = vunpack.c.l.b16 %v1823
    %v1946 = vunpack.c.l.b16 %v1824
    %v1947 = vunpack.c.l.b16 %v1825
    %v1948 = vunpack.c.l.b16 %v1826
    %v1949 = vpack.c.b16 %v1934, %v1933
    %v1950 = vpack.c.b16 %v1936, %v1935
    %v1951 = vpack.c.b16 %v1938, %v1937
    %v1952 = vpack.c.b16 %v1940, %v1939
    %v1953 = vpack.c.b16 %v1942, %v1941
    %v1954 = vpack.c.b16 %v1944, %v1943
    %v1955 = vpack.c.b16 %v1946, %v1945
    %v1956 = vpack.c.b16 %v1948, %v1947
    %vm1957 = vcmask 64512
    %v1959 = vsel %vm1957, %v1949, 0
    %v1962 = vsel %vm1957, %v1950, 0
    %v1965 = vsel %vm1957, %v1951, 0
    %v1968 = vsel %vm1957, %v1952, 0
    %v1971 = vsel %vm1957, %v1953, 0
    %v1974 = vsel %vm1957, %v1954, 0
    %v1977 = vsel %vm1957, %v1955, 0
    %v1980 = vsel %vm1957, %v1956, 0
    %vm1982 = vcmask 1043456
    %v1984 = vsel %vm1982, %v1916, 0
    %1986 = vmatprep.subr.bf16.mxu0 0
    %1987 = vmatpush1.bf16.msra.mxu0 0
    %1988 = vmatprep.subr.bf16.mxu0 0
    %1989 = vmatpush1.bf16.msra.mxu0 0
    %1990 = vmatprep.subr.bf16.mxu0 0
    %1991 = vmatpush1.bf16.msra.mxu0 0
    %1992 = vmatprep.subr.bf16.mxu0 0
    %1993 = vmatpush1.bf16.msra.mxu0 0
    %1994 = vmatprep.subr.bf16.mxu0 0
    %1995 = vmatpush1.bf16.msra.mxu0 0
    %1996 = vmatprep.subr.bf16.mxu0 0
    %1997 = vmatpush1.bf16.msra.mxu0 0
    %1998 = vmatprep.subr.bf16.mxu0 0
    %1999 = vmatpush1.bf16.msra.mxu0 0
    %2000 = vmatprep.subr.bf16.mxu0 0
    %2001 = vmatpush1.bf16.msra.mxu0 %v1984
    %2002 = vmatprep.subr.bf16.mxu0 0
    %2003 = vmatpush2.bf16.msra.mxu0 0
    %2004 = vmatprep.subr.bf16.mxu0 0
    %2005 = vmatpush2.bf16.msra.mxu0 0
    %2006 = vmatprep.subr.bf16.mxu0 0
    %2007 = vmatpush2.bf16.msra.mxu0 0
    %2008 = vmatprep.subr.bf16.mxu0 0
    %2009 = vmatpush2.bf16.msra.mxu0 0
    %2010 = vmatprep.subr.bf16.mxu0 0
    %2011 = vmatpush2.bf16.msra.mxu0 0
    %2012 = vmatprep.subr.bf16.mxu0 0
    %2013 = vmatpush2.bf16.msra.mxu0 0
    %2014 = vmatprep.subr.bf16.mxu0 0
    %2015 = vmatpush2.bf16.msra.mxu0 0
    %2016 = vmatprep.subr.bf16.mxu0 0
    %2017 = vmatpush2.bf16.msra.mxu0 0
    %2018 = vmatprep.mubr.bf16.mxu0 0
    %2019 = vmatmul.mubr.bf16.gmra.mxu0 %v1959
    %v2020 = vpop.f32.mrf.mxu0
    %v2021 = vadd.f32 0.0, %v2020
    %v2022 = vpop.f32.mrf.mxu0
    %v2023 = vpop.f32.mrf.mxu0
    %v2024 = vadd.f32 0.0, %v2023
    %v2025 = vpop.f32.mrf.mxu0
    %2026 = vmatprep.mubr.bf16.mxu0 0
    %2027 = vmatmul.mubr.bf16.gmra.mxu0 %v1962
    %v2028 = vpop.f32.mrf.mxu0
    %v2029 = vadd.f32 0.0, %v2028
    %v2030 = vpop.f32.mrf.mxu0
    %v2031 = vpop.f32.mrf.mxu0
    %v2032 = vadd.f32 0.0, %v2031
    %v2033 = vpop.f32.mrf.mxu0
    %2034 = vmatprep.mubr.bf16.mxu0 0
    %2035 = vmatmul.mubr.bf16.gmra.mxu0 %v1965
    %v2036 = vpop.f32.mrf.mxu0
    %v2037 = vadd.f32 0.0, %v2036
    %v2038 = vpop.f32.mrf.mxu0
    %v2039 = vpop.f32.mrf.mxu0
    %v2040 = vadd.f32 0.0, %v2039
    %v2041 = vpop.f32.mrf.mxu0
    %2042 = vmatprep.mubr.bf16.mxu0 0
    %2043 = vmatmul.mubr.bf16.gmra.mxu0 %v1968
    %v2044 = vpop.f32.mrf.mxu0
    %v2045 = vadd.f32 0.0, %v2044
    %v2046 = vpop.f32.mrf.mxu0
    %v2047 = vpop.f32.mrf.mxu0
    %v2048 = vadd.f32 0.0, %v2047
    %v2049 = vpop.f32.mrf.mxu0
    %2050 = vmatprep.mubr.bf16.mxu0 0
    %2051 = vmatmul.mubr.bf16.gmra.mxu0 %v1971
    %v2052 = vpop.f32.mrf.mxu0
    %v2053 = vadd.f32 0.0, %v2052
    %v2054 = vpop.f32.mrf.mxu0
    %v2055 = vpop.f32.mrf.mxu0
    %v2056 = vadd.f32 0.0, %v2055
    %v2057 = vpop.f32.mrf.mxu0
    %2058 = vmatprep.mubr.bf16.mxu0 0
    %2059 = vmatmul.mubr.bf16.gmra.mxu0 %v1974
    %v2060 = vpop.f32.mrf.mxu0
    %v2061 = vadd.f32 0.0, %v2060
    %v2062 = vpop.f32.mrf.mxu0
    %v2063 = vpop.f32.mrf.mxu0
    %v2064 = vadd.f32 0.0, %v2063
    %v2065 = vpop.f32.mrf.mxu0
    %2066 = vmatprep.mubr.bf16.mxu0 0
    %2067 = vmatmul.mubr.bf16.gmra.mxu0 %v1977
    %v2068 = vpop.f32.mrf.mxu0
    %v2069 = vadd.f32 0.0, %v2068
    %v2070 = vpop.f32.mrf.mxu0
    %v2071 = vpop.f32.mrf.mxu0
    %v2072 = vadd.f32 0.0, %v2071
    %v2073 = vpop.f32.mrf.mxu0
    %2074 = vmatprep.mubr.bf16.mxu0 0
    %2075 = vmatmul.mubr.bf16.gmra.mxu0 %v1980
    %v2076 = vpop.f32.mrf.mxu0
    %v2077 = vadd.f32 0.0, %v2076
    %v2078 = vpop.f32.mrf.mxu0
    %v2079 = vpop.f32.mrf.mxu0
    %v2080 = vadd.f32 0.0, %v2079
    %v2081 = vpop.f32.mrf.mxu0
    %2082 = vdwg.mxu0
    %v2099 = vunpack.c.l.b16 %v1609
    %v2100 = vunpack.c.l.b16 %v1610
    %v2101 = vunpack.c.l.b16 %v1611
    %v2102 = vunpack.c.l.b16 %v1612
    %v2103 = vunpack.c.l.b16 %v1613
    %v2104 = vunpack.c.l.b16 %v1614
    %v2105 = vunpack.c.l.b16 %v1615
    %v2106 = vunpack.c.l.b16 %v1616
    %v2107 = vunpack.c.l.b16 %v1617
    %v2108 = vunpack.c.l.b16 %v1618
    %v2109 = vunpack.c.l.b16 %v1619
    %v2110 = vunpack.c.l.b16 %v1620
    %v2111 = vunpack.c.l.b16 %v1621
    %v2112 = vunpack.c.l.b16 %v1622
    %v2113 = vunpack.c.l.b16 %v1623
    %v2114 = vunpack.c.l.b16 %v1624
    %v2115 = vpack.c.b16 %v2100, %v2099
    %v2116 = vpack.c.b16 %v2102, %v2101
    %v2117 = vpack.c.b16 %v2104, %v2103
    %v2118 = vpack.c.b16 %v2106, %v2105
    %v2119 = vpack.c.b16 %v2108, %v2107
    %v2120 = vpack.c.b16 %v2110, %v2109
    %v2121 = vpack.c.b16 %v2112, %v2111
    %v2122 = vpack.c.b16 %v2114, %v2113
    %v2124 = vsel %vm1957, %v2115, 0
    %v2127 = vsel %vm1957, %v2116, 0
    %v2130 = vsel %vm1957, %v2117, 0
    %v2133 = vsel %vm1957, %v2118, 0
    %v2136 = vsel %vm1957, %v2119, 0
    %v2139 = vsel %vm1957, %v2120, 0
    %v2142 = vsel %vm1957, %v2121, 0
    %v2145 = vsel %vm1957, %v2122, 0
    %v2148 = vsel %vm1982, %v1915, 0
    %2150 = vmatprep.subr.bf16.mxu0 0
    %2151 = vmatpush1.bf16.msra.mxu0 0
    %2152 = vmatprep.subr.bf16.mxu0 0
    %2153 = vmatpush1.bf16.msra.mxu0 0
    %2154 = vmatprep.subr.bf16.mxu0 0
    %2155 = vmatpush1.bf16.msra.mxu0 0
    %2156 = vmatprep.subr.bf16.mxu0 0
    %2157 = vmatpush1.bf16.msra.mxu0 0
    %2158 = vmatprep.subr.bf16.mxu0 0
    %2159 = vmatpush1.bf16.msra.mxu0 0
    %2160 = vmatprep.subr.bf16.mxu0 0
    %2161 = vmatpush1.bf16.msra.mxu0 0
    %2162 = vmatprep.subr.bf16.mxu0 0
    %2163 = vmatpush1.bf16.msra.mxu0 0
    %2164 = vmatprep.subr.bf16.mxu0 0
    %2165 = vmatpush1.bf16.msra.mxu0 %v2148
    %2166 = vmatprep.subr.bf16.mxu0 0
    %2167 = vmatpush2.bf16.msra.mxu0 0
    %2168 = vmatprep.subr.bf16.mxu0 0
    %2169 = vmatpush2.bf16.msra.mxu0 0
    %2170 = vmatprep.subr.bf16.mxu0 0
    %2171 = vmatpush2.bf16.msra.mxu0 0
    %2172 = vmatprep.subr.bf16.mxu0 0
    %2173 = vmatpush2.bf16.msra.mxu0 0
    %2174 = vmatprep.subr.bf16.mxu0 0
    %2175 = vmatpush2.bf16.msra.mxu0 0
    %2176 = vmatprep.subr.bf16.mxu0 0
    %2177 = vmatpush2.bf16.msra.mxu0 0
    %2178 = vmatprep.subr.bf16.mxu0 0
    %2179 = vmatpush2.bf16.msra.mxu0 0
    %2180 = vmatprep.subr.bf16.mxu0 0
    %2181 = vmatpush2.bf16.msra.mxu0 0
    %2182 = vmatprep.mubr.bf16.mxu0 0
    %2183 = vmatmul.mubr.bf16.gmra.mxu0 %v2124
    %v2184 = vpop.f32.mrf.mxu0
    %v2185 = vadd.f32 %v2021, %v2184
    %v2186 = vpop.f32.mrf.mxu0
    %v2187 = vpop.f32.mrf.mxu0
    %v2188 = vadd.f32 %v2024, %v2187
    %v2189 = vpop.f32.mrf.mxu0
    %2190 = vmatprep.mubr.bf16.mxu0 0
    %2191 = vmatmul.mubr.bf16.gmra.mxu0 %v2127
    %v2192 = vpop.f32.mrf.mxu0
    %v2193 = vadd.f32 %v2029, %v2192
    %v2194 = vpop.f32.mrf.mxu0
    %v2195 = vpop.f32.mrf.mxu0
    %v2196 = vadd.f32 %v2032, %v2195
    %v2197 = vpop.f32.mrf.mxu0
    %2198 = vmatprep.mubr.bf16.mxu0 0
    %2199 = vmatmul.mubr.bf16.gmra.mxu0 %v2130
    %v2200 = vpop.f32.mrf.mxu0
    %v2201 = vadd.f32 %v2037, %v2200
    %v2202 = vpop.f32.mrf.mxu0
    %v2203 = vpop.f32.mrf.mxu0
    %v2204 = vadd.f32 %v2040, %v2203
    %v2205 = vpop.f32.mrf.mxu0
    %2206 = vmatprep.mubr.bf16.mxu0 0
    %2207 = vmatmul.mubr.bf16.gmra.mxu0 %v2133
    %v2208 = vpop.f32.mrf.mxu0
    %v2209 = vadd.f32 %v2045, %v2208
    %v2210 = vpop.f32.mrf.mxu0
    %v2211 = vpop.f32.mrf.mxu0
    %v2212 = vadd.f32 %v2048, %v2211
    %v2213 = vpop.f32.mrf.mxu0
    %2214 = vmatprep.mubr.bf16.mxu0 0
    %2215 = vmatmul.mubr.bf16.gmra.mxu0 %v2136
    %v2216 = vpop.f32.mrf.mxu0
    %v2217 = vadd.f32 %v2053, %v2216
    %v2218 = vpop.f32.mrf.mxu0
    %v2219 = vpop.f32.mrf.mxu0
    %v2220 = vadd.f32 %v2056, %v2219
    %v2221 = vpop.f32.mrf.mxu0
    %2222 = vmatprep.mubr.bf16.mxu0 0
    %2223 = vmatmul.mubr.bf16.gmra.mxu0 %v2139
    %v2224 = vpop.f32.mrf.mxu0
    %v2225 = vadd.f32 %v2061, %v2224
    %v2226 = vpop.f32.mrf.mxu0
    %v2227 = vpop.f32.mrf.mxu0
    %v2228 = vadd.f32 %v2064, %v2227
    %v2229 = vpop.f32.mrf.mxu0
    %2230 = vmatprep.mubr.bf16.mxu0 0
    %2231 = vmatmul.mubr.bf16.gmra.mxu0 %v2142
    %v2232 = vpop.f32.mrf.mxu0
    %v2233 = vadd.f32 %v2069, %v2232
    %v2234 = vpop.f32.mrf.mxu0
    %v2235 = vpop.f32.mrf.mxu0
    %v2236 = vadd.f32 %v2072, %v2235
    %v2237 = vpop.f32.mrf.mxu0
    %2238 = vmatprep.mubr.bf16.mxu0 0
    %2239 = vmatmul.mubr.bf16.gmra.mxu0 %v2145
    %v2240 = vpop.f32.mrf.mxu0
    %v2241 = vadd.f32 %v2077, %v2240
    %v2242 = vpop.f32.mrf.mxu0
    %v2243 = vpop.f32.mrf.mxu0
    %v2244 = vadd.f32 %v2080, %v2243
    %v2245 = vpop.f32.mrf.mxu0
    %2246 = vdwg.mxu0
    %v2247 = vld [vmem:[%s3 + $0x8] sm:$0xf]
    %v2264 = vunpack.c.l.b16 %v1865
    %v2265 = vunpack.c.l.b16 %v1866
    %v2266 = vunpack.c.l.b16 %v1867
    %v2267 = vunpack.c.l.b16 %v1868
    %v2268 = vunpack.c.l.b16 %v1869
    %v2269 = vunpack.c.l.b16 %v1870
    %v2270 = vunpack.c.l.b16 %v1871
    %v2271 = vunpack.c.l.b16 %v1872
    %v2272 = vunpack.c.l.b16 %v1873
    %v2273 = vunpack.c.l.b16 %v1874
    %v2274 = vunpack.c.l.b16 %v1875
    %v2275 = vunpack.c.l.b16 %v1876
    %v2276 = vunpack.c.l.b16 %v1877
    %v2277 = vunpack.c.l.b16 %v1878
    %v2278 = vunpack.c.l.b16 %v1879
    %v2279 = vunpack.c.l.b16 %v1880
    %v2280 = vpack.c.b16 %v2265, %v2264
    %v2281 = vpack.c.b16 %v2267, %v2266
    %v2282 = vpack.c.b16 %v2269, %v2268
    %v2283 = vpack.c.b16 %v2271, %v2270
    %v2284 = vpack.c.b16 %v2273, %v2272
    %v2285 = vpack.c.b16 %v2275, %v2274
    %v2286 = vpack.c.b16 %v2277, %v2276
    %v2287 = vpack.c.b16 %v2279, %v2278
    %v2289 = vsel %vm1957, %v2280, 0
    %v2292 = vsel %vm1957, %v2281, 0
    %v2295 = vsel %vm1957, %v2282, 0
    %v2298 = vsel %vm1957, %v2283, 0
    %v2301 = vsel %vm1957, %v2284, 0
    %v2304 = vsel %vm1957, %v2285, 0
    %v2307 = vsel %vm1957, %v2286, 0
    %v2310 = vsel %vm1957, %v2287, 0
    %v2313 = vsel %vm1982, %v2247, 0
    %2315 = vmatprep.subr.bf16.mxu0 0
    %2316 = vmatpush1.bf16.msra.mxu0 0
    %2317 = vmatprep.subr.bf16.mxu0 0
    %2318 = vmatpush1.bf16.msra.mxu0 0
    %2319 = vmatprep.subr.bf16.mxu0 0
    %2320 = vmatpush1.bf16.msra.mxu0 0
    %2321 = vmatprep.subr.bf16.mxu0 0
    %2322 = vmatpush1.bf16.msra.mxu0 0
    %2323 = vmatprep.subr.bf16.mxu0 0
    %2324 = vmatpush1.bf16.msra.mxu0 0
    %2325 = vmatprep.subr.bf16.mxu0 0
    %2326 = vmatpush1.bf16.msra.mxu0 0
    %2327 = vmatprep.subr.bf16.mxu0 0
    %2328 = vmatpush1.bf16.msra.mxu0 0
    %2329 = vmatprep.subr.bf16.mxu0 0
    %2330 = vmatpush1.bf16.msra.mxu0 %v2313
    %2331 = vmatprep.subr.bf16.mxu0 0
    %2332 = vmatpush2.bf16.msra.mxu0 0
    %2333 = vmatprep.subr.bf16.mxu0 0
    %2334 = vmatpush2.bf16.msra.mxu0 0
    %2335 = vmatprep.subr.bf16.mxu0 0
    %2336 = vmatpush2.bf16.msra.mxu0 0
    %2337 = vmatprep.subr.bf16.mxu0 0
    %2338 = vmatpush2.bf16.msra.mxu0 0
    %2339 = vmatprep.subr.bf16.mxu0 0
    %2340 = vmatpush2.bf16.msra.mxu0 0
    %2341 = vmatprep.subr.bf16.mxu0 0
    %2342 = vmatpush2.bf16.msra.mxu0 0
    %2343 = vmatprep.subr.bf16.mxu0 0
    %2344 = vmatpush2.bf16.msra.mxu0 0
    %2345 = vmatprep.subr.bf16.mxu0 0
    %2346 = vmatpush2.bf16.msra.mxu0 0
    %2347 = vmatprep.mubr.bf16.mxu0 0
    %2348 = vmatmul.mubr.bf16.gmra.mxu0 %v2289
    %v2349 = vpop.f32.mrf.mxu0
    %v2350 = vadd.f32 0.0, %v2349
    %v2351 = vpop.f32.mrf.mxu0
    %v2352 = vpop.f32.mrf.mxu0
    %v2353 = vadd.f32 0.0, %v2352
    %v2354 = vpop.f32.mrf.mxu0
    %2355 = vmatprep.mubr.bf16.mxu0 0
    %2356 = vmatmul.mubr.bf16.gmra.mxu0 %v2292
    %v2357 = vpop.f32.mrf.mxu0
    %v2358 = vadd.f32 0.0, %v2357
    %v2359 = vpop.f32.mrf.mxu0
    %v2360 = vpop.f32.mrf.mxu0
    %v2361 = vadd.f32 0.0, %v2360
    %v2362 = vpop.f32.mrf.mxu0
    %2363 = vmatprep.mubr.bf16.mxu0 0
    %2364 = vmatmul.mubr.bf16.gmra.mxu0 %v2295
    %v2365 = vpop.f32.mrf.mxu0
    %v2366 = vadd.f32 0.0, %v2365
    %v2367 = vpop.f32.mrf.mxu0
    %v2368 = vpop.f32.mrf.mxu0
    %v2369 = vadd.f32 0.0, %v2368
    %v2370 = vpop.f32.mrf.mxu0
    %2371 = vmatprep.mubr.bf16.mxu0 0
    %2372 = vmatmul.mubr.bf16.gmra.mxu0 %v2298
    %v2373 = vpop.f32.mrf.mxu0
    %v2374 = vadd.f32 0.0, %v2373
    %v2375 = vpop.f32.mrf.mxu0
    %v2376 = vpop.f32.mrf.mxu0
    %v2377 = vadd.f32 0.0, %v2376
    %v2378 = vpop.f32.mrf.mxu0
    %2379 = vmatprep.mubr.bf16.mxu0 0
    %2380 = vmatmul.mubr.bf16.gmra.mxu0 %v2301
    %v2381 = vpop.f32.mrf.mxu0
    %v2382 = vadd.f32 0.0, %v2381
    %v2383 = vpop.f32.mrf.mxu0
    %v2384 = vpop.f32.mrf.mxu0
    %v2385 = vadd.f32 0.0, %v2384
    %v2386 = vpop.f32.mrf.mxu0
    %2387 = vmatprep.mubr.bf16.mxu0 0
    %2388 = vmatmul.mubr.bf16.gmra.mxu0 %v2304
    %v2389 = vpop.f32.mrf.mxu0
    %v2390 = vadd.f32 0.0, %v2389
    %v2391 = vpop.f32.mrf.mxu0
    %v2392 = vpop.f32.mrf.mxu0
    %v2393 = vadd.f32 0.0, %v2392
    %v2394 = vpop.f32.mrf.mxu0
    %2395 = vmatprep.mubr.bf16.mxu0 0
    %2396 = vmatmul.mubr.bf16.gmra.mxu0 %v2307
    %v2397 = vpop.f32.mrf.mxu0
    %v2398 = vadd.f32 0.0, %v2397
    %v2399 = vpop.f32.mrf.mxu0
    %v2400 = vpop.f32.mrf.mxu0
    %v2401 = vadd.f32 0.0, %v2400
    %v2402 = vpop.f32.mrf.mxu0
    %2403 = vmatprep.mubr.bf16.mxu0 0
    %2404 = vmatmul.mubr.bf16.gmra.mxu0 %v2310
    %v2405 = vpop.f32.mrf.mxu0
    %v2406 = vadd.f32 0.0, %v2405
    %v2407 = vpop.f32.mrf.mxu0
    %v2408 = vpop.f32.mrf.mxu0
    %v2409 = vadd.f32 0.0, %v2408
    %v2410 = vpop.f32.mrf.mxu0
    %2411 = vdwg.mxu0
    %v2412 = vadd.f32 %v2185, %v2350
    %v2413 = vadd.f32 %v2188, %v2353
    %v2414 = vadd.f32 %v2193, %v2358
    %v2415 = vadd.f32 %v2196, %v2361
    %v2416 = vadd.f32 %v2201, %v2366
    %v2417 = vadd.f32 %v2204, %v2369
    %v2418 = vadd.f32 %v2209, %v2374
    %v2419 = vadd.f32 %v2212, %v2377
    %v2420 = vadd.f32 %v2217, %v2382
    %v2421 = vadd.f32 %v2220, %v2385
    %v2422 = vadd.f32 %v2225, %v2390
    %v2423 = vadd.f32 %v2228, %v2393
    %v2424 = vadd.f32 %v2233, %v2398
    %v2425 = vadd.f32 %v2236, %v2401
    %v2426 = vadd.f32 %v2241, %v2406
    %v2427 = vadd.f32 %v2244, %v2409
    %v2428 = vld [vmem:[%s3 + $0xc] sm:$0xf]
    %v2445 = vunpack.c.l.b16 %v1881
    %v2446 = vunpack.c.l.b16 %v1882
    %v2447 = vunpack.c.l.b16 %v1883
    %v2448 = vunpack.c.l.b16 %v1884
    %v2449 = vunpack.c.l.b16 %v1885
    %v2450 = vunpack.c.l.b16 %v1886
    %v2451 = vunpack.c.l.b16 %v1887
    %v2452 = vunpack.c.l.b16 %v1888
    %v2453 = vunpack.c.l.b16 %v1889
    %v2454 = vunpack.c.l.b16 %v1890
    %v2455 = vunpack.c.l.b16 %v1891
    %v2456 = vunpack.c.l.b16 %v1892
    %v2457 = vunpack.c.l.b16 %v1893
    %v2458 = vunpack.c.l.b16 %v1894
    %v2459 = vunpack.c.l.b16 %v1895
    %v2460 = vunpack.c.l.b16 %v1896
    %v2461 = vpack.c.b16 %v2446, %v2445
    %v2462 = vpack.c.b16 %v2448, %v2447
    %v2463 = vpack.c.b16 %v2450, %v2449
    %v2464 = vpack.c.b16 %v2452, %v2451
    %v2465 = vpack.c.b16 %v2454, %v2453
    %v2466 = vpack.c.b16 %v2456, %v2455
    %v2467 = vpack.c.b16 %v2458, %v2457
    %v2468 = vpack.c.b16 %v2460, %v2459
    %v2470 = vsel %vm1957, %v2461, 0
    %v2473 = vsel %vm1957, %v2462, 0
    %v2476 = vsel %vm1957, %v2463, 0
    %v2479 = vsel %vm1957, %v2464, 0
    %v2482 = vsel %vm1957, %v2465, 0
    %v2485 = vsel %vm1957, %v2466, 0
    %v2488 = vsel %vm1957, %v2467, 0
    %v2491 = vsel %vm1957, %v2468, 0
    %v2494 = vsel %vm1982, %v2428, 0
    %2496 = vmatprep.subr.bf16.mxu0 0
    %2497 = vmatpush1.bf16.msra.mxu0 0
    %2498 = vmatprep.subr.bf16.mxu0 0
    %2499 = vmatpush1.bf16.msra.mxu0 0
    %2500 = vmatprep.subr.bf16.mxu0 0
    %2501 = vmatpush1.bf16.msra.mxu0 0
    %2502 = vmatprep.subr.bf16.mxu0 0
    %2503 = vmatpush1.bf16.msra.mxu0 0
    %2504 = vmatprep.subr.bf16.mxu0 0
    %2505 = vmatpush1.bf16.msra.mxu0 0
    %2506 = vmatprep.subr.bf16.mxu0 0
    %2507 = vmatpush1.bf16.msra.mxu0 0
    %2508 = vmatprep.subr.bf16.mxu0 0
    %2509 = vmatpush1.bf16.msra.mxu0 0
    %2510 = vmatprep.subr.bf16.mxu0 0
    %2511 = vmatpush1.bf16.msra.mxu0 %v2494
    %2512 = vmatprep.subr.bf16.mxu0 0
    %2513 = vmatpush2.bf16.msra.mxu0 0
    %2514 = vmatprep.subr.bf16.mxu0 0
    %2515 = vmatpush2.bf16.msra.mxu0 0
    %2516 = vmatprep.subr.bf16.mxu0 0
    %2517 = vmatpush2.bf16.msra.mxu0 0
    %2518 = vmatprep.subr.bf16.mxu0 0
    %2519 = vmatpush2.bf16.msra.mxu0 0
    %2520 = vmatprep.subr.bf16.mxu0 0
    %2521 = vmatpush2.bf16.msra.mxu0 0
    %2522 = vmatprep.subr.bf16.mxu0 0
    %2523 = vmatpush2.bf16.msra.mxu0 0
    %2524 = vmatprep.subr.bf16.mxu0 0
    %2525 = vmatpush2.bf16.msra.mxu0 0
    %2526 = vmatprep.subr.bf16.mxu0 0
    %2527 = vmatpush2.bf16.msra.mxu0 0
    %2528 = vmatprep.mubr.bf16.mxu0 0
    %2529 = vmatmul.mubr.bf16.gmra.mxu0 %v2470
    %v2530 = vpop.f32.mrf.mxu0
    %v2531 = vadd.f32 0.0, %v2530
    %v2532 = vpop.f32.mrf.mxu0
    %v2533 = vpop.f32.mrf.mxu0
    %v2534 = vadd.f32 0.0, %v2533
    %v2535 = vpop.f32.mrf.mxu0
    %2536 = vmatprep.mubr.bf16.mxu0 0
    %2537 = vmatmul.mubr.bf16.gmra.mxu0 %v2473
    %v2538 = vpop.f32.mrf.mxu0
    %v2539 = vadd.f32 0.0, %v2538
    %v2540 = vpop.f32.mrf.mxu0
    %v2541 = vpop.f32.mrf.mxu0
    %v2542 = vadd.f32 0.0, %v2541
    %v2543 = vpop.f32.mrf.mxu0
    %2544 = vmatprep.mubr.bf16.mxu0 0
    %2545 = vmatmul.mubr.bf16.gmra.mxu0 %v2476
    %v2546 = vpop.f32.mrf.mxu0
    %v2547 = vadd.f32 0.0, %v2546
    %v2548 = vpop.f32.mrf.mxu0
    %v2549 = vpop.f32.mrf.mxu0
    %v2550 = vadd.f32 0.0, %v2549
    %v2551 = vpop.f32.mrf.mxu0
    %2552 = vmatprep.mubr.bf16.mxu0 0
    %2553 = vmatmul.mubr.bf16.gmra.mxu0 %v2479
    %v2554 = vpop.f32.mrf.mxu0
    %v2555 = vadd.f32 0.0, %v2554
    %v2556 = vpop.f32.mrf.mxu0
    %v2557 = vpop.f32.mrf.mxu0
    %v2558 = vadd.f32 0.0, %v2557
    %v2559 = vpop.f32.mrf.mxu0
    %2560 = vmatprep.mubr.bf16.mxu0 0
    %2561 = vmatmul.mubr.bf16.gmra.mxu0 %v2482
    %v2562 = vpop.f32.mrf.mxu0
    %v2563 = vadd.f32 0.0, %v2562
    %v2564 = vpop.f32.mrf.mxu0
    %v2565 = vpop.f32.mrf.mxu0
    %v2566 = vadd.f32 0.0, %v2565
    %v2567 = vpop.f32.mrf.mxu0
    %2568 = vmatprep.mubr.bf16.mxu0 0
    %2569 = vmatmul.mubr.bf16.gmra.mxu0 %v2485
    %v2570 = vpop.f32.mrf.mxu0
    %v2571 = vadd.f32 0.0, %v2570
    %v2572 = vpop.f32.mrf.mxu0
    %v2573 = vpop.f32.mrf.mxu0
    %v2574 = vadd.f32 0.0, %v2573
    %v2575 = vpop.f32.mrf.mxu0
    %2576 = vmatprep.mubr.bf16.mxu0 0
    %2577 = vmatmul.mubr.bf16.gmra.mxu0 %v2488
    %v2578 = vpop.f32.mrf.mxu0
    %v2579 = vadd.f32 0.0, %v2578
    %v2580 = vpop.f32.mrf.mxu0
    %v2581 = vpop.f32.mrf.mxu0
    %v2582 = vadd.f32 0.0, %v2581
    %v2583 = vpop.f32.mrf.mxu0
    %2584 = vmatprep.mubr.bf16.mxu0 0
    %2585 = vmatmul.mubr.bf16.gmra.mxu0 %v2491
    %v2586 = vpop.f32.mrf.mxu0
    %v2587 = vadd.f32 0.0, %v2586
    %v2588 = vpop.f32.mrf.mxu0
    %v2589 = vpop.f32.mrf.mxu0
    %v2590 = vadd.f32 0.0, %v2589
    %v2591 = vpop.f32.mrf.mxu0
    %2592 = vdwg.mxu0
    %v2593 = vadd.f32 %v2412, %v2531
    %v2594 = vadd.f32 %v2413, %v2534
    %v2595 = vadd.f32 %v2414, %v2539
    %v2596 = vadd.f32 %v2415, %v2542
    %v2597 = vadd.f32 %v2416, %v2547
    %v2598 = vadd.f32 %v2417, %v2550
    %v2599 = vadd.f32 %v2418, %v2555
    %v2600 = vadd.f32 %v2419, %v2558
    %v2601 = vadd.f32 %v2420, %v2563
    %v2602 = vadd.f32 %v2421, %v2566
    %v2603 = vadd.f32 %v2422, %v2571
    %v2604 = vadd.f32 %v2423, %v2574
    %v2605 = vadd.f32 %v2424, %v2579
    %v2606 = vadd.f32 %v2425, %v2582
    %v2607 = vadd.f32 %v2426, %v2587
    %v2608 = vadd.f32 %v2427, %v2590
    %v2609 = vld [vmem:[%s3 + $0x10] sm:$0xf]
    %v2626 = vunpack.c.l.b16 %v1897
    %v2627 = vunpack.c.l.b16 %v1898
    %v2628 = vunpack.c.l.b16 %v1899
    %v2629 = vunpack.c.l.b16 %v1900
    %v2630 = vunpack.c.l.b16 %v1901
    %v2631 = vunpack.c.l.b16 %v1902
    %v2632 = vunpack.c.l.b16 %v1903
    %v2633 = vunpack.c.l.b16 %v1904
    %v2634 = vunpack.c.l.b16 %v1905
    %v2635 = vunpack.c.l.b16 %v1906
    %v2636 = vunpack.c.l.b16 %v1907
    %v2637 = vunpack.c.l.b16 %v1908
    %v2638 = vunpack.c.l.b16 %v1909
    %v2639 = vunpack.c.l.b16 %v1910
    %v2640 = vunpack.c.l.b16 %v1911
    %v2641 = vunpack.c.l.b16 %v1912
    %v2642 = vpack.c.b16 %v2627, %v2626
    %v2643 = vpack.c.b16 %v2629, %v2628
    %v2644 = vpack.c.b16 %v2631, %v2630
    %v2645 = vpack.c.b16 %v2633, %v2632
    %v2646 = vpack.c.b16 %v2635, %v2634
    %v2647 = vpack.c.b16 %v2637, %v2636
    %v2648 = vpack.c.b16 %v2639, %v2638
    %v2649 = vpack.c.b16 %v2641, %v2640
    %v2651 = vsel %vm1957, %v2642, 0
    %v2654 = vsel %vm1957, %v2643, 0
    %v2657 = vsel %vm1957, %v2644, 0
    %v2660 = vsel %vm1957, %v2645, 0
    %v2663 = vsel %vm1957, %v2646, 0
    %v2666 = vsel %vm1957, %v2647, 0
    %v2669 = vsel %vm1957, %v2648, 0
    %v2672 = vsel %vm1957, %v2649, 0
    %v2675 = vsel %vm1982, %v2609, 0
    %2677 = vmatprep.subr.bf16.mxu0 0
    %2678 = vmatpush1.bf16.msra.mxu0 0
    %2679 = vmatprep.subr.bf16.mxu0 0
    %2680 = vmatpush1.bf16.msra.mxu0 0
    %2681 = vmatprep.subr.bf16.mxu0 0
    %2682 = vmatpush1.bf16.msra.mxu0 0
    %2683 = vmatprep.subr.bf16.mxu0 0
    %2684 = vmatpush1.bf16.msra.mxu0 0
    %2685 = vmatprep.subr.bf16.mxu0 0
    %2686 = vmatpush1.bf16.msra.mxu0 0
    %2687 = vmatprep.subr.bf16.mxu0 0
    %2688 = vmatpush1.bf16.msra.mxu0 0
    %2689 = vmatprep.subr.bf16.mxu0 0
    %2690 = vmatpush1.bf16.msra.mxu0 0
    %2691 = vmatprep.subr.bf16.mxu0 0
    %2692 = vmatpush1.bf16.msra.mxu0 %v2675
    %2693 = vmatprep.subr.bf16.mxu0 0
    %2694 = vmatpush2.bf16.msra.mxu0 0
    %2695 = vmatprep.subr.bf16.mxu0 0
    %2696 = vmatpush2.bf16.msra.mxu0 0
    %2697 = vmatprep.subr.bf16.mxu0 0
    %2698 = vmatpush2.bf16.msra.mxu0 0
    %2699 = vmatprep.subr.bf16.mxu0 0
    %2700 = vmatpush2.bf16.msra.mxu0 0
    %2701 = vmatprep.subr.bf16.mxu0 0
    %2702 = vmatpush2.bf16.msra.mxu0 0
    %2703 = vmatprep.subr.bf16.mxu0 0
    %2704 = vmatpush2.bf16.msra.mxu0 0
    %2705 = vmatprep.subr.bf16.mxu0 0
    %2706 = vmatpush2.bf16.msra.mxu0 0
    %2707 = vmatprep.subr.bf16.mxu0 0
    %2708 = vmatpush2.bf16.msra.mxu0 0
    %2709 = vmatprep.mubr.bf16.mxu0 0
    %2710 = vmatmul.mubr.bf16.gmra.mxu0 %v2651
    %v2711 = vpop.f32.mrf.mxu0
    %v2712 = vadd.f32 0.0, %v2711
    %v2713 = vpop.f32.mrf.mxu0
    %v2714 = vpop.f32.mrf.mxu0
    %v2715 = vadd.f32 0.0, %v2714
    %v2716 = vpop.f32.mrf.mxu0
    %2717 = vmatprep.mubr.bf16.mxu0 0
    %2718 = vmatmul.mubr.bf16.gmra.mxu0 %v2654
    %v2719 = vpop.f32.mrf.mxu0
    %v2720 = vadd.f32 0.0, %v2719
    %v2721 = vpop.f32.mrf.mxu0
    %v2722 = vpop.f32.mrf.mxu0
    %v2723 = vadd.f32 0.0, %v2722
    %v2724 = vpop.f32.mrf.mxu0
    %2725 = vmatprep.mubr.bf16.mxu0 0
    %2726 = vmatmul.mubr.bf16.gmra.mxu0 %v2657
    %v2727 = vpop.f32.mrf.mxu0
    %v2728 = vadd.f32 0.0, %v2727
    %v2729 = vpop.f32.mrf.mxu0
    %v2730 = vpop.f32.mrf.mxu0
    %v2731 = vadd.f32 0.0, %v2730
    %v2732 = vpop.f32.mrf.mxu0
    %2733 = vmatprep.mubr.bf16.mxu0 0
    %2734 = vmatmul.mubr.bf16.gmra.mxu0 %v2660
    %v2735 = vpop.f32.mrf.mxu0
    %v2736 = vadd.f32 0.0, %v2735
    %v2737 = vpop.f32.mrf.mxu0
    %v2738 = vpop.f32.mrf.mxu0
    %v2739 = vadd.f32 0.0, %v2738
    %v2740 = vpop.f32.mrf.mxu0
    %2741 = vmatprep.mubr.bf16.mxu0 0
    %2742 = vmatmul.mubr.bf16.gmra.mxu0 %v2663
    %v2743 = vpop.f32.mrf.mxu0
    %v2744 = vadd.f32 0.0, %v2743
    %v2745 = vpop.f32.mrf.mxu0
    %v2746 = vpop.f32.mrf.mxu0
    %v2747 = vadd.f32 0.0, %v2746
    %v2748 = vpop.f32.mrf.mxu0
    %2749 = vmatprep.mubr.bf16.mxu0 0
    %2750 = vmatmul.mubr.bf16.gmra.mxu0 %v2666
    %v2751 = vpop.f32.mrf.mxu0
    %v2752 = vadd.f32 0.0, %v2751
    %v2753 = vpop.f32.mrf.mxu0
    %v2754 = vpop.f32.mrf.mxu0
    %v2755 = vadd.f32 0.0, %v2754
    %v2756 = vpop.f32.mrf.mxu0
    %2757 = vmatprep.mubr.bf16.mxu0 0
    %2758 = vmatmul.mubr.bf16.gmra.mxu0 %v2669
    %v2759 = vpop.f32.mrf.mxu0
    %v2760 = vadd.f32 0.0, %v2759
    %v2761 = vpop.f32.mrf.mxu0
    %v2762 = vpop.f32.mrf.mxu0
    %v2763 = vadd.f32 0.0, %v2762
    %v2764 = vpop.f32.mrf.mxu0
    %2765 = vmatprep.mubr.bf16.mxu0 0
    %2766 = vmatmul.mubr.bf16.gmra.mxu0 %v2672
    %v2767 = vpop.f32.mrf.mxu0
    %v2768 = vadd.f32 0.0, %v2767
    %v2769 = vpop.f32.mrf.mxu0
    %v2770 = vpop.f32.mrf.mxu0
    %v2771 = vadd.f32 0.0, %v2770
    %v2772 = vpop.f32.mrf.mxu0
    %2773 = vdwg.mxu0
    %v2774 = vadd.f32 %v2593, %v2712
    %v2775 = vadd.f32 %v2594, %v2715
    %v2776 = vadd.f32 %v2595, %v2720
    %v2777 = vadd.f32 %v2596, %v2723
    %v2778 = vadd.f32 %v2597, %v2728
    %v2779 = vadd.f32 %v2598, %v2731
    %v2780 = vadd.f32 %v2599, %v2736
    %v2781 = vadd.f32 %v2600, %v2739
    %v2782 = vadd.f32 %v2601, %v2744
    %v2783 = vadd.f32 %v2602, %v2747
    %v2784 = vadd.f32 %v2603, %v2752
    %v2785 = vadd.f32 %v2604, %v2755
    %v2786 = vadd.f32 %v2605, %v2760
    %v2787 = vadd.f32 %v2606, %v2763
    %v2788 = vadd.f32 %v2607, %v2768
    %v2789 = vadd.f32 %v2608, %v2771
    %v2790 = vld [vmem:[%s3 + $0x14] sm:$0xf]
    %v2793 = vunpack.c.l.b16 %v1913
    %v2794 = vunpack.c.l.b16 %v1914
    %v2795 = vpack.c.b16 %v2447, %v2446
    %v2796 = vpack.c.b16 %v2449, %v2448
    %v2797 = vpack.c.b16 %v2451, %v2450
    %v2798 = vpack.c.b16 %v2793, %v2452
    %v2799 = vpack.c.b16 %v2455, %v2454
    %v2800 = vpack.c.b16 %v2457, %v2456
    %v2801 = vpack.c.b16 %v2459, %v2458
    %v2802 = vpack.c.b16 %v2794, %v2460
    %v2804 = vsel %vm1957, %v2795, 0
    %v2807 = vsel %vm1957, %v2796, 0
    %v2810 = vsel %vm1957, %v2797, 0
    %v2813 = vsel %vm1957, %v2798, 0
    %v2816 = vsel %vm1957, %v2799, 0
    %v2819 = vsel %vm1957, %v2800, 0
    %v2822 = vsel %vm1957, %v2801, 0
    %v2825 = vsel %vm1957, %v2802, 0
    %v2828 = vsel %vm1982, %v2790, 0
    %2830 = vmatprep.subr.bf16.mxu0 0
    %2831 = vmatpush1.bf16.msra.mxu0 0
    %2832 = vmatprep.subr.bf16.mxu0 0
    %2833 = vmatpush1.bf16.msra.mxu0 0
    %2834 = vmatprep.subr.bf16.mxu0 0
    %2835 = vmatpush1.bf16.msra.mxu0 0
    %2836 = vmatprep.subr.bf16.mxu0 0
    %2837 = vmatpush1.bf16.msra.mxu0 0
    %2838 = vmatprep.subr.bf16.mxu0 0
    %2839 = vmatpush1.bf16.msra.mxu0 0
    %2840 = vmatprep.subr.bf16.mxu0 0
    %2841 = vmatpush1.bf16.msra.mxu0 0
    %2842 = vmatprep.subr.bf16.mxu0 0
    %2843 = vmatpush1.bf16.msra.mxu0 0
    %2844 = vmatprep.subr.bf16.mxu0 0
    %2845 = vmatpush1.bf16.msra.mxu0 %v2828
    %2846 = vmatprep.subr.bf16.mxu0 0
    %2847 = vmatpush2.bf16.msra.mxu0 0
    %2848 = vmatprep.subr.bf16.mxu0 0
    %2849 = vmatpush2.bf16.msra.mxu0 0
    %2850 = vmatprep.subr.bf16.mxu0 0
    %2851 = vmatpush2.bf16.msra.mxu0 0
    %2852 = vmatprep.subr.bf16.mxu0 0
    %2853 = vmatpush2.bf16.msra.mxu0 0
    %2854 = vmatprep.subr.bf16.mxu0 0
    %2855 = vmatpush2.bf16.msra.mxu0 0
    %2856 = vmatprep.subr.bf16.mxu0 0
    %2857 = vmatpush2.bf16.msra.mxu0 0
    %2858 = vmatprep.subr.bf16.mxu0 0
    %2859 = vmatpush2.bf16.msra.mxu0 0
    %2860 = vmatprep.subr.bf16.mxu0 0
    %2861 = vmatpush2.bf16.msra.mxu0 0
    %2862 = vmatprep.mubr.bf16.mxu0 0
    %2863 = vmatmul.mubr.bf16.gmra.mxu0 %v2804
    %v2864 = vpop.f32.mrf.mxu0
    %v2865 = vadd.f32 0.0, %v2864
    %v2866 = vpop.f32.mrf.mxu0
    %v2867 = vpop.f32.mrf.mxu0
    %v2868 = vadd.f32 0.0, %v2867
    %v2869 = vpop.f32.mrf.mxu0
    %2870 = vmatprep.mubr.bf16.mxu0 0
    %2871 = vmatmul.mubr.bf16.gmra.mxu0 %v2807
    %v2872 = vpop.f32.mrf.mxu0
    %v2873 = vadd.f32 0.0, %v2872
    %v2874 = vpop.f32.mrf.mxu0
    %v2875 = vpop.f32.mrf.mxu0
    %v2876 = vadd.f32 0.0, %v2875
    %v2877 = vpop.f32.mrf.mxu0
    %2878 = vmatprep.mubr.bf16.mxu0 0
    %2879 = vmatmul.mubr.bf16.gmra.mxu0 %v2810
    %v2880 = vpop.f32.mrf.mxu0
    %v2881 = vadd.f32 0.0, %v2880
    %v2882 = vpop.f32.mrf.mxu0
    %v2883 = vpop.f32.mrf.mxu0
    %v2884 = vadd.f32 0.0, %v2883
    %v2885 = vpop.f32.mrf.mxu0
    %2886 = vmatprep.mubr.bf16.mxu0 0
    %2887 = vmatmul.mubr.bf16.gmra.mxu0 %v2813
    %v2888 = vpop.f32.mrf.mxu0
    %v2889 = vadd.f32 0.0, %v2888
    %v2890 = vpop.f32.mrf.mxu0
    %v2891 = vpop.f32.mrf.mxu0
    %v2892 = vadd.f32 0.0, %v2891
    %v2893 = vpop.f32.mrf.mxu0
    %2894 = vmatprep.mubr.bf16.mxu0 0
    %2895 = vmatmul.mubr.bf16.gmra.mxu0 %v2816
    %v2896 = vpop.f32.mrf.mxu0
    %v2897 = vadd.f32 0.0, %v2896
    %v2898 = vpop.f32.mrf.mxu0
    %v2899 = vpop.f32.mrf.mxu0
    %v2900 = vadd.f32 0.0, %v2899
    %v2901 = vpop.f32.mrf.mxu0
    %2902 = vmatprep.mubr.bf16.mxu0 0
    %2903 = vmatmul.mubr.bf16.gmra.mxu0 %v2819
    %v2904 = vpop.f32.mrf.mxu0
    %v2905 = vadd.f32 0.0, %v2904
    %v2906 = vpop.f32.mrf.mxu0
    %v2907 = vpop.f32.mrf.mxu0
    %v2908 = vadd.f32 0.0, %v2907
    %v2909 = vpop.f32.mrf.mxu0
    %2910 = vmatprep.mubr.bf16.mxu0 0
    %2911 = vmatmul.mubr.bf16.gmra.mxu0 %v2822
    %v2912 = vpop.f32.mrf.mxu0
    %v2913 = vadd.f32 0.0, %v2912
    %v2914 = vpop.f32.mrf.mxu0
    %v2915 = vpop.f32.mrf.mxu0
    %v2916 = vadd.f32 0.0, %v2915
    %v2917 = vpop.f32.mrf.mxu0
    %2918 = vmatprep.mubr.bf16.mxu0 0
    %2919 = vmatmul.mubr.bf16.gmra.mxu0 %v2825
    %v2920 = vpop.f32.mrf.mxu0
    %v2921 = vadd.f32 0.0, %v2920
    %v2922 = vpop.f32.mrf.mxu0
    %v2923 = vpop.f32.mrf.mxu0
    %v2924 = vadd.f32 0.0, %v2923
    %v2925 = vpop.f32.mrf.mxu0
    %2926 = vdwg.mxu0
    %v2927 = vadd.f32 %v2774, %v2865
    %v2928 = vadd.f32 %v2775, %v2868
    %v2929 = vadd.f32 %v2776, %v2873
    %v2930 = vadd.f32 %v2777, %v2876
    %v2931 = vadd.f32 %v2778, %v2881
    %v2932 = vadd.f32 %v2779, %v2884
    %v2933 = vadd.f32 %v2780, %v2889
    %v2934 = vadd.f32 %v2781, %v2892
    %v2935 = vadd.f32 %v2782, %v2897
    %v2936 = vadd.f32 %v2783, %v2900
    %v2937 = vadd.f32 %v2784, %v2905
    %v2938 = vadd.f32 %v2785, %v2908
    %v2939 = vadd.f32 %v2786, %v2913
    %v2940 = vadd.f32 %v2787, %v2916
    %v2941 = vadd.f32 %v2788, %v2921
    %v2942 = vadd.f32 %v2789, %v2924
    %v2943 = vld [vmem:[%s3 + $0x18] sm:$0xf]
    %v2960 = vunpack.c.l.b16 %v1405
    %v2961 = vunpack.c.l.b16 %v1406
    %v2962 = vunpack.c.l.b16 %v1407
    %v2963 = vunpack.c.l.b16 %v1408
    %v2964 = vunpack.c.l.b16 %v1409
    %v2965 = vunpack.c.l.b16 %v1410
    %v2966 = vunpack.c.l.b16 %v1411
    %v2967 = vunpack.c.l.b16 %v1412
    %v2968 = vunpack.c.l.b16 %v1414
    %v2969 = vunpack.c.l.b16 %v1415
    %v2970 = vunpack.c.l.b16 %v1416
    %v2971 = vunpack.c.l.b16 %v1417
    %v2972 = vunpack.c.l.b16 %v1418
    %v2973 = vunpack.c.l.b16 %v1419
    %v2974 = vunpack.c.l.b16 %v1420
    %v2975 = vunpack.c.l.b16 %v1421
    %v2976 = vpack.c.b16 %v2961, %v2960
    %v2977 = vpack.c.b16 %v2963, %v2962
    %v2978 = vpack.c.b16 %v2965, %v2964
    %v2979 = vpack.c.b16 %v2967, %v2966
    %v2980 = vpack.c.b16 %v2969, %v2968
    %v2981 = vpack.c.b16 %v2971, %v2970
    %v2982 = vpack.c.b16 %v2973, %v2972
    %v2983 = vpack.c.b16 %v2975, %v2974
    %v2985 = vsel %vm1957, %v2976, 0
    %v2988 = vsel %vm1957, %v2977, 0
    %v2991 = vsel %vm1957, %v2978, 0
    %v2994 = vsel %vm1957, %v2979, 0
    %v2997 = vsel %vm1957, %v2980, 0
    %v3000 = vsel %vm1957, %v2981, 0
    %v3003 = vsel %vm1957, %v2982, 0
    %v3006 = vsel %vm1957, %v2983, 0
    %v3009 = vsel %vm1982, %v2943, 0
    %3011 = vmatprep.subr.bf16.mxu0 0
    %3012 = vmatpush1.bf16.msra.mxu0 0
    %3013 = vmatprep.subr.bf16.mxu0 0
    %3014 = vmatpush1.bf16.msra.mxu0 0
    %3015 = vmatprep.subr.bf16.mxu0 0
    %3016 = vmatpush1.bf16.msra.mxu0 0
    %3017 = vmatprep.subr.bf16.mxu0 0
    %3018 = vmatpush1.bf16.msra.mxu0 0
    %3019 = vmatprep.subr.bf16.mxu0 0
    %3020 = vmatpush1.bf16.msra.mxu0 0
    %3021 = vmatprep.subr.bf16.mxu0 0
    %3022 = vmatpush1.bf16.msra.mxu0 0
    %3023 = vmatprep.subr.bf16.mxu0 0
    %3024 = vmatpush1.bf16.msra.mxu0 0
    %3025 = vmatprep.subr.bf16.mxu0 0
    %3026 = vmatpush1.bf16.msra.mxu0 %v3009
    %3027 = vmatprep.subr.bf16.mxu0 0
    %3028 = vmatpush2.bf16.msra.mxu0 0
    %3029 = vmatprep.subr.bf16.mxu0 0
    %3030 = vmatpush2.bf16.msra.mxu0 0
    %3031 = vmatprep.subr.bf16.mxu0 0
    %3032 = vmatpush2.bf16.msra.mxu0 0
    %3033 = vmatprep.subr.bf16.mxu0 0
    %3034 = vmatpush2.bf16.msra.mxu0 0
    %3035 = vmatprep.subr.bf16.mxu0 0
    %3036 = vmatpush2.bf16.msra.mxu0 0
    %3037 = vmatprep.subr.bf16.mxu0 0
    %3038 = vmatpush2.bf16.msra.mxu0 0
    %3039 = vmatprep.subr.bf16.mxu0 0
    %3040 = vmatpush2.bf16.msra.mxu0 0
    %3041 = vmatprep.subr.bf16.mxu0 0
    %3042 = vmatpush2.bf16.msra.mxu0 0
    %3043 = vmatprep.mubr.bf16.mxu0 0
    %3044 = vmatmul.mubr.bf16.gmra.mxu0 %v2985
    %v3045 = vpop.f32.mrf.mxu0
    %v3046 = vadd.f32 0.0, %v3045
    %v3047 = vpop.f32.mrf.mxu0
    %v3048 = vpop.f32.mrf.mxu0
    %v3049 = vadd.f32 0.0, %v3048
    %v3050 = vpop.f32.mrf.mxu0
    %3051 = vmatprep.mubr.bf16.mxu0 0
    %3052 = vmatmul.mubr.bf16.gmra.mxu0 %v2988
    %v3053 = vpop.f32.mrf.mxu0
    %v3054 = vadd.f32 0.0, %v3053
    %v3055 = vpop.f32.mrf.mxu0
    %v3056 = vpop.f32.mrf.mxu0
    %v3057 = vadd.f32 0.0, %v3056
    %v3058 = vpop.f32.mrf.mxu0
    %3059 = vmatprep.mubr.bf16.mxu0 0
    %3060 = vmatmul.mubr.bf16.gmra.mxu0 %v2991
    %v3061 = vpop.f32.mrf.mxu0
    %v3062 = vadd.f32 0.0, %v3061
    %v3063 = vpop.f32.mrf.mxu0
    %v3064 = vpop.f32.mrf.mxu0
    %v3065 = vadd.f32 0.0, %v3064
    %v3066 = vpop.f32.mrf.mxu0
    %3067 = vmatprep.mubr.bf16.mxu0 0
    %3068 = vmatmul.mubr.bf16.gmra.mxu0 %v2994
    %v3069 = vpop.f32.mrf.mxu0
    %v3070 = vadd.f32 0.0, %v3069
    %v3071 = vpop.f32.mrf.mxu0
    %v3072 = vpop.f32.mrf.mxu0
    %v3073 = vadd.f32 0.0, %v3072
    %v3074 = vpop.f32.mrf.mxu0
    %3075 = vmatprep.mubr.bf16.mxu0 0
    %3076 = vmatmul.mubr.bf16.gmra.mxu0 %v2997
    %v3077 = vpop.f32.mrf.mxu0
    %v3078 = vadd.f32 0.0, %v3077
    %v3079 = vpop.f32.mrf.mxu0
    %v3080 = vpop.f32.mrf.mxu0
    %v3081 = vadd.f32 0.0, %v3080
    %v3082 = vpop.f32.mrf.mxu0
    %3083 = vmatprep.mubr.bf16.mxu0 0
    %3084 = vmatmul.mubr.bf16.gmra.mxu0 %v3000
    %v3085 = vpop.f32.mrf.mxu0
    %v3086 = vadd.f32 0.0, %v3085
    %v3087 = vpop.f32.mrf.mxu0
    %v3088 = vpop.f32.mrf.mxu0
    %v3089 = vadd.f32 0.0, %v3088
    %v3090 = vpop.f32.mrf.mxu0
    %3091 = vmatprep.mubr.bf16.mxu0 0
    %3092 = vmatmul.mubr.bf16.gmra.mxu0 %v3003
    %v3093 = vpop.f32.mrf.mxu0
    %v3094 = vadd.f32 0.0, %v3093
    %v3095 = vpop.f32.mrf.mxu0
    %v3096 = vpop.f32.mrf.mxu0
    %v3097 = vadd.f32 0.0, %v3096
    %v3098 = vpop.f32.mrf.mxu0
    %3099 = vmatprep.mubr.bf16.mxu0 0
    %3100 = vmatmul.mubr.bf16.gmra.mxu0 %v3006
    %v3101 = vpop.f32.mrf.mxu0
    %v3102 = vadd.f32 0.0, %v3101
    %v3103 = vpop.f32.mrf.mxu0
    %v3104 = vpop.f32.mrf.mxu0
    %v3105 = vadd.f32 0.0, %v3104
    %v3106 = vpop.f32.mrf.mxu0
    %3107 = vdwg.mxu0
    %v3108 = vadd.f32 %v2927, %v3046
    %v3109 = vadd.f32 %v2928, %v3049
    %v3110 = vadd.f32 %v2929, %v3054
    %v3111 = vadd.f32 %v2930, %v3057
    %v3112 = vadd.f32 %v2931, %v3062
    %v3113 = vadd.f32 %v2932, %v3065
    %v3114 = vadd.f32 %v2933, %v3070
    %v3115 = vadd.f32 %v2934, %v3073
    %v3116 = vadd.f32 %v2935, %v3078
    %v3117 = vadd.f32 %v2936, %v3081
    %v3118 = vadd.f32 %v2937, %v3086
    %v3119 = vadd.f32 %v2938, %v3089
    %v3120 = vadd.f32 %v2939, %v3094
    %v3121 = vadd.f32 %v2940, %v3097
    %v3122 = vadd.f32 %v2941, %v3102
    %v3123 = vadd.f32 %v2942, %v3105
    %v3124 = vld [vmem:[%s3 + $0x1c] sm:$0xf]
    %v3141 = vunpack.c.l.b16 %v1626
    %v3142 = vunpack.c.l.b16 %v1627
    %v3143 = vunpack.c.l.b16 %v1628
    %v3144 = vunpack.c.l.b16 %v1629
    %v3145 = vunpack.c.l.b16 %v1630
    %v3146 = vunpack.c.l.b16 %v1631
    %v3147 = vunpack.c.l.b16 %v1632
    %v3148 = vunpack.c.l.b16 %v1633
    %v3149 = vunpack.c.l.b16 %v1635
    %v3150 = vunpack.c.l.b16 %v1636
    %v3151 = vunpack.c.l.b16 %v1637
    %v3152 = vunpack.c.l.b16 %v1638
    %v3153 = vunpack.c.l.b16 %v1639
    %v3154 = vunpack.c.l.b16 %v1640
    %v3155 = vunpack.c.l.b16 %v1641
    %v3156 = vunpack.c.l.b16 %v1642
    %v3157 = vpack.c.b16 %v3142, %v3141
    %v3158 = vpack.c.b16 %v3144, %v3143
    %v3159 = vpack.c.b16 %v3146, %v3145
    %v3160 = vpack.c.b16 %v3148, %v3147
    %v3161 = vpack.c.b16 %v3150, %v3149
    %v3162 = vpack.c.b16 %v3152, %v3151
    %v3163 = vpack.c.b16 %v3154, %v3153
    %v3164 = vpack.c.b16 %v3156, %v3155
    %v3166 = vsel %vm1957, %v3157, 0
    %v3169 = vsel %vm1957, %v3158, 0
    %v3172 = vsel %vm1957, %v3159, 0
    %v3175 = vsel %vm1957, %v3160, 0
    %v3178 = vsel %vm1957, %v3161, 0
    %v3181 = vsel %vm1957, %v3162, 0
    %v3184 = vsel %vm1957, %v3163, 0
    %v3187 = vsel %vm1957, %v3164, 0
    %v3190 = vsel %vm1982, %v3124, 0
    %3192 = vmatprep.subr.bf16.mxu0 0
    %3193 = vmatpush1.bf16.msra.mxu0 0
    %3194 = vmatprep.subr.bf16.mxu0 0
    %3195 = vmatpush1.bf16.msra.mxu0 0
    %3196 = vmatprep.subr.bf16.mxu0 0
    %3197 = vmatpush1.bf16.msra.mxu0 0
    %3198 = vmatprep.subr.bf16.mxu0 0
    %3199 = vmatpush1.bf16.msra.mxu0 0
    %3200 = vmatprep.subr.bf16.mxu0 0
    %3201 = vmatpush1.bf16.msra.mxu0 0
    %3202 = vmatprep.subr.bf16.mxu0 0
    %3203 = vmatpush1.bf16.msra.mxu0 0
    %3204 = vmatprep.subr.bf16.mxu0 0
    %3205 = vmatpush1.bf16.msra.mxu0 0
    %3206 = vmatprep.subr.bf16.mxu0 0
    %3207 = vmatpush1.bf16.msra.mxu0 %v3190
    %3208 = vmatprep.subr.bf16.mxu0 0
    %3209 = vmatpush2.bf16.msra.mxu0 0
    %3210 = vmatprep.subr.bf16.mxu0 0
    %3211 = vmatpush2.bf16.msra.mxu0 0
    %3212 = vmatprep.subr.bf16.mxu0 0
    %3213 = vmatpush2.bf16.msra.mxu0 0
    %3214 = vmatprep.subr.bf16.mxu0 0
    %3215 = vmatpush2.bf16.msra.mxu0 0
    %3216 = vmatprep.subr.bf16.mxu0 0
    %3217 = vmatpush2.bf16.msra.mxu0 0
    %3218 = vmatprep.subr.bf16.mxu0 0
    %3219 = vmatpush2.bf16.msra.mxu0 0
    %3220 = vmatprep.subr.bf16.mxu0 0
    %3221 = vmatpush2.bf16.msra.mxu0 0
    %3222 = vmatprep.subr.bf16.mxu0 0
    %3223 = vmatpush2.bf16.msra.mxu0 0
    %3224 = vmatprep.mubr.bf16.mxu0 0
    %3225 = vmatmul.mubr.bf16.gmra.mxu0 %v3166
    %v3226 = vpop.f32.mrf.mxu0
    %v3227 = vadd.f32 0.0, %v3226
    %v3228 = vpop.f32.mrf.mxu0
    %v3229 = vpop.f32.mrf.mxu0
    %v3230 = vadd.f32 0.0, %v3229
    %v3231 = vpop.f32.mrf.mxu0
    %3232 = vmatprep.mubr.bf16.mxu0 0
    %3233 = vmatmul.mubr.bf16.gmra.mxu0 %v3169
    %v3234 = vpop.f32.mrf.mxu0
    %v3235 = vadd.f32 0.0, %v3234
    %v3236 = vpop.f32.mrf.mxu0
    %v3237 = vpop.f32.mrf.mxu0
    %v3238 = vadd.f32 0.0, %v3237
    %v3239 = vpop.f32.mrf.mxu0
    %3240 = vmatprep.mubr.bf16.mxu0 0
    %3241 = vmatmul.mubr.bf16.gmra.mxu0 %v3172
    %v3242 = vpop.f32.mrf.mxu0
    %v3243 = vadd.f32 0.0, %v3242
    %v3244 = vpop.f32.mrf.mxu0
    %v3245 = vpop.f32.mrf.mxu0
    %v3246 = vadd.f32 0.0, %v3245
    %v3247 = vpop.f32.mrf.mxu0
    %3248 = vmatprep.mubr.bf16.mxu0 0
    %3249 = vmatmul.mubr.bf16.gmra.mxu0 %v3175
    %v3250 = vpop.f32.mrf.mxu0
    %v3251 = vadd.f32 0.0, %v3250
    %v3252 = vpop.f32.mrf.mxu0
    %v3253 = vpop.f32.mrf.mxu0
    %v3254 = vadd.f32 0.0, %v3253
    %v3255 = vpop.f32.mrf.mxu0
    %3256 = vmatprep.mubr.bf16.mxu0 0
    %3257 = vmatmul.mubr.bf16.gmra.mxu0 %v3178
    %v3258 = vpop.f32.mrf.mxu0
    %v3259 = vadd.f32 0.0, %v3258
    %v3260 = vpop.f32.mrf.mxu0
    %v3261 = vpop.f32.mrf.mxu0
    %v3262 = vadd.f32 0.0, %v3261
    %v3263 = vpop.f32.mrf.mxu0
    %3264 = vmatprep.mubr.bf16.mxu0 0
    %3265 = vmatmul.mubr.bf16.gmra.mxu0 %v3181
    %v3266 = vpop.f32.mrf.mxu0
    %v3267 = vadd.f32 0.0, %v3266
    %v3268 = vpop.f32.mrf.mxu0
    %v3269 = vpop.f32.mrf.mxu0
    %v3270 = vadd.f32 0.0, %v3269
    %v3271 = vpop.f32.mrf.mxu0
    %3272 = vmatprep.mubr.bf16.mxu0 0
    %3273 = vmatmul.mubr.bf16.gmra.mxu0 %v3184
    %v3274 = vpop.f32.mrf.mxu0
    %v3275 = vadd.f32 0.0, %v3274
    %v3276 = vpop.f32.mrf.mxu0
    %v3277 = vpop.f32.mrf.mxu0
    %v3278 = vadd.f32 0.0, %v3277
    %v3279 = vpop.f32.mrf.mxu0
    %3280 = vmatprep.mubr.bf16.mxu0 0
    %3281 = vmatmul.mubr.bf16.gmra.mxu0 %v3187
    %v3282 = vpop.f32.mrf.mxu0
    %v3283 = vadd.f32 0.0, %v3282
    %v3284 = vpop.f32.mrf.mxu0
    %v3285 = vpop.f32.mrf.mxu0
    %v3286 = vadd.f32 0.0, %v3285
    %v3287 = vpop.f32.mrf.mxu0
    %3288 = vdwg.mxu0
    %v3289 = vadd.f32 %v3108, %v3227
    %v3290 = vadd.f32 %v3109, %v3230
    %v3291 = vadd.f32 %v3110, %v3235
    %v3292 = vadd.f32 %v3111, %v3238
    %v3293 = vadd.f32 %v3112, %v3243
    %v3294 = vadd.f32 %v3113, %v3246
    %v3295 = vadd.f32 %v3114, %v3251
    %v3296 = vadd.f32 %v3115, %v3254
    %v3297 = vadd.f32 %v3116, %v3259
    %v3298 = vadd.f32 %v3117, %v3262
    %v3299 = vadd.f32 %v3118, %v3267
    %v3300 = vadd.f32 %v3119, %v3270
    %v3301 = vadd.f32 %v3120, %v3275
    %v3302 = vadd.f32 %v3121, %v3278
    %v3303 = vadd.f32 %v3122, %v3283
    %v3304 = vadd.f32 %v3123, %v3286
    %v3305 = vld [vmem:[%s3 + $0x20] sm:$0xf]
    %v3308 = vunpack.c.l.b16 %v1828
    %v3309 = vunpack.c.l.b16 %v1830
    %v3310 = vpack.c.b16 %v2962, %v2961
    %v3311 = vpack.c.b16 %v2964, %v2963
    %v3312 = vpack.c.b16 %v2966, %v2965
    %v3313 = vpack.c.b16 %v3308, %v2967
    %v3314 = vpack.c.b16 %v2970, %v2969
    %v3315 = vpack.c.b16 %v2972, %v2971
    %v3316 = vpack.c.b16 %v2974, %v2973
    %v3317 = vpack.c.b16 %v3309, %v2975
    %v3319 = vsel %vm1957, %v3310, 0
    %v3322 = vsel %vm1957, %v3311, 0
    %v3325 = vsel %vm1957, %v3312, 0
    %v3328 = vsel %vm1957, %v3313, 0
    %v3331 = vsel %vm1957, %v3314, 0
    %v3334 = vsel %vm1957, %v3315, 0
    %v3337 = vsel %vm1957, %v3316, 0
    %v3340 = vsel %vm1957, %v3317, 0
    %v3343 = vsel %vm1982, %v3305, 0
    %3345 = vmatprep.subr.bf16.mxu0 0
    %3346 = vmatpush1.bf16.msra.mxu0 0
    %3347 = vmatprep.subr.bf16.mxu0 0
    %3348 = vmatpush1.bf16.msra.mxu0 0
    %3349 = vmatprep.subr.bf16.mxu0 0
    %3350 = vmatpush1.bf16.msra.mxu0 0
    %3351 = vmatprep.subr.bf16.mxu0 0
    %3352 = vmatpush1.bf16.msra.mxu0 0
    %3353 = vmatprep.subr.bf16.mxu0 0
    %3354 = vmatpush1.bf16.msra.mxu0 0
    %3355 = vmatprep.subr.bf16.mxu0 0
    %3356 = vmatpush1.bf16.msra.mxu0 0
    %3357 = vmatprep.subr.bf16.mxu0 0
    %3358 = vmatpush1.bf16.msra.mxu0 0
    %3359 = vmatprep.subr.bf16.mxu0 0
    %3360 = vmatpush1.bf16.msra.mxu0 %v3343
    %3361 = vmatprep.subr.bf16.mxu0 0
    %3362 = vmatpush2.bf16.msra.mxu0 0
    %3363 = vmatprep.subr.bf16.mxu0 0
    %3364 = vmatpush2.bf16.msra.mxu0 0
    %3365 = vmatprep.subr.bf16.mxu0 0
    %3366 = vmatpush2.bf16.msra.mxu0 0
    %3367 = vmatprep.subr.bf16.mxu0 0
    %3368 = vmatpush2.bf16.msra.mxu0 0
    %3369 = vmatprep.subr.bf16.mxu0 0
    %3370 = vmatpush2.bf16.msra.mxu0 0
    %3371 = vmatprep.subr.bf16.mxu0 0
    %3372 = vmatpush2.bf16.msra.mxu0 0
    %3373 = vmatprep.subr.bf16.mxu0 0
    %3374 = vmatpush2.bf16.msra.mxu0 0
    %3375 = vmatprep.subr.bf16.mxu0 0
    %3376 = vmatpush2.bf16.msra.mxu0 0
    %3377 = vmatprep.mubr.bf16.mxu0 0
    %3378 = vmatmul.mubr.bf16.gmra.mxu0 %v3319
    %v3379 = vpop.f32.mrf.mxu0
    %v3380 = vadd.f32 0.0, %v3379
    %v3381 = vpop.f32.mrf.mxu0
    %v3382 = vpop.f32.mrf.mxu0
    %v3383 = vadd.f32 0.0, %v3382
    %v3384 = vpop.f32.mrf.mxu0
    %3385 = vmatprep.mubr.bf16.mxu0 0
    %3386 = vmatmul.mubr.bf16.gmra.mxu0 %v3322
    %v3387 = vpop.f32.mrf.mxu0
    %v3388 = vadd.f32 0.0, %v3387
    %v3389 = vpop.f32.mrf.mxu0
    %v3390 = vpop.f32.mrf.mxu0
    %v3391 = vadd.f32 0.0, %v3390
    %v3392 = vpop.f32.mrf.mxu0
    %3393 = vmatprep.mubr.bf16.mxu0 0
    %3394 = vmatmul.mubr.bf16.gmra.mxu0 %v3325
    %v3395 = vpop.f32.mrf.mxu0
    %v3396 = vadd.f32 0.0, %v3395
    %v3397 = vpop.f32.mrf.mxu0
    %v3398 = vpop.f32.mrf.mxu0
    %v3399 = vadd.f32 0.0, %v3398
    %v3400 = vpop.f32.mrf.mxu0
    %3401 = vmatprep.mubr.bf16.mxu0 0
    %3402 = vmatmul.mubr.bf16.gmra.mxu0 %v3328
    %v3403 = vpop.f32.mrf.mxu0
    %v3404 = vadd.f32 0.0, %v3403
    %v3405 = vpop.f32.mrf.mxu0
    %v3406 = vpop.f32.mrf.mxu0
    %v3407 = vadd.f32 0.0, %v3406
    %v3408 = vpop.f32.mrf.mxu0
    %3409 = vmatprep.mubr.bf16.mxu0 0
    %3410 = vmatmul.mubr.bf16.gmra.mxu0 %v3331
    %v3411 = vpop.f32.mrf.mxu0
    %v3412 = vadd.f32 0.0, %v3411
    %v3413 = vpop.f32.mrf.mxu0
    %v3414 = vpop.f32.mrf.mxu0
    %v3415 = vadd.f32 0.0, %v3414
    %v3416 = vpop.f32.mrf.mxu0
    %3417 = vmatprep.mubr.bf16.mxu0 0
    %3418 = vmatmul.mubr.bf16.gmra.mxu0 %v3334
    %v3419 = vpop.f32.mrf.mxu0
    %v3420 = vadd.f32 0.0, %v3419
    %v3421 = vpop.f32.mrf.mxu0
    %v3422 = vpop.f32.mrf.mxu0
    %v3423 = vadd.f32 0.0, %v3422
    %v3424 = vpop.f32.mrf.mxu0
    %3425 = vmatprep.mubr.bf16.mxu0 0
    %3426 = vmatmul.mubr.bf16.gmra.mxu0 %v3337
    %v3427 = vpop.f32.mrf.mxu0
    %v3428 = vadd.f32 0.0, %v3427
    %v3429 = vpop.f32.mrf.mxu0
    %v3430 = vpop.f32.mrf.mxu0
    %v3431 = vadd.f32 0.0, %v3430
    %v3432 = vpop.f32.mrf.mxu0
    %3433 = vmatprep.mubr.bf16.mxu0 0
    %3434 = vmatmul.mubr.bf16.gmra.mxu0 %v3340
    %v3435 = vpop.f32.mrf.mxu0
    %v3436 = vadd.f32 0.0, %v3435
    %v3437 = vpop.f32.mrf.mxu0
    %v3438 = vpop.f32.mrf.mxu0
    %v3439 = vadd.f32 0.0, %v3438
    %v3440 = vpop.f32.mrf.mxu0
    %3441 = vdwg.mxu0
    %v3442 = vadd.f32 %v3289, %v3380
    %v3443 = vadd.f32 %v3290, %v3383
    %v3444 = vadd.f32 %v3291, %v3388
    %v3445 = vadd.f32 %v3292, %v3391
    %v3446 = vadd.f32 %v3293, %v3396
    %v3447 = vadd.f32 %v3294, %v3399
    %v3448 = vadd.f32 %v3295, %v3404
    %v3449 = vadd.f32 %v3296, %v3407
    %v3450 = vadd.f32 %v3297, %v3412
    %v3451 = vadd.f32 %v3298, %v3415
    %v3452 = vadd.f32 %v3299, %v3420
    %v3453 = vadd.f32 %v3300, %v3423
    %v3454 = vadd.f32 %v3301, %v3428
    %v3455 = vadd.f32 %v3302, %v3431
    %v3456 = vadd.f32 %v3303, %v3436
    %v3457 = vadd.f32 %v3304, %v3439
    %v3458 = vld [vmem:[%s4] sm:$0x1]
    %v3460 = vlaneseq
    %v3461 = vshrl.u32 %v3460, 7
    %v3462 = vsub.s32 0, %v3461
    %v3463 = vrot.slane %v3458, %v3462
    %v3465 = vadd.f32 %v3442, %v3463
    %v3466 = vadd.f32 %v3443, %v3463
    %v3467 = vadd.f32 %v3444, %v3463
    %v3468 = vadd.f32 %v3445, %v3463
    %v3469 = vadd.f32 %v3446, %v3463
    %v3470 = vadd.f32 %v3447, %v3463
    %v3471 = vadd.f32 %v3448, %v3463
    %v3472 = vadd.f32 %v3449, %v3463
    %v3473 = vadd.f32 %v3450, %v3463
    %v3474 = vadd.f32 %v3451, %v3463
    %v3475 = vadd.f32 %v3452, %v3463
    %v3476 = vadd.f32 %v3453, %v3463
    %v3477 = vadd.f32 %v3454, %v3463
    %v3478 = vadd.f32 %v3455, %v3463
    %v3479 = vadd.f32 %v3456, %v3463
    %v3480 = vadd.f32 %v3457, %v3463
    %v3481 = vpack.c.bf16 %v3466, %v3465
    %v3482 = vpack.c.bf16 %v3468, %v3467
    %v3483 = vpack.c.bf16 %v3470, %v3469
    %v3484 = vpack.c.bf16 %v3472, %v3471
    %v3485 = vpack.c.bf16 %v3474, %v3473
    %v3486 = vpack.c.bf16 %v3476, %v3475
    %v3487 = vpack.c.bf16 %v3478, %v3477
    %v3488 = vpack.c.bf16 %v3480, %v3479
    %v3489 = vld [vmem:[%s5] sm:$0xf]
    %v3490 = vld [vmem:[%s6] sm:$0x1]
    %v3492 = vlaneseq
    %v3493 = vshrl.u32 %v3492, 7
    %v3494 = vsub.s32 0, %v3493
    %v3495 = vrot.slane %v3490, %v3494
    %v3498 = vsel %vm1957, %v3481, 0
    %v3501 = vsel %vm1957, %v3482, 0
    %v3504 = vsel %vm1957, %v3483, 0
    %v3507 = vsel %vm1957, %v3484, 0
    %v3510 = vsel %vm1957, %v3485, 0
    %v3513 = vsel %vm1957, %v3486, 0
    %v3516 = vsel %vm1957, %v3487, 0
    %v3519 = vsel %vm1957, %v3488, 0
    %v3522 = vsel %vm1982, %v3489, 0
    %3524 = vmatprep.subr.bf16.mxu0 0
    %3525 = vmatpush1.bf16.msra.mxu0 0
    %3526 = vmatprep.subr.bf16.mxu0 0
    %3527 = vmatpush1.bf16.msra.mxu0 0
    %3528 = vmatprep.subr.bf16.mxu0 0
    %3529 = vmatpush1.bf16.msra.mxu0 0
    %3530 = vmatprep.subr.bf16.mxu0 0
    %3531 = vmatpush1.bf16.msra.mxu0 0
    %3532 = vmatprep.subr.bf16.mxu0 0
    %3533 = vmatpush1.bf16.msra.mxu0 0
    %3534 = vmatprep.subr.bf16.mxu0 0
    %3535 = vmatpush1.bf16.msra.mxu0 0
    %3536 = vmatprep.subr.bf16.mxu0 0
    %3537 = vmatpush1.bf16.msra.mxu0 0
    %3538 = vmatprep.subr.bf16.mxu0 0
    %3539 = vmatpush1.bf16.msra.mxu0 %v3522
    %3540 = vmatprep.subr.bf16.mxu0 0
    %3541 = vmatpush2.bf16.msra.mxu0 0
    %3542 = vmatprep.subr.bf16.mxu0 0
    %3543 = vmatpush2.bf16.msra.mxu0 0
    %3544 = vmatprep.subr.bf16.mxu0 0
    %3545 = vmatpush2.bf16.msra.mxu0 0
    %3546 = vmatprep.subr.bf16.mxu0 0
    %3547 = vmatpush2.bf16.msra.mxu0 0
    %3548 = vmatprep.subr.bf16.mxu0 0
    %3549 = vmatpush2.bf16.msra.mxu0 0
    %3550 = vmatprep.subr.bf16.mxu0 0
    %3551 = vmatpush2.bf16.msra.mxu0 0
    %3552 = vmatprep.subr.bf16.mxu0 0
    %3553 = vmatpush2.bf16.msra.mxu0 0
    %3554 = vmatprep.subr.bf16.mxu0 0
    %3555 = vmatpush2.bf16.msra.mxu0 0
    %3556 = vmatprep.mubr.bf16.mxu0 0
    %3557 = vmatmul.mubr.bf16.gmra.mxu0 %v3498
    %v3558 = vpop.f32.mrf.mxu0
    %v3559 = vadd.f32 %v3495, %v3558
    %v3560 = vpop.f32.mrf.mxu0
    %v3561 = vpop.f32.mrf.mxu0
    %v3562 = vadd.f32 %v3495, %v3561
    %v3563 = vpop.f32.mrf.mxu0
    %3564 = vmatprep.mubr.bf16.mxu0 0
    %3565 = vmatmul.mubr.bf16.gmra.mxu0 %v3501
    %v3566 = vpop.f32.mrf.mxu0
    %v3567 = vadd.f32 %v3495, %v3566
    %v3568 = vpop.f32.mrf.mxu0
    %v3569 = vpop.f32.mrf.mxu0
    %v3570 = vadd.f32 %v3495, %v3569
    %v3571 = vpop.f32.mrf.mxu0
    %3572 = vmatprep.mubr.bf16.mxu0 0
    %3573 = vmatmul.mubr.bf16.gmra.mxu0 %v3504
    %v3574 = vpop.f32.mrf.mxu0
    %v3575 = vadd.f32 %v3495, %v3574
    %v3576 = vpop.f32.mrf.mxu0
    %v3577 = vpop.f32.mrf.mxu0
    %v3578 = vadd.f32 %v3495, %v3577
    %v3579 = vpop.f32.mrf.mxu0
    %3580 = vmatprep.mubr.bf16.mxu0 0
    %3581 = vmatmul.mubr.bf16.gmra.mxu0 %v3507
    %v3582 = vpop.f32.mrf.mxu0
    %v3583 = vadd.f32 %v3495, %v3582
    %v3584 = vpop.f32.mrf.mxu0
    %v3585 = vpop.f32.mrf.mxu0
    %v3586 = vadd.f32 %v3495, %v3585
    %v3587 = vpop.f32.mrf.mxu0
    %3588 = vmatprep.mubr.bf16.mxu0 0
    %3589 = vmatmul.mubr.bf16.gmra.mxu0 %v3510
    %v3590 = vpop.f32.mrf.mxu0
    %v3591 = vadd.f32 %v3495, %v3590
    %v3592 = vpop.f32.mrf.mxu0
    %v3593 = vpop.f32.mrf.mxu0
    %v3594 = vadd.f32 %v3495, %v3593
    %v3595 = vpop.f32.mrf.mxu0
    %3596 = vmatprep.mubr.bf16.mxu0 0
    %3597 = vmatmul.mubr.bf16.gmra.mxu0 %v3513
    %v3598 = vpop.f32.mrf.mxu0
    %v3599 = vadd.f32 %v3495, %v3598
    %v3600 = vpop.f32.mrf.mxu0
    %v3601 = vpop.f32.mrf.mxu0
    %v3602 = vadd.f32 %v3495, %v3601
    %v3603 = vpop.f32.mrf.mxu0
    %3604 = vmatprep.mubr.bf16.mxu0 0
    %3605 = vmatmul.mubr.bf16.gmra.mxu0 %v3516
    %v3606 = vpop.f32.mrf.mxu0
    %v3607 = vadd.f32 %v3495, %v3606
    %v3608 = vpop.f32.mrf.mxu0
    %v3609 = vpop.f32.mrf.mxu0
    %v3610 = vadd.f32 %v3495, %v3609
    %v3611 = vpop.f32.mrf.mxu0
    %3612 = vmatprep.mubr.bf16.mxu0 0
    %3613 = vmatmul.mubr.bf16.gmra.mxu0 %v3519
    %v3614 = vpop.f32.mrf.mxu0
    %v3615 = vadd.f32 %v3495, %v3614
    %v3616 = vpop.f32.mrf.mxu0
    %v3617 = vpop.f32.mrf.mxu0
    %v3618 = vadd.f32 %v3495, %v3617
    %v3619 = vpop.f32.mrf.mxu0
    %3620 = vdwg.mxu0
    %v3621 = vld [vmem:[%s0] sm:$0xf]
    %v3622 = vld [vmem:[%s0 + $0x4] sm:$0xf]
    %v3623 = vld [vmem:[%s0 + $0x8] sm:$0xf]
    %v3624 = vld [vmem:[%s0 + $0xc] sm:$0xf]
    %v3625 = vld [vmem:[%s0 + $0x10] sm:$0xf]
    %v3626 = vld [vmem:[%s0 + $0x14] sm:$0xf]
    %v3627 = vld [vmem:[%s0 + $0x18] sm:$0xf]
    %v3628 = vld [vmem:[%s0 + $0x1c] sm:$0xf]
    %v3629 = vld [vmem:[%s0 + $0x80] sm:$0xf]
    %v3630 = vld [vmem:[%s0 + $0x84] sm:$0xf]
    %v3631 = vld [vmem:[%s0 + $0x88] sm:$0xf]
    %v3632 = vld [vmem:[%s0 + $0x8c] sm:$0xf]
    %v3633 = vld [vmem:[%s0 + $0x90] sm:$0xf]
    %v3634 = vld [vmem:[%s0 + $0x94] sm:$0xf]
    %v3635 = vld [vmem:[%s0 + $0x98] sm:$0xf]
    %v3636 = vld [vmem:[%s0 + $0x9c] sm:$0xf]
    %v3637 = vld [vmem:[%s7] sm:$0xf]
    %v3638 = vld [vmem:[%s7 + $0x4] sm:$0xf]
    %v3639 = vld [vmem:[%s8] sm:$0x1]
    %v3641 = vlaneseq
    %v3642 = vshrl.u32 %v3641, 7
    %v3643 = vsub.s32 0, %v3642
    %v3644 = vrot.slane %v3639, %v3643
    %v3662 = vunpack.c.l.b16 %v3621
    %v3663 = vunpack.c.l.b16 %v3622
    %v3664 = vunpack.c.l.b16 %v3623
    %v3665 = vunpack.c.l.b16 %v3624
    %v3666 = vunpack.c.l.b16 %v3625
    %v3667 = vunpack.c.l.b16 %v3626
    %v3668 = vunpack.c.l.b16 %v3627
    %v3669 = vunpack.c.l.b16 %v3628
    %v3670 = vunpack.c.l.b16 %v3629
    %v3671 = vunpack.c.l.b16 %v3630
    %v3672 = vunpack.c.l.b16 %v3631
    %v3673 = vunpack.c.l.b16 %v3632
    %v3674 = vunpack.c.l.b16 %v3633
    %v3675 = vunpack.c.l.b16 %v3634
    %v3676 = vunpack.c.l.b16 %v3635
    %v3677 = vunpack.c.l.b16 %v3636
    %v3678 = vpack.c.b16 %v3663, %v3662
    %v3679 = vpack.c.b16 %v3665, %v3664
    %v3680 = vpack.c.b16 %v3667, %v3666
    %v3681 = vpack.c.b16 %v3669, %v3668
    %v3682 = vpack.c.b16 %v3671, %v3670
    %v3683 = vpack.c.b16 %v3673, %v3672
    %v3684 = vpack.c.b16 %v3675, %v3674
    %v3685 = vpack.c.b16 %v3677, %v3676
    %v3688 = vunpack.c.l.b16 %v3637
    %v3689 = vunpack.c.l.b16 %v3638
    %v3690 = vpack.c.b16 %v3689, %v3688
    %v3693 = vsel %vm126, %v3678, 0
    %v3696 = vsel %vm126, %v3679, 0
    %v3699 = vsel %vm126, %v3680, 0
    %v3702 = vsel %vm126, %v3681, 0
    %v3705 = vsel %vm126, %v3682, 0
    %v3708 = vsel %vm126, %v3683, 0
    %v3711 = vsel %vm126, %v3684, 0
    %v3714 = vsel %vm126, %v3685, 0
    %3716 = vmatprep.subr.bf16.mxu0 0
    %3717 = vmatpush1.bf16.msra.mxu0 0
    %3718 = vmatprep.subr.bf16.mxu0 0
    %3719 = vmatpush1.bf16.msra.mxu0 0
    %3720 = vmatprep.subr.bf16.mxu0 0
    %3721 = vmatpush1.bf16.msra.mxu0 0
    %3722 = vmatprep.subr.bf16.mxu0 0
    %3723 = vmatpush1.bf16.msra.mxu0 0
    %3724 = vmatprep.subr.bf16.mxu0 0
    %3725 = vmatpush1.bf16.msra.mxu0 0
    %3726 = vmatprep.subr.bf16.mxu0 0
    %3727 = vmatpush1.bf16.msra.mxu0 0
    %3728 = vmatprep.subr.bf16.mxu0 0
    %3729 = vmatpush1.bf16.msra.mxu0 0
    %3730 = vmatprep.subr.bf16.mxu0 0
    %3731 = vmatpush1.bf16.msra.mxu0 %v3690
    %3732 = vmatprep.subr.bf16.mxu0 0
    %3733 = vmatpush2.bf16.msra.mxu0 0
    %3734 = vmatprep.subr.bf16.mxu0 0
    %3735 = vmatpush2.bf16.msra.mxu0 0
    %3736 = vmatprep.subr.bf16.mxu0 0
    %3737 = vmatpush2.bf16.msra.mxu0 0
    %3738 = vmatprep.subr.bf16.mxu0 0
    %3739 = vmatpush2.bf16.msra.mxu0 0
    %3740 = vmatprep.subr.bf16.mxu0 0
    %3741 = vmatpush2.bf16.msra.mxu0 0
    %3742 = vmatprep.subr.bf16.mxu0 0
    %3743 = vmatpush2.bf16.msra.mxu0 0
    %3744 = vmatprep.subr.bf16.mxu0 0
    %3745 = vmatpush2.bf16.msra.mxu0 0
    %3746 = vmatprep.subr.bf16.mxu0 0
    %3747 = vmatpush2.bf16.msra.mxu0 0
    %3748 = vmatprep.mubr.bf16.mxu0 0
    %3749 = vmatmul.mubr.bf16.gmra.mxu0 %v3693
    %v3750 = vpop.f32.mrf.mxu0
    %v3751 = vadd.f32 %v3644, %v3750
    %v3752 = vpop.f32.mrf.mxu0
    %v3753 = vpop.f32.mrf.mxu0
    %v3754 = vadd.f32 %v3644, %v3753
    %v3755 = vpop.f32.mrf.mxu0
    %3756 = vmatprep.mubr.bf16.mxu0 0
    %3757 = vmatmul.mubr.bf16.gmra.mxu0 %v3696
    %v3758 = vpop.f32.mrf.mxu0
    %v3759 = vadd.f32 %v3644, %v3758
    %v3760 = vpop.f32.mrf.mxu0
    %v3761 = vpop.f32.mrf.mxu0
    %v3762 = vadd.f32 %v3644, %v3761
    %v3763 = vpop.f32.mrf.mxu0
    %3764 = vmatprep.mubr.bf16.mxu0 0
    %3765 = vmatmul.mubr.bf16.gmra.mxu0 %v3699
    %v3766 = vpop.f32.mrf.mxu0
    %v3767 = vadd.f32 %v3644, %v3766
    %v3768 = vpop.f32.mrf.mxu0
    %v3769 = vpop.f32.mrf.mxu0
    %v3770 = vadd.f32 %v3644, %v3769
    %v3771 = vpop.f32.mrf.mxu0
    %3772 = vmatprep.mubr.bf16.mxu0 0
    %3773 = vmatmul.mubr.bf16.gmra.mxu0 %v3702
    %v3774 = vpop.f32.mrf.mxu0
    %v3775 = vadd.f32 %v3644, %v3774
    %v3776 = vpop.f32.mrf.mxu0
    %v3777 = vpop.f32.mrf.mxu0
    %v3778 = vadd.f32 %v3644, %v3777
    %v3779 = vpop.f32.mrf.mxu0
    %3780 = vmatprep.mubr.bf16.mxu0 0
    %3781 = vmatmul.mubr.bf16.gmra.mxu0 %v3705
    %v3782 = vpop.f32.mrf.mxu0
    %v3783 = vadd.f32 %v3644, %v3782
    %v3784 = vpop.f32.mrf.mxu0
    %v3785 = vpop.f32.mrf.mxu0
    %v3786 = vadd.f32 %v3644, %v3785
    %v3787 = vpop.f32.mrf.mxu0
    %3788 = vmatprep.mubr.bf16.mxu0 0
    %3789 = vmatmul.mubr.bf16.gmra.mxu0 %v3708
    %v3790 = vpop.f32.mrf.mxu0
    %v3791 = vadd.f32 %v3644, %v3790
    %v3792 = vpop.f32.mrf.mxu0
    %v3793 = vpop.f32.mrf.mxu0
    %v3794 = vadd.f32 %v3644, %v3793
    %v3795 = vpop.f32.mrf.mxu0
    %3796 = vmatprep.mubr.bf16.mxu0 0
    %3797 = vmatmul.mubr.bf16.gmra.mxu0 %v3711
    %v3798 = vpop.f32.mrf.mxu0
    %v3799 = vadd.f32 %v3644, %v3798
    %v3800 = vpop.f32.mrf.mxu0
    %v3801 = vpop.f32.mrf.mxu0
    %v3802 = vadd.f32 %v3644, %v3801
    %v3803 = vpop.f32.mrf.mxu0
    %3804 = vmatprep.mubr.bf16.mxu0 0
    %3805 = vmatmul.mubr.bf16.gmra.mxu0 %v3714
    %v3806 = vpop.f32.mrf.mxu0
    %v3807 = vadd.f32 %v3644, %v3806
    %v3808 = vpop.f32.mrf.mxu0
    %v3809 = vpop.f32.mrf.mxu0
    %v3810 = vadd.f32 %v3644, %v3809
    %v3811 = vpop.f32.mrf.mxu0
    %3812 = vdwg.mxu0
    %v3813 = vadd.f32 %v3559, %v3751
    %v3814 = vadd.f32 %v3562, %v3754
    %v3815 = vadd.f32 %v3567, %v3759
    %v3816 = vadd.f32 %v3570, %v3762
    %v3817 = vadd.f32 %v3575, %v3767
    %v3818 = vadd.f32 %v3578, %v3770
    %v3819 = vadd.f32 %v3583, %v3775
    %v3820 = vadd.f32 %v3586, %v3778
    %v3821 = vadd.f32 %v3591, %v3783
    %v3822 = vadd.f32 %v3594, %v3786
    %v3823 = vadd.f32 %v3599, %v3791
    %v3824 = vadd.f32 %v3602, %v3794
    %v3825 = vadd.f32 %v3607, %v3799
    %v3826 = vadd.f32 %v3610, %v3802
    %v3827 = vadd.f32 %v3615, %v3807
    %v3828 = vadd.f32 %v3618, %v3810
    %v3829 = vmax.f32 %v3813, 0.0
    %v3830 = vmax.f32 %v3814, 0.0
    %v3831 = vmax.f32 %v3815, 0.0
    %v3832 = vmax.f32 %v3816, 0.0
    %v3833 = vmax.f32 %v3817, 0.0
    %v3834 = vmax.f32 %v3818, 0.0
    %v3835 = vmax.f32 %v3819, 0.0
    %v3836 = vmax.f32 %v3820, 0.0
    %v3837 = vmax.f32 %v3821, 0.0
    %v3838 = vmax.f32 %v3822, 0.0
    %v3839 = vmax.f32 %v3823, 0.0
    %v3840 = vmax.f32 %v3824, 0.0
    %v3841 = vmax.f32 %v3825, 0.0
    %v3842 = vmax.f32 %v3826, 0.0
    %v3843 = vmax.f32 %v3827, 0.0
    %v3844 = vmax.f32 %v3828, 0.0
    %vm3845 = vcmask 261120
    %3846 = vst.msk [vmem:[#allocation3] sm:$0xff] %vm3845, %v3829
    %3847 = vst.msk [vmem:[#allocation3 + $0x8] sm:$0xff] %vm3845, %v3830
    %3848 = vst.msk [vmem:[#allocation3 + $0x10] sm:$0xff] %vm3845, %v3831
    %3849 = vst.msk [vmem:[#allocation3 + $0x18] sm:$0xff] %vm3845, %v3832
    %3850 = vst.msk [vmem:[#allocation3 + $0x20] sm:$0xff] %vm3845, %v3833
    %3851 = vst.msk [vmem:[#allocation3 + $0x28] sm:$0xff] %vm3845, %v3834
    %3852 = vst.msk [vmem:[#allocation3 + $0x30] sm:$0xff] %vm3845, %v3835
    %3853 = vst.msk [vmem:[#allocation3 + $0x38] sm:$0xff] %vm3845, %v3836
    %3854 = vst.msk [vmem:[#allocation3 + $0x40] sm:$0xff] %vm3845, %v3837
    %3855 = vst.msk [vmem:[#allocation3 + $0x48] sm:$0xff] %vm3845, %v3838
    %3856 = vst.msk [vmem:[#allocation3 + $0x50] sm:$0xff] %vm3845, %v3839
    %3857 = vst.msk [vmem:[#allocation3 + $0x58] sm:$0xff] %vm3845, %v3840
    %3858 = vst.msk [vmem:[#allocation3 + $0x60] sm:$0xff] %vm3845, %v3841
    %3859 = vst.msk [vmem:[#allocation3 + $0x68] sm:$0xff] %vm3845, %v3842
    %3860 = vst.msk [vmem:[#allocation3 + $0x70] sm:$0xff] %vm3845, %v3843
    %3861 = vst.msk [vmem:[#allocation3 + $0x78] sm:$0xff] %vm3845, %v3844
    // Predicated region
    $region38: #{bottleneck_forward.1} parent=1 // pred_check
      _
    $region39: #{bottleneck_forward.1} parent=1 // pred_check_branch
      %3863 = sbr.rel (0) target = $region41
    $region40: #{bottleneck_forward.1} parent=1 // pred_region
      %s3865 = ssub.s32 2048, 2048
      %3866 = vsyncadd [#allocation4], %s3865
      %s3867 = sshll.u32 [#allocation3], 4
      %s3868 = int_to_ptr.vmem [resolvable:$true] %s3867
      %3873 = dma.vmem_to_hbm [thread:$0]  %s3868, 2048, %s9, [#allocation4], 128, 128, 8
    $region41: #{bottleneck_forward.1} parent=1 // pred_fallthru
      _
    // Predicated region
    $region42: #{bottleneck_forward.1} parent=1 // pred_check
      _
    $region43: #{bottleneck_forward.1} parent=1 // pred_check_branch
      %3875 = sbr.rel (0) target = $region45
    $region44: #{bottleneck_forward.1} parent=1 // pred_region
      %3876 = dma.done [#allocation4], 2048
    $region45: #{bottleneck_forward.1} parent=1 // pred_fallthru
      _
    %3877 = vsyncpa [#allocation4], 1

</llo_original>
